<compile_context>
chip_gen: v7x
topology: tpu7x:2x2x1
jax: 0.10.0
libtpu: 0.0.40
codegen_flags: <defaults>
</compile_context>

<pallas_src>
import functools
import math

import jax
import jax.numpy as jnp
from jax.experimental import pallas as pl
from jax.experimental.pallas import tpu as pltpu


# ---------------------------------------------------------------------------
# Fused kernel: one grid step processes `block_b` batch elements end-to-end.
# ---------------------------------------------------------------------------
def _log2feats_kernel(
    x_ref, pos_ref,
    ln1_w_ref, ln1_b_ref,
    wq_ref, bq_ref, wkv_ref, bkv_ref, wo_ref, bo_ref,
    ln2_w_ref, ln2_b_ref,
    w1_ref, b1_ref, w2_ref, b2_ref,
    lnf_w_ref, lnf_b_ref,
    o_ref,
    *, num_heads, eps,
):
    Bt, T, D = x_ref.shape
    H = num_heads
    hd = D // H
    scale = 1.0 / math.sqrt(hd)
    N = Bt * T
    L = ln1_w_ref.shape[0]          # number of transformer blocks (2)

    def ln(x, w, b):                 # f32 LayerNorm, eps added to variance
        mean = jnp.mean(x, axis=-1, keepdims=True)
        c = x - mean
        var = jnp.mean(c * c, axis=-1, keepdims=True)
        return c * jax.lax.rsqrt(var + eps) * w.reshape(1, -1) + b.reshape(1, -1)

    def mm(x, w):                    # bf16 MXU operands, f32 accumulation
        return jnp.dot(x.astype(jnp.bfloat16), w,
                       preferred_element_type=jnp.float32)

    x = x_ref[...].astype(jnp.float32)            # [Bt, T, D]
    pos = pos_ref[...].astype(jnp.float32)        # [T, D]
    seqs = x + pos[None, :, :]
    # Literal PyTorch semantics: `seqs += pos_emb` mutates log_seqs in place,
    # so timeline_mask = (log_seqs == 0) is evaluated on the pos-added tensor.
    keep = (seqs != 0.0).astype(jnp.float32)
    seqs = seqs * keep                            # emb_dropout = identity (eval)

    # Causal mask: strict upper triangle (col > row) is disallowed.
    row = jax.lax.broadcasted_iota(jnp.int32, (T, T), 0)
    col = jax.lax.broadcasted_iota(jnp.int32, (T, T), 1)
    masked = (col > row)[None, :, :]              # [1, T, T]
    neg = jnp.float32(-1e30)

    for blk in range(L):
        s2 = seqs.reshape(N, D)
        # Pre-attention LayerNorm -> query input (key/value use the raw seqs).
        q_in = ln(s2, ln1_w_ref[blk], ln1_b_ref[blk])
        q = mm(q_in, wq_ref[blk]) + bq_ref[blk].reshape(1, D)
        kv = mm(s2, wkv_ref[blk]) + bkv_ref[blk].reshape(1, 2 * D)
        k = kv[:, :D]
        v = kv[:, D:]

        q3 = q.reshape(Bt, T, D)
        k3 = k.reshape(Bt, T, D)
        v3 = v.reshape(Bt, T, D)

        # Multi-head causal attention: per-head softmax, batch dim leading.
        # TODO(synk): for long sequences (S >~ 1k) switch to a K-tiled
        # flash-style online softmax instead of materializing [T, T] scores.
        heads = []
        for h in range(H):
            lo = h * hd
            qh = q3[:, :, lo:lo + hd].astype(jnp.bfloat16)
            kh = k3[:, :, lo:lo + hd].astype(jnp.bfloat16)
            vh = v3[:, :, lo:lo + hd].astype(jnp.bfloat16)
            s = jnp.einsum('btd,bsd->bts', qh, kh,
                           preferred_element_type=jnp.float32) * scale
            s = jnp.where(masked, neg, s)
            m = jnp.max(s, axis=-1, keepdims=True)
            e = jnp.exp(s - m)
            p = e * pl.reciprocal(jnp.sum(e, axis=-1, keepdims=True), approx=True)
            heads.append(jnp.einsum('bts,bsd->btd', p.astype(jnp.bfloat16), vh,
                                    preferred_element_type=jnp.float32))
        attn = jnp.concatenate(heads, axis=-1).reshape(N, D)
        mha_out = mm(attn, wo_ref[blk]) + bo_ref[blk].reshape(1, D)

        resid = q_in + mha_out                    # seqs = Q + mha_outputs
        sln = ln(resid, ln2_w_ref[blk], ln2_b_ref[blk])
        # PointWiseFeedForward: Conv1d(k=1) == Linear over channels.
        hmid = jnp.maximum(mm(sln, w1_ref[blk]) + b1_ref[blk].reshape(1, D), 0.0)
        ffn = mm(hmid, w2_ref[blk]) + b2_ref[blk].reshape(1, D)
        seqs = (ffn + sln).reshape(Bt, T, D)
        seqs = seqs * keep                        # seqs *= ~timeline_mask

    out = ln(seqs.reshape(N, D), lnf_w_ref[0], lnf_b_ref[0])
    o_ref[...] = out.reshape(Bt, T, D)


# ---------------------------------------------------------------------------
# Wrapper
# ---------------------------------------------------------------------------
def log2feats_forward(params, log_seqs, *, num_heads=8, block_b=None):
    B, T, D = log_seqs.shape
    assert D % num_heads == 0, "emb_dim must be divisible by num_heads"
    L = params["ln1_w"].shape[0]

    if block_b is None:
        # ~128 rows of MXU work per grid step, but keep >=2 grid steps when
        # possible so v7x's two TensorCores both get a "parallel" step.
        max_bb = max(1, 128 // max(T, 1))
        if B >= 2 and B % 2 == 0:
            max_bb = min(max_bb, B // 2)
        block_b = 1
        for cand in range(min(B, max_bb), 0, -1):
            if B % cand == 0:
                block_b = cand
                break
    assert B % block_b == 0
    grid = (B // block_b,)

    pos = params["pos_emb"][:T]

    data_map = lambda b: (b, 0, 0)
    const3 = lambda b: (0, 0, 0)
    const2 = lambda b: (0, 0)

    in_specs = [
        pl.BlockSpec((block_b, T, D), data_map),                        # log_seqs
        pl.BlockSpec((T, D), const2),                                   # pos_emb
        pl.BlockSpec((L, D), const2), pl.BlockSpec((L, D), const2),     # attn LN
        pl.BlockSpec((L, D, D), const3), pl.BlockSpec((L, D), const2),  # Wq, bq
        pl.BlockSpec((L, D, 2 * D), const3), pl.BlockSpec((L, 2 * D), const2),  # Wkv
        pl.BlockSpec((L, D, D), const3), pl.BlockSpec((L, D), const2),  # Wo, bo
        pl.BlockSpec((L, D), const2), pl.BlockSpec((L, D), const2),     # fwd LN
        pl.BlockSpec((L, D, D), const3), pl.BlockSpec((L, D), const2),  # conv1
        pl.BlockSpec((L, D, D), const3), pl.BlockSpec((L, D), const2),  # conv2
        pl.BlockSpec((1, D), const2), pl.BlockSpec((1, D), const2),     # last LN
    ]

    return pl.pallas_call(
        functools.partial(_log2feats_kernel, num_heads=num_heads, eps=1e-8),
        out_shape=jax.ShapeDtypeStruct((B, T, D), jnp.float32),
        grid=grid,
        in_specs=in_specs,
        out_specs=pl.BlockSpec((block_b, T, D), data_map),
        compiler_params=pltpu.CompilerParams(
            dimension_semantics=("parallel",)),
    )(
        log_seqs.astype(jnp.float32), pos,
        params["ln1_w"], params["ln1_b"],
        params["wq"], params["bq"], params["wkv"], params["bkv"],
        params["wo"], params["bo"],
        params["ln2_w"], params["ln2_b"],
        params["w1"], params["b1"], params["w2"], params["b2"],
        params["lnf_w"], params["lnf_b"],
    )


# ---------------------------------------------------------------------------
# Parameter init (shapes follow the PyTorch __init__; weights stored bf16 for
# the MXU, biases / LN affine params in f32).
# ---------------------------------------------------------------------------
def init_log2feats_params(key, seq_len, emb_dim, num_blocks=2):
    D, L = emb_dim, num_blocks
    keys = jax.random.split(key, 8)

    def rnd(k, shape, scale):
        return jax.random.normal(k, shape, jnp.float32) * scale

    p = {
        "pos_emb": rnd(keys[0], (seq_len, D), 0.1),
        "ln1_w": jnp.ones((L, D), jnp.float32), "ln1_b": jnp.zeros((L, D), jnp.float32),
        "ln2_w": jnp.ones((L, D), jnp.float32), "ln2_b": jnp.zeros((L, D), jnp.float32),
        "lnf_w": jnp.ones((1, D), jnp.float32), "lnf_b": jnp.zeros((1, D), jnp.float32),
        # MultiheadAttention in_proj split into q and fused k/v, out_proj.
        "wq": rnd(keys[1], (L, D, D), 0.05).astype(jnp.bfloat16),
        "bq": jnp.zeros((L, D), jnp.float32),
        "wkv": rnd(keys[2], (L, D, 2 * D), 0.05).astype(jnp.bfloat16),
        "bkv": jnp.zeros((L, 2 * D), jnp.float32),
        "wo": rnd(keys[3], (L, D, D), 0.05).astype(jnp.bfloat16),
        "bo": jnp.zeros((L, D), jnp.float32),
        # PointWiseFeedForward Conv1d(k=1) weights as [D_in, D_out].
        "w1": rnd(keys[4], (L, D, D), 0.05).astype(jnp.bfloat16),
        "b1": rnd(keys[5], (L, D), 0.001),
        "w2": rnd(keys[6], (L, D, D), 0.05).astype(jnp.bfloat16),
        "b2": rnd(keys[7], (L, D), 0.001),
    }
    return p


# ---------------------------------------------------------------------------
if __name__ == "__main__":
    key = jax.random.PRNGKey(0)
    B, T, D = 2, 8, 128          # batch, seq_len, user_emb_dim (= item_emb_dim)
    NUM_HEADS = 8                # MultiheadAttention(user_emb_dim, 8)

    kp, kx = jax.random.split(key)
    params = init_log2feats_params(kp, seq_len=T, emb_dim=D, num_blocks=2)
    # log_seqs are already-embedded sequence features [B, T, D] (float).
    log_seqs = jax.random.normal(kx, (B, T, D), jnp.float32)

    fwd = jax.jit(functools.partial(log2feats_forward, num_heads=NUM_HEADS))
    log_feats = fwd(params, log_seqs)
    jax.block_until_ready(log_feats)

    assert log_feats.shape == (B, T, D)
    assert bool(jnp.all(jnp.isfinite(log_feats)))
    print("KERNEL_OK")
</pallas_src>

<mosaic_0001>
module attributes {stable_mosaic.version = 11 : i64} {
  func.func @_log2feats_kernel(%arg0: i32, %arg1: memref<1x8x128xf32, #tpu.memory_space<vmem>>, %arg2: memref<8x128xf32, #tpu.memory_space<vmem>>, %arg3: memref<2x128xf32, #tpu.memory_space<vmem>>, %arg4: memref<2x128xf32, #tpu.memory_space<vmem>>, %arg5: memref<2x128x128xbf16, #tpu.memory_space<vmem>>, %arg6: memref<2x128xf32, #tpu.memory_space<vmem>>, %arg7: memref<2x128x256xbf16, #tpu.memory_space<vmem>>, %arg8: memref<2x256xf32, #tpu.memory_space<vmem>>, %arg9: memref<2x128x128xbf16, #tpu.memory_space<vmem>>, %arg10: memref<2x128xf32, #tpu.memory_space<vmem>>, %arg11: memref<2x128xf32, #tpu.memory_space<vmem>>, %arg12: memref<2x128xf32, #tpu.memory_space<vmem>>, %arg13: memref<2x128x128xbf16, #tpu.memory_space<vmem>>, %arg14: memref<2x128xf32, #tpu.memory_space<vmem>>, %arg15: memref<2x128x128xbf16, #tpu.memory_space<vmem>>, %arg16: memref<2x128xf32, #tpu.memory_space<vmem>>, %arg17: memref<1x128xf32, #tpu.memory_space<vmem>>, %arg18: memref<1x128xf32, #tpu.memory_space<vmem>>, %arg19: memref<1x8x128xf32, #tpu.memory_space<vmem>>) attributes {dimension_semantics = [#tpu.dimension_semantics<parallel>], iteration_bounds = array<i64: 2>, scalar_prefetch = 0 : i64, scratch_operands = 0 : i64, tpu.core_type = #tpu.core_type<tc>, window_params = [{transform_indices = @transform_0, window_bounds = array<i64: 1, 8, 128>}, {pipeline_mode = #tpu.pipeline_mode<synchronous>, transform_indices = @transform_1, window_bounds = array<i64: 8, 128>}, {pipeline_mode = #tpu.pipeline_mode<synchronous>, transform_indices = @transform_2, window_bounds = array<i64: 2, 128>}, {pipeline_mode = #tpu.pipeline_mode<synchronous>, transform_indices = @transform_3, window_bounds = array<i64: 2, 128>}, {pipeline_mode = #tpu.pipeline_mode<synchronous>, transform_indices = @transform_4, window_bounds = array<i64: 2, 128, 128>}, {pipeline_mode = #tpu.pipeline_mode<synchronous>, transform_indices = @transform_5, window_bounds = array<i64: 2, 128>}, {pipeline_mode = #tpu.pipeline_mode<synchronous>, transform_indices = @transform_6, window_bounds = array<i64: 2, 128, 256>}, {pipeline_mode = #tpu.pipeline_mode<synchronous>, transform_indices = @transform_7, window_bounds = array<i64: 2, 256>}, {pipeline_mode = #tpu.pipeline_mode<synchronous>, transform_indices = @transform_8, window_bounds = array<i64: 2, 128, 128>}, {pipeline_mode = #tpu.pipeline_mode<synchronous>, transform_indices = @transform_9, window_bounds = array<i64: 2, 128>}, {pipeline_mode = #tpu.pipeline_mode<synchronous>, transform_indices = @transform_10, window_bounds = array<i64: 2, 128>}, {pipeline_mode = #tpu.pipeline_mode<synchronous>, transform_indices = @transform_11, window_bounds = array<i64: 2, 128>}, {pipeline_mode = #tpu.pipeline_mode<synchronous>, transform_indices = @transform_12, window_bounds = array<i64: 2, 128, 128>}, {pipeline_mode = #tpu.pipeline_mode<synchronous>, transform_indices = @transform_13, window_bounds = array<i64: 2, 128>}, {pipeline_mode = #tpu.pipeline_mode<synchronous>, transform_indices = @transform_14, window_bounds = array<i64: 2, 128, 128>}, {pipeline_mode = #tpu.pipeline_mode<synchronous>, transform_indices = @transform_15, window_bounds = array<i64: 2, 128>}, {pipeline_mode = #tpu.pipeline_mode<synchronous>, transform_indices = @transform_16, window_bounds = array<i64: 1, 128>}, {pipeline_mode = #tpu.pipeline_mode<synchronous>, transform_indices = @transform_17, window_bounds = array<i64: 1, 128>}, {transform_indices = @transform_18, window_bounds = array<i64: 1, 8, 128>}]} {
    %c0 = arith.constant 0 : index
    %c0_0 = arith.constant 0 : index
    %c0_1 = arith.constant 0 : index
    %0 = vector.load %arg1[%c0, %c0_0, %c0_1] : memref<1x8x128xf32, #tpu.memory_space<vmem>>, vector<1x8x128xf32>
    %c0_2 = arith.constant 0 : index
    %c0_3 = arith.constant 0 : index
    %1 = vector.load %arg2[%c0_2, %c0_3] : memref<8x128xf32, #tpu.memory_space<vmem>>, vector<8x128xf32>
    %2 = vector.shape_cast %1 : vector<8x128xf32> to vector<1x8x128xf32>
    %3 = arith.addf %0, %2 : vector<1x8x128xf32>
    %cst = arith.constant 0.000000e+00 : f32
    %4 = vector.broadcast %cst : f32 to vector<1x8x128xf32>
    %5 = arith.cmpf one, %3, %4 : vector<1x8x128xf32>
    %6 = arith.extui %5 : vector<1x8x128xi1> to vector<1x8x128xi32>
    %7 = arith.sitofp %6 : vector<1x8x128xi32> to vector<1x8x128xf32>
    %8 = arith.mulf %3, %7 : vector<1x8x128xf32>
    %9 = tpu.iota {dimensions = array<i32: 0>} : vector<8x8xi32>
    %10 = tpu.iota {dimensions = array<i32: 1>} : vector<8x8xi32>
    %11 = arith.cmpi sgt, %10, %9 : vector<8x8xi32>
    %12 = vector.shape_cast %11 : vector<8x8xi1> to vector<1x8x8xi1>
    %13 = vector.shape_cast %8 : vector<1x8x128xf32> to vector<8x128xf32>
    %c0_4 = arith.constant 0 : index
    %c0_5 = arith.constant 0 : index
    %14 = vector.load %arg3[%c0_4, %c0_5] : memref<2x128xf32, #tpu.memory_space<vmem>>, vector<1x128xf32>
    %15 = vector.shape_cast %14 : vector<1x128xf32> to vector<128xf32>
    %c0_6 = arith.constant 0 : index
    %c0_7 = arith.constant 0 : index
    %16 = vector.load %arg4[%c0_6, %c0_7] : memref<2x128xf32, #tpu.memory_space<vmem>>, vector<1x128xf32>
    %17 = vector.shape_cast %16 : vector<1x128xf32> to vector<128xf32>
    %cst_8 = arith.constant dense<0.000000e+00> : vector<8xf32>
    %18 = vector.multi_reduction <add>, %13, %cst_8 [1] : vector<8x128xf32> to vector<8xf32>
    %19 = vector.shape_cast %18 : vector<8xf32> to vector<8x1xf32>
    %cst_9 = arith.constant 1.280000e+02 : f32
    %20 = vector.broadcast %cst_9 : f32 to vector<8x1xf32>
    %21 = arith.divf %19, %20 : vector<8x1xf32>
    %22 = vector.broadcast %21 : vector<8x1xf32> to vector<8x128xf32>
    %23 = arith.subf %13, %22 : vector<8x128xf32>
    %24 = arith.mulf %23, %23 : vector<8x128xf32>
    %cst_10 = arith.constant dense<0.000000e+00> : vector<8xf32>
    %25 = vector.multi_reduction <add>, %24, %cst_10 [1] : vector<8x128xf32> to vector<8xf32>
    %26 = vector.shape_cast %25 : vector<8xf32> to vector<8x1xf32>
    %cst_11 = arith.constant 1.280000e+02 : f32
    %27 = vector.broadcast %cst_11 : f32 to vector<8x1xf32>
    %28 = arith.divf %26, %27 : vector<8x1xf32>
    %cst_12 = arith.constant 9.99999993E-9 : f32
    %29 = vector.broadcast %cst_12 : f32 to vector<8x1xf32>
    %30 = arith.addf %28, %29 : vector<8x1xf32>
    %31 = math.rsqrt %30 : vector<8x1xf32>
    %32 = vector.broadcast %31 : vector<8x1xf32> to vector<8x128xf32>
    %33 = arith.mulf %23, %32 : vector<8x128xf32>
    %34 = vector.shape_cast %15 : vector<128xf32> to vector<1x128xf32>
    %35 = vector.broadcast %34 : vector<1x128xf32> to vector<8x128xf32>
    %36 = arith.mulf %33, %35 : vector<8x128xf32>
    %37 = vector.shape_cast %17 : vector<128xf32> to vector<1x128xf32>
    %38 = vector.broadcast %37 : vector<1x128xf32> to vector<8x128xf32>
    %39 = arith.addf %36, %38 : vector<8x128xf32>
    %c0_13 = arith.constant 0 : index
    %c0_14 = arith.constant 0 : index
    %c0_15 = arith.constant 0 : index
    %40 = vector.load %arg5[%c0_13, %c0_14, %c0_15] : memref<2x128x128xbf16, #tpu.memory_space<vmem>>, vector<1x128x128xbf16>
    %41 = vector.shape_cast %40 : vector<1x128x128xbf16> to vector<128x128xbf16>
    %42 = arith.truncf %39 : vector<8x128xf32> to vector<8x128xbf16>
    %cst_16 = arith.constant dense<0.000000e+00> : vector<8x128xf32>
    %43 = tpu.matmul %42, %41, %cst_16 {dimension_numbers = #tpu.dot_dimension_numbers<[1], [0], [0], [1], [0, 0, 1, 1], [], []>} : vector<8x128xbf16>, vector<128x128xbf16>, vector<8x128xf32> -> vector<8x128xf32>
    %c0_17 = arith.constant 0 : index
    %c0_18 = arith.constant 0 : index
    %44 = vector.load %arg6[%c0_17, %c0_18] : memref<2x128xf32, #tpu.memory_space<vmem>>, vector<1x128xf32>
    %45 = vector.shape_cast %44 : vector<1x128xf32> to vector<128xf32>
    %46 = vector.shape_cast %45 : vector<128xf32> to vector<1x128xf32>
    %47 = vector.broadcast %46 : vector<1x128xf32> to vector<8x128xf32>
    %48 = arith.addf %43, %47 : vector<8x128xf32>
    %c0_19 = arith.constant 0 : index
    %c0_20 = arith.constant 0 : index
    %c0_21 = arith.constant 0 : index
    %49 = vector.load %arg7[%c0_19, %c0_20, %c0_21] : memref<2x128x256xbf16, #tpu.memory_space<vmem>>, vector<1x128x256xbf16>
    %50 = vector.shape_cast %49 : vector<1x128x256xbf16> to vector<128x256xbf16>
    %51 = arith.truncf %13 : vector<8x128xf32> to vector<8x128xbf16>
    %cst_22 = arith.constant dense<0.000000e+00> : vector<8x256xf32>
    %52 = tpu.matmul %51, %50, %cst_22 {dimension_numbers = #tpu.dot_dimension_numbers<[1], [0], [0], [1], [0, 0, 1, 1], [], []>} : vector<8x128xbf16>, vector<128x256xbf16>, vector<8x256xf32> -> vector<8x256xf32>
    %c0_23 = arith.constant 0 : index
    %c0_24 = arith.constant 0 : index
    %53 = vector.load %arg8[%c0_23, %c0_24] : memref<2x256xf32, #tpu.memory_space<vmem>>, vector<1x256xf32>
    %54 = vector.shape_cast %53 : vector<1x256xf32> to vector<256xf32>
    %55 = vector.shape_cast %54 : vector<256xf32> to vector<1x256xf32>
    %56 = vector.broadcast %55 : vector<1x256xf32> to vector<8x256xf32>
    %57 = arith.addf %52, %56 : vector<8x256xf32>
    %58 = vector.extract_strided_slice %57 {offsets = [0, 0], sizes = [8, 128], strides = [1, 1]} : vector<8x256xf32> to vector<8x128xf32>
    %59 = vector.extract_strided_slice %57 {offsets = [0, 128], sizes = [8, 128], strides = [1, 1]} : vector<8x256xf32> to vector<8x128xf32>
    %60 = vector.shape_cast %48 : vector<8x128xf32> to vector<1x8x128xf32>
    %61 = vector.shape_cast %58 : vector<8x128xf32> to vector<1x8x128xf32>
    %62 = vector.shape_cast %59 : vector<8x128xf32> to vector<1x8x128xf32>
    %63 = vector.extract_strided_slice %60 {offsets = [0, 0, 0], sizes = [1, 8, 16], strides = [1, 1, 1]} : vector<1x8x128xf32> to vector<1x8x16xf32>
    %64 = arith.truncf %63 : vector<1x8x16xf32> to vector<1x8x16xbf16>
    %65 = vector.extract_strided_slice %61 {offsets = [0, 0, 0], sizes = [1, 8, 16], strides = [1, 1, 1]} : vector<1x8x128xf32> to vector<1x8x16xf32>
    %66 = arith.truncf %65 : vector<1x8x16xf32> to vector<1x8x16xbf16>
    %67 = vector.extract_strided_slice %62 {offsets = [0, 0, 0], sizes = [1, 8, 16], strides = [1, 1, 1]} : vector<1x8x128xf32> to vector<1x8x16xf32>
    %68 = arith.truncf %67 : vector<1x8x16xf32> to vector<1x8x16xbf16>
    "tpu.trace_start"() <{level = 10 : i32, message = "btd,bsd->bts"}> : () -> ()
    %cst_25 = arith.constant dense<0.000000e+00> : vector<1x8x8xf32>
    %69 = tpu.matmul %64, %66, %cst_25 {dimension_numbers = #tpu.dot_dimension_numbers<[2], [2], [1], [1], [0, 0, 0, 1, 1, 1], [0], [0]>} : vector<1x8x16xbf16>, vector<1x8x16xbf16>, vector<1x8x8xf32> -> vector<1x8x8xf32>
    "tpu.trace_stop"() : () -> ()
    %cst_26 = arith.constant 2.500000e-01 : f32
    %70 = vector.broadcast %cst_26 : f32 to vector<1x8x8xf32>
    %71 = arith.mulf %69, %70 : vector<1x8x8xf32>
    %cst_27 = arith.constant -1.000000e+30 : f32
    %72 = vector.broadcast %cst_27 : f32 to vector<1x8x8xf32>
    %73 = arith.select %12, %72, %71 : vector<1x8x8xi1>, vector<1x8x8xf32>
    %cst_28 = arith.constant dense<0xFF800000> : vector<1x8xf32>
    %74 = vector.multi_reduction <maximumf>, %73, %cst_28 [2] : vector<1x8x8xf32> to vector<1x8xf32>
    %75 = vector.shape_cast %74 : vector<1x8xf32> to vector<1x8x1xf32>
    %76 = vector.broadcast %75 : vector<1x8x1xf32> to vector<1x8x8xf32>
    %77 = arith.subf %73, %76 : vector<1x8x8xf32>
    %78 = math.exp %77 : vector<1x8x8xf32>
    %cst_29 = arith.constant dense<0.000000e+00> : vector<1x8xf32>
    %79 = vector.multi_reduction <add>, %78, %cst_29 [2] : vector<1x8x8xf32> to vector<1x8xf32>
    %80 = vector.shape_cast %79 : vector<1x8xf32> to vector<1x8x1xf32>
    %81 = tpu.reciprocal %80 {approx = true} : vector<1x8x1xf32> -> vector<1x8x1xf32>
    %82 = vector.broadcast %81 : vector<1x8x1xf32> to vector<1x8x8xf32>
    %83 = arith.mulf %78, %82 : vector<1x8x8xf32>
    %84 = arith.truncf %83 : vector<1x8x8xf32> to vector<1x8x8xbf16>
    "tpu.trace_start"() <{level = 10 : i32, message = "bts,bsd->btd"}> : () -> ()
    %cst_30 = arith.constant dense<0.000000e+00> : vector<1x8x16xf32>
    %85 = tpu.matmul %84, %68, %cst_30 {dimension_numbers = #tpu.dot_dimension_numbers<[2], [1], [1], [2], [0, 0, 0, 1, 1, 2], [0], [0]>} : vector<1x8x8xbf16>, vector<1x8x16xbf16>, vector<1x8x16xf32> -> vector<1x8x16xf32>
    "tpu.trace_stop"() : () -> ()
    %86 = vector.extract_strided_slice %60 {offsets = [0, 0, 16], sizes = [1, 8, 16], strides = [1, 1, 1]} : vector<1x8x128xf32> to vector<1x8x16xf32>
    %87 = arith.truncf %86 : vector<1x8x16xf32> to vector<1x8x16xbf16>
    %88 = vector.extract_strided_slice %61 {offsets = [0, 0, 16], sizes = [1, 8, 16], strides = [1, 1, 1]} : vector<1x8x128xf32> to vector<1x8x16xf32>
    %89 = arith.truncf %88 : vector<1x8x16xf32> to vector<1x8x16xbf16>
    %90 = vector.extract_strided_slice %62 {offsets = [0, 0, 16], sizes = [1, 8, 16], strides = [1, 1, 1]} : vector<1x8x128xf32> to vector<1x8x16xf32>
    %91 = arith.truncf %90 : vector<1x8x16xf32> to vector<1x8x16xbf16>
    "tpu.trace_start"() <{level = 10 : i32, message = "btd,bsd->bts"}> : () -> ()
    %cst_31 = arith.constant dense<0.000000e+00> : vector<1x8x8xf32>
    %92 = tpu.matmul %87, %89, %cst_31 {dimension_numbers = #tpu.dot_dimension_numbers<[2], [2], [1], [1], [0, 0, 0, 1, 1, 1], [0], [0]>} : vector<1x8x16xbf16>, vector<1x8x16xbf16>, vector<1x8x8xf32> -> vector<1x8x8xf32>
    "tpu.trace_stop"() : () -> ()
    %cst_32 = arith.constant 2.500000e-01 : f32
    %93 = vector.broadcast %cst_32 : f32 to vector<1x8x8xf32>
    %94 = arith.mulf %92, %93 : vector<1x8x8xf32>
    %cst_33 = arith.constant -1.000000e+30 : f32
    %95 = vector.broadcast %cst_33 : f32 to vector<1x8x8xf32>
    %96 = arith.select %12, %95, %94 : vector<1x8x8xi1>, vector<1x8x8xf32>
    %cst_34 = arith.constant dense<0xFF800000> : vector<1x8xf32>
    %97 = vector.multi_reduction <maximumf>, %96, %cst_34 [2] : vector<1x8x8xf32> to vector<1x8xf32>
    %98 = vector.shape_cast %97 : vector<1x8xf32> to vector<1x8x1xf32>
    %99 = vector.broadcast %98 : vector<1x8x1xf32> to vector<1x8x8xf32>
    %100 = arith.subf %96, %99 : vector<1x8x8xf32>
    %101 = math.exp %100 : vector<1x8x8xf32>
    %cst_35 = arith.constant dense<0.000000e+00> : vector<1x8xf32>
    %102 = vector.multi_reduction <add>, %101, %cst_35 [2] : vector<1x8x8xf32> to vector<1x8xf32>
    %103 = vector.shape_cast %102 : vector<1x8xf32> to vector<1x8x1xf32>
    %104 = tpu.reciprocal %103 {approx = true} : vector<1x8x1xf32> -> vector<1x8x1xf32>
    %105 = vector.broadcast %104 : vector<1x8x1xf32> to vector<1x8x8xf32>
    %106 = arith.mulf %101, %105 : vector<1x8x8xf32>
    %107 = arith.truncf %106 : vector<1x8x8xf32> to vector<1x8x8xbf16>
    "tpu.trace_start"() <{level = 10 : i32, message = "bts,bsd->btd"}> : () -> ()
    %cst_36 = arith.constant dense<0.000000e+00> : vector<1x8x16xf32>
    %108 = tpu.matmul %107, %91, %cst_36 {dimension_numbers = #tpu.dot_dimension_numbers<[2], [1], [1], [2], [0, 0, 0, 1, 1, 2], [0], [0]>} : vector<1x8x8xbf16>, vector<1x8x16xbf16>, vector<1x8x16xf32> -> vector<1x8x16xf32>
    "tpu.trace_stop"() : () -> ()
    %109 = vector.extract_strided_slice %60 {offsets = [0, 0, 32], sizes = [1, 8, 16], strides = [1, 1, 1]} : vector<1x8x128xf32> to vector<1x8x16xf32>
    %110 = arith.truncf %109 : vector<1x8x16xf32> to vector<1x8x16xbf16>
    %111 = vector.extract_strided_slice %61 {offsets = [0, 0, 32], sizes = [1, 8, 16], strides = [1, 1, 1]} : vector<1x8x128xf32> to vector<1x8x16xf32>
    %112 = arith.truncf %111 : vector<1x8x16xf32> to vector<1x8x16xbf16>
    %113 = vector.extract_strided_slice %62 {offsets = [0, 0, 32], sizes = [1, 8, 16], strides = [1, 1, 1]} : vector<1x8x128xf32> to vector<1x8x16xf32>
    %114 = arith.truncf %113 : vector<1x8x16xf32> to vector<1x8x16xbf16>
    "tpu.trace_start"() <{level = 10 : i32, message = "btd,bsd->bts"}> : () -> ()
    %cst_37 = arith.constant dense<0.000000e+00> : vector<1x8x8xf32>
    %115 = tpu.matmul %110, %112, %cst_37 {dimension_numbers = #tpu.dot_dimension_numbers<[2], [2], [1], [1], [0, 0, 0, 1, 1, 1], [0], [0]>} : vector<1x8x16xbf16>, vector<1x8x16xbf16>, vector<1x8x8xf32> -> vector<1x8x8xf32>
    "tpu.trace_stop"() : () -> ()
    %cst_38 = arith.constant 2.500000e-01 : f32
    %116 = vector.broadcast %cst_38 : f32 to vector<1x8x8xf32>
    %117 = arith.mulf %115, %116 : vector<1x8x8xf32>
    %cst_39 = arith.constant -1.000000e+30 : f32
    %118 = vector.broadcast %cst_39 : f32 to vector<1x8x8xf32>
    %119 = arith.select %12, %118, %117 : vector<1x8x8xi1>, vector<1x8x8xf32>
    %cst_40 = arith.constant dense<0xFF800000> : vector<1x8xf32>
    %120 = vector.multi_reduction <maximumf>, %119, %cst_40 [2] : vector<1x8x8xf32> to vector<1x8xf32>
    %121 = vector.shape_cast %120 : vector<1x8xf32> to vector<1x8x1xf32>
    %122 = vector.broadcast %121 : vector<1x8x1xf32> to vector<1x8x8xf32>
    %123 = arith.subf %119, %122 : vector<1x8x8xf32>
    %124 = math.exp %123 : vector<1x8x8xf32>
    %cst_41 = arith.constant dense<0.000000e+00> : vector<1x8xf32>
    %125 = vector.multi_reduction <add>, %124, %cst_41 [2] : vector<1x8x8xf32> to vector<1x8xf32>
    %126 = vector.shape_cast %125 : vector<1x8xf32> to vector<1x8x1xf32>
    %127 = tpu.reciprocal %126 {approx = true} : vector<1x8x1xf32> -> vector<1x8x1xf32>
    %128 = vector.broadcast %127 : vector<1x8x1xf32> to vector<1x8x8xf32>
    %129 = arith.mulf %124, %128 : vector<1x8x8xf32>
    %130 = arith.truncf %129 : vector<1x8x8xf32> to vector<1x8x8xbf16>
    "tpu.trace_start"() <{level = 10 : i32, message = "bts,bsd->btd"}> : () -> ()
    %cst_42 = arith.constant dense<0.000000e+00> : vector<1x8x16xf32>
    %131 = tpu.matmul %130, %114, %cst_42 {dimension_numbers = #tpu.dot_dimension_numbers<[2], [1], [1], [2], [0, 0, 0, 1, 1, 2], [0], [0]>} : vector<1x8x8xbf16>, vector<1x8x16xbf16>, vector<1x8x16xf32> -> vector<1x8x16xf32>
    "tpu.trace_stop"() : () -> ()
    %132 = vector.extract_strided_slice %60 {offsets = [0, 0, 48], sizes = [1, 8, 16], strides = [1, 1, 1]} : vector<1x8x128xf32> to vector<1x8x16xf32>
    %133 = arith.truncf %132 : vector<1x8x16xf32> to vector<1x8x16xbf16>
    %134 = vector.extract_strided_slice %61 {offsets = [0, 0, 48], sizes = [1, 8, 16], strides = [1, 1, 1]} : vector<1x8x128xf32> to vector<1x8x16xf32>
    %135 = arith.truncf %134 : vector<1x8x16xf32> to vector<1x8x16xbf16>
    %136 = vector.extract_strided_slice %62 {offsets = [0, 0, 48], sizes = [1, 8, 16], strides = [1, 1, 1]} : vector<1x8x128xf32> to vector<1x8x16xf32>
    %137 = arith.truncf %136 : vector<1x8x16xf32> to vector<1x8x16xbf16>
    "tpu.trace_start"() <{level = 10 : i32, message = "btd,bsd->bts"}> : () -> ()
    %cst_43 = arith.constant dense<0.000000e+00> : vector<1x8x8xf32>
    %138 = tpu.matmul %133, %135, %cst_43 {dimension_numbers = #tpu.dot_dimension_numbers<[2], [2], [1], [1], [0, 0, 0, 1, 1, 1], [0], [0]>} : vector<1x8x16xbf16>, vector<1x8x16xbf16>, vector<1x8x8xf32> -> vector<1x8x8xf32>
    "tpu.trace_stop"() : () -> ()
    %cst_44 = arith.constant 2.500000e-01 : f32
    %139 = vector.broadcast %cst_44 : f32 to vector<1x8x8xf32>
    %140 = arith.mulf %138, %139 : vector<1x8x8xf32>
    %cst_45 = arith.constant -1.000000e+30 : f32
    %141 = vector.broadcast %cst_45 : f32 to vector<1x8x8xf32>
    %142 = arith.select %12, %141, %140 : vector<1x8x8xi1>, vector<1x8x8xf32>
    %cst_46 = arith.constant dense<0xFF800000> : vector<1x8xf32>
    %143 = vector.multi_reduction <maximumf>, %142, %cst_46 [2] : vector<1x8x8xf32> to vector<1x8xf32>
    %144 = vector.shape_cast %143 : vector<1x8xf32> to vector<1x8x1xf32>
    %145 = vector.broadcast %144 : vector<1x8x1xf32> to vector<1x8x8xf32>
    %146 = arith.subf %142, %145 : vector<1x8x8xf32>
    %147 = math.exp %146 : vector<1x8x8xf32>
    %cst_47 = arith.constant dense<0.000000e+00> : vector<1x8xf32>
    %148 = vector.multi_reduction <add>, %147, %cst_47 [2] : vector<1x8x8xf32> to vector<1x8xf32>
    %149 = vector.shape_cast %148 : vector<1x8xf32> to vector<1x8x1xf32>
    %150 = tpu.reciprocal %149 {approx = true} : vector<1x8x1xf32> -> vector<1x8x1xf32>
    %151 = vector.broadcast %150 : vector<1x8x1xf32> to vector<1x8x8xf32>
    %152 = arith.mulf %147, %151 : vector<1x8x8xf32>
    %153 = arith.truncf %152 : vector<1x8x8xf32> to vector<1x8x8xbf16>
    "tpu.trace_start"() <{level = 10 : i32, message = "bts,bsd->btd"}> : () -> ()
    %cst_48 = arith.constant dense<0.000000e+00> : vector<1x8x16xf32>
    %154 = tpu.matmul %153, %137, %cst_48 {dimension_numbers = #tpu.dot_dimension_numbers<[2], [1], [1], [2], [0, 0, 0, 1, 1, 2], [0], [0]>} : vector<1x8x8xbf16>, vector<1x8x16xbf16>, vector<1x8x16xf32> -> vector<1x8x16xf32>
    "tpu.trace_stop"() : () -> ()
    %155 = vector.extract_strided_slice %60 {offsets = [0, 0, 64], sizes = [1, 8, 16], strides = [1, 1, 1]} : vector<1x8x128xf32> to vector<1x8x16xf32>
    %156 = arith.truncf %155 : vector<1x8x16xf32> to vector<1x8x16xbf16>
    %157 = vector.extract_strided_slice %61 {offsets = [0, 0, 64], sizes = [1, 8, 16], strides = [1, 1, 1]} : vector<1x8x128xf32> to vector<1x8x16xf32>
    %158 = arith.truncf %157 : vector<1x8x16xf32> to vector<1x8x16xbf16>
    %159 = vector.extract_strided_slice %62 {offsets = [0, 0, 64], sizes = [1, 8, 16], strides = [1, 1, 1]} : vector<1x8x128xf32> to vector<1x8x16xf32>
    %160 = arith.truncf %159 : vector<1x8x16xf32> to vector<1x8x16xbf16>
    "tpu.trace_start"() <{level = 10 : i32, message = "btd,bsd->bts"}> : () -> ()
    %cst_49 = arith.constant dense<0.000000e+00> : vector<1x8x8xf32>
    %161 = tpu.matmul %156, %158, %cst_49 {dimension_numbers = #tpu.dot_dimension_numbers<[2], [2], [1], [1], [0, 0, 0, 1, 1, 1], [0], [0]>} : vector<1x8x16xbf16>, vector<1x8x16xbf16>, vector<1x8x8xf32> -> vector<1x8x8xf32>
    "tpu.trace_stop"() : () -> ()
    %cst_50 = arith.constant 2.500000e-01 : f32
    %162 = vector.broadcast %cst_50 : f32 to vector<1x8x8xf32>
    %163 = arith.mulf %161, %162 : vector<1x8x8xf32>
    %cst_51 = arith.constant -1.000000e+30 : f32
    %164 = vector.broadcast %cst_51 : f32 to vector<1x8x8xf32>
    %165 = arith.select %12, %164, %163 : vector<1x8x8xi1>, vector<1x8x8xf32>
    %cst_52 = arith.constant dense<0xFF800000> : vector<1x8xf32>
    %166 = vector.multi_reduction <maximumf>, %165, %cst_52 [2] : vector<1x8x8xf32> to vector<1x8xf32>
    %167 = vector.shape_cast %166 : vector<1x8xf32> to vector<1x8x1xf32>
    %168 = vector.broadcast %167 : vector<1x8x1xf32> to vector<1x8x8xf32>
    %169 = arith.subf %165, %168 : vector<1x8x8xf32>
    %170 = math.exp %169 : vector<1x8x8xf32>
    %cst_53 = arith.constant dense<0.000000e+00> : vector<1x8xf32>
    %171 = vector.multi_reduction <add>, %170, %cst_53 [2] : vector<1x8x8xf32> to vector<1x8xf32>
    %172 = vector.shape_cast %171 : vector<1x8xf32> to vector<1x8x1xf32>
    %173 = tpu.reciprocal %172 {approx = true} : vector<1x8x1xf32> -> vector<1x8x1xf32>
    %174 = vector.broadcast %173 : vector<1x8x1xf32> to vector<1x8x8xf32>
    %175 = arith.mulf %170, %174 : vector<1x8x8xf32>
    %176 = arith.truncf %175 : vector<1x8x8xf32> to vector<1x8x8xbf16>
    "tpu.trace_start"() <{level = 10 : i32, message = "bts,bsd->btd"}> : () -> ()
    %cst_54 = arith.constant dense<0.000000e+00> : vector<1x8x16xf32>
    %177 = tpu.matmul %176, %160, %cst_54 {dimension_numbers = #tpu.dot_dimension_numbers<[2], [1], [1], [2], [0, 0, 0, 1, 1, 2], [0], [0]>} : vector<1x8x8xbf16>, vector<1x8x16xbf16>, vector<1x8x16xf32> -> vector<1x8x16xf32>
    "tpu.trace_stop"() : () -> ()
    %178 = vector.extract_strided_slice %60 {offsets = [0, 0, 80], sizes = [1, 8, 16], strides = [1, 1, 1]} : vector<1x8x128xf32> to vector<1x8x16xf32>
    %179 = arith.truncf %178 : vector<1x8x16xf32> to vector<1x8x16xbf16>
    %180 = vector.extract_strided_slice %61 {offsets = [0, 0, 80], sizes = [1, 8, 16], strides = [1, 1, 1]} : vector<1x8x128xf32> to vector<1x8x16xf32>
    %181 = arith.truncf %180 : vector<1x8x16xf32> to vector<1x8x16xbf16>
    %182 = vector.extract_strided_slice %62 {offsets = [0, 0, 80], sizes = [1, 8, 16], strides = [1, 1, 1]} : vector<1x8x128xf32> to vector<1x8x16xf32>
    %183 = arith.truncf %182 : vector<1x8x16xf32> to vector<1x8x16xbf16>
    "tpu.trace_start"() <{level = 10 : i32, message = "btd,bsd->bts"}> : () -> ()
    %cst_55 = arith.constant dense<0.000000e+00> : vector<1x8x8xf32>
    %184 = tpu.matmul %179, %181, %cst_55 {dimension_numbers = #tpu.dot_dimension_numbers<[2], [2], [1], [1], [0, 0, 0, 1, 1, 1], [0], [0]>} : vector<1x8x16xbf16>, vector<1x8x16xbf16>, vector<1x8x8xf32> -> vector<1x8x8xf32>
    "tpu.trace_stop"() : () -> ()
    %cst_56 = arith.constant 2.500000e-01 : f32
    %185 = vector.broadcast %cst_56 : f32 to vector<1x8x8xf32>
    %186 = arith.mulf %184, %185 : vector<1x8x8xf32>
    %cst_57 = arith.constant -1.000000e+30 : f32
    %187 = vector.broadcast %cst_57 : f32 to vector<1x8x8xf32>
    %188 = arith.select %12, %187, %186 : vector<1x8x8xi1>, vector<1x8x8xf32>
    %cst_58 = arith.constant dense<0xFF800000> : vector<1x8xf32>
    %189 = vector.multi_reduction <maximumf>, %188, %cst_58 [2] : vector<1x8x8xf32> to vector<1x8xf32>
    %190 = vector.shape_cast %189 : vector<1x8xf32> to vector<1x8x1xf32>
    %191 = vector.broadcast %190 : vector<1x8x1xf32> to vector<1x8x8xf32>
    %192 = arith.subf %188, %191 : vector<1x8x8xf32>
    %193 = math.exp %192 : vector<1x8x8xf32>
    %cst_59 = arith.constant dense<0.000000e+00> : vector<1x8xf32>
    %194 = vector.multi_reduction <add>, %193, %cst_59 [2] : vector<1x8x8xf32> to vector<1x8xf32>
    %195 = vector.shape_cast %194 : vector<1x8xf32> to vector<1x8x1xf32>
    %196 = tpu.reciprocal %195 {approx = true} : vector<1x8x1xf32> -> vector<1x8x1xf32>
    %197 = vector.broadcast %196 : vector<1x8x1xf32> to vector<1x8x8xf32>
    %198 = arith.mulf %193, %197 : vector<1x8x8xf32>
    %199 = arith.truncf %198 : vector<1x8x8xf32> to vector<1x8x8xbf16>
    "tpu.trace_start"() <{level = 10 : i32, message = "bts,bsd->btd"}> : () -> ()
    %cst_60 = arith.constant dense<0.000000e+00> : vector<1x8x16xf32>
    %200 = tpu.matmul %199, %183, %cst_60 {dimension_numbers = #tpu.dot_dimension_numbers<[2], [1], [1], [2], [0, 0, 0, 1, 1, 2], [0], [0]>} : vector<1x8x8xbf16>, vector<1x8x16xbf16>, vector<1x8x16xf32> -> vector<1x8x16xf32>
    "tpu.trace_stop"() : () -> ()
    %201 = vector.extract_strided_slice %60 {offsets = [0, 0, 96], sizes = [1, 8, 16], strides = [1, 1, 1]} : vector<1x8x128xf32> to vector<1x8x16xf32>
    %202 = arith.truncf %201 : vector<1x8x16xf32> to vector<1x8x16xbf16>
    %203 = vector.extract_strided_slice %61 {offsets = [0, 0, 96], sizes = [1, 8, 16], strides = [1, 1, 1]} : vector<1x8x128xf32> to vector<1x8x16xf32>
    %204 = arith.truncf %203 : vector<1x8x16xf32> to vector<1x8x16xbf16>
    %205 = vector.extract_strided_slice %62 {offsets = [0, 0, 96], sizes = [1, 8, 16], strides = [1, 1, 1]} : vector<1x8x128xf32> to vector<1x8x16xf32>
    %206 = arith.truncf %205 : vector<1x8x16xf32> to vector<1x8x16xbf16>
    "tpu.trace_start"() <{level = 10 : i32, message = "btd,bsd->bts"}> : () -> ()
    %cst_61 = arith.constant dense<0.000000e+00> : vector<1x8x8xf32>
    %207 = tpu.matmul %202, %204, %cst_61 {dimension_numbers = #tpu.dot_dimension_numbers<[2], [2], [1], [1], [0, 0, 0, 1, 1, 1], [0], [0]>} : vector<1x8x16xbf16>, vector<1x8x16xbf16>, vector<1x8x8xf32> -> vector<1x8x8xf32>
    "tpu.trace_stop"() : () -> ()
    %cst_62 = arith.constant 2.500000e-01 : f32
    %208 = vector.broadcast %cst_62 : f32 to vector<1x8x8xf32>
    %209 = arith.mulf %207, %208 : vector<1x8x8xf32>
    %cst_63 = arith.constant -1.000000e+30 : f32
    %210 = vector.broadcast %cst_63 : f32 to vector<1x8x8xf32>
    %211 = arith.select %12, %210, %209 : vector<1x8x8xi1>, vector<1x8x8xf32>
    %cst_64 = arith.constant dense<0xFF800000> : vector<1x8xf32>
    %212 = vector.multi_reduction <maximumf>, %211, %cst_64 [2] : vector<1x8x8xf32> to vector<1x8xf32>
    %213 = vector.shape_cast %212 : vector<1x8xf32> to vector<1x8x1xf32>
    %214 = vector.broadcast %213 : vector<1x8x1xf32> to vector<1x8x8xf32>
    %215 = arith.subf %211, %214 : vector<1x8x8xf32>
    %216 = math.exp %215 : vector<1x8x8xf32>
    %cst_65 = arith.constant dense<0.000000e+00> : vector<1x8xf32>
    %217 = vector.multi_reduction <add>, %216, %cst_65 [2] : vector<1x8x8xf32> to vector<1x8xf32>
    %218 = vector.shape_cast %217 : vector<1x8xf32> to vector<1x8x1xf32>
    %219 = tpu.reciprocal %218 {approx = true} : vector<1x8x1xf32> -> vector<1x8x1xf32>
    %220 = vector.broadcast %219 : vector<1x8x1xf32> to vector<1x8x8xf32>
    %221 = arith.mulf %216, %220 : vector<1x8x8xf32>
    %222 = arith.truncf %221 : vector<1x8x8xf32> to vector<1x8x8xbf16>
    "tpu.trace_start"() <{level = 10 : i32, message = "bts,bsd->btd"}> : () -> ()
    %cst_66 = arith.constant dense<0.000000e+00> : vector<1x8x16xf32>
    %223 = tpu.matmul %222, %206, %cst_66 {dimension_numbers = #tpu.dot_dimension_numbers<[2], [1], [1], [2], [0, 0, 0, 1, 1, 2], [0], [0]>} : vector<1x8x8xbf16>, vector<1x8x16xbf16>, vector<1x8x16xf32> -> vector<1x8x16xf32>
    "tpu.trace_stop"() : () -> ()
    %224 = vector.extract_strided_slice %60 {offsets = [0, 0, 112], sizes = [1, 8, 16], strides = [1, 1, 1]} : vector<1x8x128xf32> to vector<1x8x16xf32>
    %225 = arith.truncf %224 : vector<1x8x16xf32> to vector<1x8x16xbf16>
    %226 = vector.extract_strided_slice %61 {offsets = [0, 0, 112], sizes = [1, 8, 16], strides = [1, 1, 1]} : vector<1x8x128xf32> to vector<1x8x16xf32>
    %227 = arith.truncf %226 : vector<1x8x16xf32> to vector<1x8x16xbf16>
    %228 = vector.extract_strided_slice %62 {offsets = [0, 0, 112], sizes = [1, 8, 16], strides = [1, 1, 1]} : vector<1x8x128xf32> to vector<1x8x16xf32>
    %229 = arith.truncf %228 : vector<1x8x16xf32> to vector<1x8x16xbf16>
    "tpu.trace_start"() <{level = 10 : i32, message = "btd,bsd->bts"}> : () -> ()
    %cst_67 = arith.constant dense<0.000000e+00> : vector<1x8x8xf32>
    %230 = tpu.matmul %225, %227, %cst_67 {dimension_numbers = #tpu.dot_dimension_numbers<[2], [2], [1], [1], [0, 0, 0, 1, 1, 1], [0], [0]>} : vector<1x8x16xbf16>, vector<1x8x16xbf16>, vector<1x8x8xf32> -> vector<1x8x8xf32>
    "tpu.trace_stop"() : () -> ()
    %cst_68 = arith.constant 2.500000e-01 : f32
    %231 = vector.broadcast %cst_68 : f32 to vector<1x8x8xf32>
    %232 = arith.mulf %230, %231 : vector<1x8x8xf32>
    %cst_69 = arith.constant -1.000000e+30 : f32
    %233 = vector.broadcast %cst_69 : f32 to vector<1x8x8xf32>
    %234 = arith.select %12, %233, %232 : vector<1x8x8xi1>, vector<1x8x8xf32>
    %cst_70 = arith.constant dense<0xFF800000> : vector<1x8xf32>
    %235 = vector.multi_reduction <maximumf>, %234, %cst_70 [2] : vector<1x8x8xf32> to vector<1x8xf32>
    %236 = vector.shape_cast %235 : vector<1x8xf32> to vector<1x8x1xf32>
    %237 = vector.broadcast %236 : vector<1x8x1xf32> to vector<1x8x8xf32>
    %238 = arith.subf %234, %237 : vector<1x8x8xf32>
    %239 = math.exp %238 : vector<1x8x8xf32>
    %cst_71 = arith.constant dense<0.000000e+00> : vector<1x8xf32>
    %240 = vector.multi_reduction <add>, %239, %cst_71 [2] : vector<1x8x8xf32> to vector<1x8xf32>
    %241 = vector.shape_cast %240 : vector<1x8xf32> to vector<1x8x1xf32>
    %242 = tpu.reciprocal %241 {approx = true} : vector<1x8x1xf32> -> vector<1x8x1xf32>
    %243 = vector.broadcast %242 : vector<1x8x1xf32> to vector<1x8x8xf32>
    %244 = arith.mulf %239, %243 : vector<1x8x8xf32>
    %245 = arith.truncf %244 : vector<1x8x8xf32> to vector<1x8x8xbf16>
    "tpu.trace_start"() <{level = 10 : i32, message = "bts,bsd->btd"}> : () -> ()
    %cst_72 = arith.constant dense<0.000000e+00> : vector<1x8x16xf32>
    %246 = tpu.matmul %245, %229, %cst_72 {dimension_numbers = #tpu.dot_dimension_numbers<[2], [1], [1], [2], [0, 0, 0, 1, 1, 2], [0], [0]>} : vector<1x8x8xbf16>, vector<1x8x16xbf16>, vector<1x8x16xf32> -> vector<1x8x16xf32>
    "tpu.trace_stop"() : () -> ()
    %247 = tpu.concatenate %85, %108, %131, %154, %177, %200, %223, %246 in 2 : vector<1x8x16xf32>, vector<1x8x16xf32>, vector<1x8x16xf32>, vector<1x8x16xf32>, vector<1x8x16xf32>, vector<1x8x16xf32>, vector<1x8x16xf32>, vector<1x8x16xf32> -> vector<1x8x128xf32>
    %248 = vector.shape_cast %247 : vector<1x8x128xf32> to vector<8x128xf32>
    %c0_73 = arith.constant 0 : index
    %c0_74 = arith.constant 0 : index
    %c0_75 = arith.constant 0 : index
    %249 = vector.load %arg9[%c0_73, %c0_74, %c0_75] : memref<2x128x128xbf16, #tpu.memory_space<vmem>>, vector<1x128x128xbf16>
    %250 = vector.shape_cast %249 : vector<1x128x128xbf16> to vector<128x128xbf16>
    %251 = arith.truncf %248 : vector<8x128xf32> to vector<8x128xbf16>
    %cst_76 = arith.constant dense<0.000000e+00> : vector<8x128xf32>
    %252 = tpu.matmul %251, %250, %cst_76 {dimension_numbers = #tpu.dot_dimension_numbers<[1], [0], [0], [1], [0, 0, 1, 1], [], []>} : vector<8x128xbf16>, vector<128x128xbf16>, vector<8x128xf32> -> vector<8x128xf32>
    %c0_77 = arith.constant 0 : index
    %c0_78 = arith.constant 0 : index
    %253 = vector.load %arg10[%c0_77, %c0_78] : memref<2x128xf32, #tpu.memory_space<vmem>>, vector<1x128xf32>
    %254 = vector.shape_cast %253 : vector<1x128xf32> to vector<128xf32>
    %255 = vector.shape_cast %254 : vector<128xf32> to vector<1x128xf32>
    %256 = vector.broadcast %255 : vector<1x128xf32> to vector<8x128xf32>
    %257 = arith.addf %252, %256 : vector<8x128xf32>
    %258 = arith.addf %39, %257 : vector<8x128xf32>
    %c0_79 = arith.constant 0 : index
    %c0_80 = arith.constant 0 : index
    %259 = vector.load %arg11[%c0_79, %c0_80] : memref<2x128xf32, #tpu.memory_space<vmem>>, vector<1x128xf32>
    %260 = vector.shape_cast %259 : vector<1x128xf32> to vector<128xf32>
    %c0_81 = arith.constant 0 : index
    %c0_82 = arith.constant 0 : index
    %261 = vector.load %arg12[%c0_81, %c0_82] : memref<2x128xf32, #tpu.memory_space<vmem>>, vector<1x128xf32>
    %262 = vector.shape_cast %261 : vector<1x128xf32> to vector<128xf32>
    %cst_83 = arith.constant dense<0.000000e+00> : vector<8xf32>
    %263 = vector.multi_reduction <add>, %258, %cst_83 [1] : vector<8x128xf32> to vector<8xf32>
    %264 = vector.shape_cast %263 : vector<8xf32> to vector<8x1xf32>
    %cst_84 = arith.constant 1.280000e+02 : f32
    %265 = vector.broadcast %cst_84 : f32 to vector<8x1xf32>
    %266 = arith.divf %264, %265 : vector<8x1xf32>
    %267 = vector.broadcast %266 : vector<8x1xf32> to vector<8x128xf32>
    %268 = arith.subf %258, %267 : vector<8x128xf32>
    %269 = arith.mulf %268, %268 : vector<8x128xf32>
    %cst_85 = arith.constant dense<0.000000e+00> : vector<8xf32>
    %270 = vector.multi_reduction <add>, %269, %cst_85 [1] : vector<8x128xf32> to vector<8xf32>
    %271 = vector.shape_cast %270 : vector<8xf32> to vector<8x1xf32>
    %cst_86 = arith.constant 1.280000e+02 : f32
    %272 = vector.broadcast %cst_86 : f32 to vector<8x1xf32>
    %273 = arith.divf %271, %272 : vector<8x1xf32>
    %cst_87 = arith.constant 9.99999993E-9 : f32
    %274 = vector.broadcast %cst_87 : f32 to vector<8x1xf32>
    %275 = arith.addf %273, %274 : vector<8x1xf32>
    %276 = math.rsqrt %275 : vector<8x1xf32>
    %277 = vector.broadcast %276 : vector<8x1xf32> to vector<8x128xf32>
    %278 = arith.mulf %268, %277 : vector<8x128xf32>
    %279 = vector.shape_cast %260 : vector<128xf32> to vector<1x128xf32>
    %280 = vector.broadcast %279 : vector<1x128xf32> to vector<8x128xf32>
    %281 = arith.mulf %278, %280 : vector<8x128xf32>
    %282 = vector.shape_cast %262 : vector<128xf32> to vector<1x128xf32>
    %283 = vector.broadcast %282 : vector<1x128xf32> to vector<8x128xf32>
    %284 = arith.addf %281, %283 : vector<8x128xf32>
    %c0_88 = arith.constant 0 : index
    %c0_89 = arith.constant 0 : index
    %c0_90 = arith.constant 0 : index
    %285 = vector.load %arg13[%c0_88, %c0_89, %c0_90] : memref<2x128x128xbf16, #tpu.memory_space<vmem>>, vector<1x128x128xbf16>
    %286 = vector.shape_cast %285 : vector<1x128x128xbf16> to vector<128x128xbf16>
    %287 = arith.truncf %284 : vector<8x128xf32> to vector<8x128xbf16>
    %cst_91 = arith.constant dense<0.000000e+00> : vector<8x128xf32>
    %288 = tpu.matmul %287, %286, %cst_91 {dimension_numbers = #tpu.dot_dimension_numbers<[1], [0], [0], [1], [0, 0, 1, 1], [], []>} : vector<8x128xbf16>, vector<128x128xbf16>, vector<8x128xf32> -> vector<8x128xf32>
    %c0_92 = arith.constant 0 : index
    %c0_93 = arith.constant 0 : index
    %289 = vector.load %arg14[%c0_92, %c0_93] : memref<2x128xf32, #tpu.memory_space<vmem>>, vector<1x128xf32>
    %290 = vector.shape_cast %289 : vector<1x128xf32> to vector<128xf32>
    %291 = vector.shape_cast %290 : vector<128xf32> to vector<1x128xf32>
    %292 = vector.broadcast %291 : vector<1x128xf32> to vector<8x128xf32>
    %293 = arith.addf %288, %292 : vector<8x128xf32>
    %cst_94 = arith.constant 0.000000e+00 : f32
    %294 = vector.broadcast %cst_94 : f32 to vector<8x128xf32>
    %295 = arith.maximumf %293, %294 : vector<8x128xf32>
    %c0_95 = arith.constant 0 : index
    %c0_96 = arith.constant 0 : index
    %c0_97 = arith.constant 0 : index
    %296 = vector.load %arg15[%c0_95, %c0_96, %c0_97] : memref<2x128x128xbf16, #tpu.memory_space<vmem>>, vector<1x128x128xbf16>
    %297 = vector.shape_cast %296 : vector<1x128x128xbf16> to vector<128x128xbf16>
    %298 = arith.truncf %295 : vector<8x128xf32> to vector<8x128xbf16>
    %cst_98 = arith.constant dense<0.000000e+00> : vector<8x128xf32>
    %299 = tpu.matmul %298, %297, %cst_98 {dimension_numbers = #tpu.dot_dimension_numbers<[1], [0], [0], [1], [0, 0, 1, 1], [], []>} : vector<8x128xbf16>, vector<128x128xbf16>, vector<8x128xf32> -> vector<8x128xf32>
    %c0_99 = arith.constant 0 : index
    %c0_100 = arith.constant 0 : index
    %300 = vector.load %arg16[%c0_99, %c0_100] : memref<2x128xf32, #tpu.memory_space<vmem>>, vector<1x128xf32>
    %301 = vector.shape_cast %300 : vector<1x128xf32> to vector<128xf32>
    %302 = vector.shape_cast %301 : vector<128xf32> to vector<1x128xf32>
    %303 = vector.broadcast %302 : vector<1x128xf32> to vector<8x128xf32>
    %304 = arith.addf %299, %303 : vector<8x128xf32>
    %305 = arith.addf %304, %284 : vector<8x128xf32>
    %306 = vector.shape_cast %305 : vector<8x128xf32> to vector<1x8x128xf32>
    %307 = arith.mulf %306, %7 : vector<1x8x128xf32>
    %308 = vector.shape_cast %307 : vector<1x8x128xf32> to vector<8x128xf32>
    %c1 = arith.constant 1 : index
    %c0_101 = arith.constant 0 : index
    %309 = vector.load %arg3[%c1, %c0_101] : memref<2x128xf32, #tpu.memory_space<vmem>>, vector<1x128xf32>
    %310 = vector.shape_cast %309 : vector<1x128xf32> to vector<128xf32>
    %c1_102 = arith.constant 1 : index
    %c0_103 = arith.constant 0 : index
    %311 = vector.load %arg4[%c1_102, %c0_103] : memref<2x128xf32, #tpu.memory_space<vmem>>, vector<1x128xf32>
    %312 = vector.shape_cast %311 : vector<1x128xf32> to vector<128xf32>
    %cst_104 = arith.constant dense<0.000000e+00> : vector<8xf32>
    %313 = vector.multi_reduction <add>, %308, %cst_104 [1] : vector<8x128xf32> to vector<8xf32>
    %314 = vector.shape_cast %313 : vector<8xf32> to vector<8x1xf32>
    %cst_105 = arith.constant 1.280000e+02 : f32
    %315 = vector.broadcast %cst_105 : f32 to vector<8x1xf32>
    %316 = arith.divf %314, %315 : vector<8x1xf32>
    %317 = vector.broadcast %316 : vector<8x1xf32> to vector<8x128xf32>
    %318 = arith.subf %308, %317 : vector<8x128xf32>
    %319 = arith.mulf %318, %318 : vector<8x128xf32>
    %cst_106 = arith.constant dense<0.000000e+00> : vector<8xf32>
    %320 = vector.multi_reduction <add>, %319, %cst_106 [1] : vector<8x128xf32> to vector<8xf32>
    %321 = vector.shape_cast %320 : vector<8xf32> to vector<8x1xf32>
    %cst_107 = arith.constant 1.280000e+02 : f32
    %322 = vector.broadcast %cst_107 : f32 to vector<8x1xf32>
    %323 = arith.divf %321, %322 : vector<8x1xf32>
    %cst_108 = arith.constant 9.99999993E-9 : f32
    %324 = vector.broadcast %cst_108 : f32 to vector<8x1xf32>
    %325 = arith.addf %323, %324 : vector<8x1xf32>
    %326 = math.rsqrt %325 : vector<8x1xf32>
    %327 = vector.broadcast %326 : vector<8x1xf32> to vector<8x128xf32>
    %328 = arith.mulf %318, %327 : vector<8x128xf32>
    %329 = vector.shape_cast %310 : vector<128xf32> to vector<1x128xf32>
    %330 = vector.broadcast %329 : vector<1x128xf32> to vector<8x128xf32>
    %331 = arith.mulf %328, %330 : vector<8x128xf32>
    %332 = vector.shape_cast %312 : vector<128xf32> to vector<1x128xf32>
    %333 = vector.broadcast %332 : vector<1x128xf32> to vector<8x128xf32>
    %334 = arith.addf %331, %333 : vector<8x128xf32>
    %c1_109 = arith.constant 1 : index
    %c0_110 = arith.constant 0 : index
    %c0_111 = arith.constant 0 : index
    %335 = vector.load %arg5[%c1_109, %c0_110, %c0_111] : memref<2x128x128xbf16, #tpu.memory_space<vmem>>, vector<1x128x128xbf16>
    %336 = vector.shape_cast %335 : vector<1x128x128xbf16> to vector<128x128xbf16>
    %337 = arith.truncf %334 : vector<8x128xf32> to vector<8x128xbf16>
    %cst_112 = arith.constant dense<0.000000e+00> : vector<8x128xf32>
    %338 = tpu.matmul %337, %336, %cst_112 {dimension_numbers = #tpu.dot_dimension_numbers<[1], [0], [0], [1], [0, 0, 1, 1], [], []>} : vector<8x128xbf16>, vector<128x128xbf16>, vector<8x128xf32> -> vector<8x128xf32>
    %c1_113 = arith.constant 1 : index
    %c0_114 = arith.constant 0 : index
    %339 = vector.load %arg6[%c1_113, %c0_114] : memref<2x128xf32, #tpu.memory_space<vmem>>, vector<1x128xf32>
    %340 = vector.shape_cast %339 : vector<1x128xf32> to vector<128xf32>
    %341 = vector.shape_cast %340 : vector<128xf32> to vector<1x128xf32>
    %342 = vector.broadcast %341 : vector<1x128xf32> to vector<8x128xf32>
    %343 = arith.addf %338, %342 : vector<8x128xf32>
    %c1_115 = arith.constant 1 : index
    %c0_116 = arith.constant 0 : index
    %c0_117 = arith.constant 0 : index
    %344 = vector.load %arg7[%c1_115, %c0_116, %c0_117] : memref<2x128x256xbf16, #tpu.memory_space<vmem>>, vector<1x128x256xbf16>
    %345 = vector.shape_cast %344 : vector<1x128x256xbf16> to vector<128x256xbf16>
    %346 = arith.truncf %308 : vector<8x128xf32> to vector<8x128xbf16>
    %cst_118 = arith.constant dense<0.000000e+00> : vector<8x256xf32>
    %347 = tpu.matmul %346, %345, %cst_118 {dimension_numbers = #tpu.dot_dimension_numbers<[1], [0], [0], [1], [0, 0, 1, 1], [], []>} : vector<8x128xbf16>, vector<128x256xbf16>, vector<8x256xf32> -> vector<8x256xf32>
    %c1_119 = arith.constant 1 : index
    %c0_120 = arith.constant 0 : index
    %348 = vector.load %arg8[%c1_119, %c0_120] : memref<2x256xf32, #tpu.memory_space<vmem>>, vector<1x256xf32>
    %349 = vector.shape_cast %348 : vector<1x256xf32> to vector<256xf32>
    %350 = vector.shape_cast %349 : vector<256xf32> to vector<1x256xf32>
    %351 = vector.broadcast %350 : vector<1x256xf32> to vector<8x256xf32>
    %352 = arith.addf %347, %351 : vector<8x256xf32>
    %353 = vector.extract_strided_slice %352 {offsets = [0, 0], sizes = [8, 128], strides = [1, 1]} : vector<8x256xf32> to vector<8x128xf32>
    %354 = vector.extract_strided_slice %352 {offsets = [0, 128], sizes = [8, 128], strides = [1, 1]} : vector<8x256xf32> to vector<8x128xf32>
    %355 = vector.shape_cast %343 : vector<8x128xf32> to vector<1x8x128xf32>
    %356 = vector.shape_cast %353 : vector<8x128xf32> to vector<1x8x128xf32>
    %357 = vector.shape_cast %354 : vector<8x128xf32> to vector<1x8x128xf32>
    %358 = vector.extract_strided_slice %355 {offsets = [0, 0, 0], sizes = [1, 8, 16], strides = [1, 1, 1]} : vector<1x8x128xf32> to vector<1x8x16xf32>
    %359 = arith.truncf %358 : vector<1x8x16xf32> to vector<1x8x16xbf16>
    %360 = vector.extract_strided_slice %356 {offsets = [0, 0, 0], sizes = [1, 8, 16], strides = [1, 1, 1]} : vector<1x8x128xf32> to vector<1x8x16xf32>
    %361 = arith.truncf %360 : vector<1x8x16xf32> to vector<1x8x16xbf16>
    %362 = vector.extract_strided_slice %357 {offsets = [0, 0, 0], sizes = [1, 8, 16], strides = [1, 1, 1]} : vector<1x8x128xf32> to vector<1x8x16xf32>
    %363 = arith.truncf %362 : vector<1x8x16xf32> to vector<1x8x16xbf16>
    "tpu.trace_start"() <{level = 10 : i32, message = "btd,bsd->bts"}> : () -> ()
    %cst_121 = arith.constant dense<0.000000e+00> : vector<1x8x8xf32>
    %364 = tpu.matmul %359, %361, %cst_121 {dimension_numbers = #tpu.dot_dimension_numbers<[2], [2], [1], [1], [0, 0, 0, 1, 1, 1], [0], [0]>} : vector<1x8x16xbf16>, vector<1x8x16xbf16>, vector<1x8x8xf32> -> vector<1x8x8xf32>
    "tpu.trace_stop"() : () -> ()
    %cst_122 = arith.constant 2.500000e-01 : f32
    %365 = vector.broadcast %cst_122 : f32 to vector<1x8x8xf32>
    %366 = arith.mulf %364, %365 : vector<1x8x8xf32>
    %cst_123 = arith.constant -1.000000e+30 : f32
    %367 = vector.broadcast %cst_123 : f32 to vector<1x8x8xf32>
    %368 = arith.select %12, %367, %366 : vector<1x8x8xi1>, vector<1x8x8xf32>
    %cst_124 = arith.constant dense<0xFF800000> : vector<1x8xf32>
    %369 = vector.multi_reduction <maximumf>, %368, %cst_124 [2] : vector<1x8x8xf32> to vector<1x8xf32>
    %370 = vector.shape_cast %369 : vector<1x8xf32> to vector<1x8x1xf32>
    %371 = vector.broadcast %370 : vector<1x8x1xf32> to vector<1x8x8xf32>
    %372 = arith.subf %368, %371 : vector<1x8x8xf32>
    %373 = math.exp %372 : vector<1x8x8xf32>
    %cst_125 = arith.constant dense<0.000000e+00> : vector<1x8xf32>
    %374 = vector.multi_reduction <add>, %373, %cst_125 [2] : vector<1x8x8xf32> to vector<1x8xf32>
    %375 = vector.shape_cast %374 : vector<1x8xf32> to vector<1x8x1xf32>
    %376 = tpu.reciprocal %375 {approx = true} : vector<1x8x1xf32> -> vector<1x8x1xf32>
    %377 = vector.broadcast %376 : vector<1x8x1xf32> to vector<1x8x8xf32>
    %378 = arith.mulf %373, %377 : vector<1x8x8xf32>
    %379 = arith.truncf %378 : vector<1x8x8xf32> to vector<1x8x8xbf16>
    "tpu.trace_start"() <{level = 10 : i32, message = "bts,bsd->btd"}> : () -> ()
    %cst_126 = arith.constant dense<0.000000e+00> : vector<1x8x16xf32>
    %380 = tpu.matmul %379, %363, %cst_126 {dimension_numbers = #tpu.dot_dimension_numbers<[2], [1], [1], [2], [0, 0, 0, 1, 1, 2], [0], [0]>} : vector<1x8x8xbf16>, vector<1x8x16xbf16>, vector<1x8x16xf32> -> vector<1x8x16xf32>
    "tpu.trace_stop"() : () -> ()
    %381 = vector.extract_strided_slice %355 {offsets = [0, 0, 16], sizes = [1, 8, 16], strides = [1, 1, 1]} : vector<1x8x128xf32> to vector<1x8x16xf32>
    %382 = arith.truncf %381 : vector<1x8x16xf32> to vector<1x8x16xbf16>
    %383 = vector.extract_strided_slice %356 {offsets = [0, 0, 16], sizes = [1, 8, 16], strides = [1, 1, 1]} : vector<1x8x128xf32> to vector<1x8x16xf32>
    %384 = arith.truncf %383 : vector<1x8x16xf32> to vector<1x8x16xbf16>
    %385 = vector.extract_strided_slice %357 {offsets = [0, 0, 16], sizes = [1, 8, 16], strides = [1, 1, 1]} : vector<1x8x128xf32> to vector<1x8x16xf32>
    %386 = arith.truncf %385 : vector<1x8x16xf32> to vector<1x8x16xbf16>
    "tpu.trace_start"() <{level = 10 : i32, message = "btd,bsd->bts"}> : () -> ()
    %cst_127 = arith.constant dense<0.000000e+00> : vector<1x8x8xf32>
    %387 = tpu.matmul %382, %384, %cst_127 {dimension_numbers = #tpu.dot_dimension_numbers<[2], [2], [1], [1], [0, 0, 0, 1, 1, 1], [0], [0]>} : vector<1x8x16xbf16>, vector<1x8x16xbf16>, vector<1x8x8xf32> -> vector<1x8x8xf32>
    "tpu.trace_stop"() : () -> ()
    %cst_128 = arith.constant 2.500000e-01 : f32
    %388 = vector.broadcast %cst_128 : f32 to vector<1x8x8xf32>
    %389 = arith.mulf %387, %388 : vector<1x8x8xf32>
    %cst_129 = arith.constant -1.000000e+30 : f32
    %390 = vector.broadcast %cst_129 : f32 to vector<1x8x8xf32>
    %391 = arith.select %12, %390, %389 : vector<1x8x8xi1>, vector<1x8x8xf32>
    %cst_130 = arith.constant dense<0xFF800000> : vector<1x8xf32>
    %392 = vector.multi_reduction <maximumf>, %391, %cst_130 [2] : vector<1x8x8xf32> to vector<1x8xf32>
    %393 = vector.shape_cast %392 : vector<1x8xf32> to vector<1x8x1xf32>
    %394 = vector.broadcast %393 : vector<1x8x1xf32> to vector<1x8x8xf32>
    %395 = arith.subf %391, %394 : vector<1x8x8xf32>
    %396 = math.exp %395 : vector<1x8x8xf32>
    %cst_131 = arith.constant dense<0.000000e+00> : vector<1x8xf32>
    %397 = vector.multi_reduction <add>, %396, %cst_131 [2] : vector<1x8x8xf32> to vector<1x8xf32>
    %398 = vector.shape_cast %397 : vector<1x8xf32> to vector<1x8x1xf32>
    %399 = tpu.reciprocal %398 {approx = true} : vector<1x8x1xf32> -> vector<1x8x1xf32>
    %400 = vector.broadcast %399 : vector<1x8x1xf32> to vector<1x8x8xf32>
    %401 = arith.mulf %396, %400 : vector<1x8x8xf32>
    %402 = arith.truncf %401 : vector<1x8x8xf32> to vector<1x8x8xbf16>
    "tpu.trace_start"() <{level = 10 : i32, message = "bts,bsd->btd"}> : () -> ()
    %cst_132 = arith.constant dense<0.000000e+00> : vector<1x8x16xf32>
    %403 = tpu.matmul %402, %386, %cst_132 {dimension_numbers = #tpu.dot_dimension_numbers<[2], [1], [1], [2], [0, 0, 0, 1, 1, 2], [0], [0]>} : vector<1x8x8xbf16>, vector<1x8x16xbf16>, vector<1x8x16xf32> -> vector<1x8x16xf32>
    "tpu.trace_stop"() : () -> ()
    %404 = vector.extract_strided_slice %355 {offsets = [0, 0, 32], sizes = [1, 8, 16], strides = [1, 1, 1]} : vector<1x8x128xf32> to vector<1x8x16xf32>
    %405 = arith.truncf %404 : vector<1x8x16xf32> to vector<1x8x16xbf16>
    %406 = vector.extract_strided_slice %356 {offsets = [0, 0, 32], sizes = [1, 8, 16], strides = [1, 1, 1]} : vector<1x8x128xf32> to vector<1x8x16xf32>
    %407 = arith.truncf %406 : vector<1x8x16xf32> to vector<1x8x16xbf16>
    %408 = vector.extract_strided_slice %357 {offsets = [0, 0, 32], sizes = [1, 8, 16], strides = [1, 1, 1]} : vector<1x8x128xf32> to vector<1x8x16xf32>
    %409 = arith.truncf %408 : vector<1x8x16xf32> to vector<1x8x16xbf16>
    "tpu.trace_start"() <{level = 10 : i32, message = "btd,bsd->bts"}> : () -> ()
    %cst_133 = arith.constant dense<0.000000e+00> : vector<1x8x8xf32>
    %410 = tpu.matmul %405, %407, %cst_133 {dimension_numbers = #tpu.dot_dimension_numbers<[2], [2], [1], [1], [0, 0, 0, 1, 1, 1], [0], [0]>} : vector<1x8x16xbf16>, vector<1x8x16xbf16>, vector<1x8x8xf32> -> vector<1x8x8xf32>
    "tpu.trace_stop"() : () -> ()
    %cst_134 = arith.constant 2.500000e-01 : f32
    %411 = vector.broadcast %cst_134 : f32 to vector<1x8x8xf32>
    %412 = arith.mulf %410, %411 : vector<1x8x8xf32>
    %cst_135 = arith.constant -1.000000e+30 : f32
    %413 = vector.broadcast %cst_135 : f32 to vector<1x8x8xf32>
    %414 = arith.select %12, %413, %412 : vector<1x8x8xi1>, vector<1x8x8xf32>
    %cst_136 = arith.constant dense<0xFF800000> : vector<1x8xf32>
    %415 = vector.multi_reduction <maximumf>, %414, %cst_136 [2] : vector<1x8x8xf32> to vector<1x8xf32>
    %416 = vector.shape_cast %415 : vector<1x8xf32> to vector<1x8x1xf32>
    %417 = vector.broadcast %416 : vector<1x8x1xf32> to vector<1x8x8xf32>
    %418 = arith.subf %414, %417 : vector<1x8x8xf32>
    %419 = math.exp %418 : vector<1x8x8xf32>
    %cst_137 = arith.constant dense<0.000000e+00> : vector<1x8xf32>
    %420 = vector.multi_reduction <add>, %419, %cst_137 [2] : vector<1x8x8xf32> to vector<1x8xf32>
    %421 = vector.shape_cast %420 : vector<1x8xf32> to vector<1x8x1xf32>
    %422 = tpu.reciprocal %421 {approx = true} : vector<1x8x1xf32> -> vector<1x8x1xf32>
    %423 = vector.broadcast %422 : vector<1x8x1xf32> to vector<1x8x8xf32>
    %424 = arith.mulf %419, %423 : vector<1x8x8xf32>
    %425 = arith.truncf %424 : vector<1x8x8xf32> to vector<1x8x8xbf16>
    "tpu.trace_start"() <{level = 10 : i32, message = "bts,bsd->btd"}> : () -> ()
    %cst_138 = arith.constant dense<0.000000e+00> : vector<1x8x16xf32>
    %426 = tpu.matmul %425, %409, %cst_138 {dimension_numbers = #tpu.dot_dimension_numbers<[2], [1], [1], [2], [0, 0, 0, 1, 1, 2], [0], [0]>} : vector<1x8x8xbf16>, vector<1x8x16xbf16>, vector<1x8x16xf32> -> vector<1x8x16xf32>
    "tpu.trace_stop"() : () -> ()
    %427 = vector.extract_strided_slice %355 {offsets = [0, 0, 48], sizes = [1, 8, 16], strides = [1, 1, 1]} : vector<1x8x128xf32> to vector<1x8x16xf32>
    %428 = arith.truncf %427 : vector<1x8x16xf32> to vector<1x8x16xbf16>
    %429 = vector.extract_strided_slice %356 {offsets = [0, 0, 48], sizes = [1, 8, 16], strides = [1, 1, 1]} : vector<1x8x128xf32> to vector<1x8x16xf32>
    %430 = arith.truncf %429 : vector<1x8x16xf32> to vector<1x8x16xbf16>
    %431 = vector.extract_strided_slice %357 {offsets = [0, 0, 48], sizes = [1, 8, 16], strides = [1, 1, 1]} : vector<1x8x128xf32> to vector<1x8x16xf32>
    %432 = arith.truncf %431 : vector<1x8x16xf32> to vector<1x8x16xbf16>
    "tpu.trace_start"() <{level = 10 : i32, message = "btd,bsd->bts"}> : () -> ()
    %cst_139 = arith.constant dense<0.000000e+00> : vector<1x8x8xf32>
    %433 = tpu.matmul %428, %430, %cst_139 {dimension_numbers = #tpu.dot_dimension_numbers<[2], [2], [1], [1], [0, 0, 0, 1, 1, 1], [0], [0]>} : vector<1x8x16xbf16>, vector<1x8x16xbf16>, vector<1x8x8xf32> -> vector<1x8x8xf32>
    "tpu.trace_stop"() : () -> ()
    %cst_140 = arith.constant 2.500000e-01 : f32
    %434 = vector.broadcast %cst_140 : f32 to vector<1x8x8xf32>
    %435 = arith.mulf %433, %434 : vector<1x8x8xf32>
    %cst_141 = arith.constant -1.000000e+30 : f32
    %436 = vector.broadcast %cst_141 : f32 to vector<1x8x8xf32>
    %437 = arith.select %12, %436, %435 : vector<1x8x8xi1>, vector<1x8x8xf32>
    %cst_142 = arith.constant dense<0xFF800000> : vector<1x8xf32>
    %438 = vector.multi_reduction <maximumf>, %437, %cst_142 [2] : vector<1x8x8xf32> to vector<1x8xf32>
    %439 = vector.shape_cast %438 : vector<1x8xf32> to vector<1x8x1xf32>
    %440 = vector.broadcast %439 : vector<1x8x1xf32> to vector<1x8x8xf32>
    %441 = arith.subf %437, %440 : vector<1x8x8xf32>
    %442 = math.exp %441 : vector<1x8x8xf32>
    %cst_143 = arith.constant dense<0.000000e+00> : vector<1x8xf32>
    %443 = vector.multi_reduction <add>, %442, %cst_143 [2] : vector<1x8x8xf32> to vector<1x8xf32>
    %444 = vector.shape_cast %443 : vector<1x8xf32> to vector<1x8x1xf32>
    %445 = tpu.reciprocal %444 {approx = true} : vector<1x8x1xf32> -> vector<1x8x1xf32>
    %446 = vector.broadcast %445 : vector<1x8x1xf32> to vector<1x8x8xf32>
    %447 = arith.mulf %442, %446 : vector<1x8x8xf32>
    %448 = arith.truncf %447 : vector<1x8x8xf32> to vector<1x8x8xbf16>
    "tpu.trace_start"() <{level = 10 : i32, message = "bts,bsd->btd"}> : () -> ()
    %cst_144 = arith.constant dense<0.000000e+00> : vector<1x8x16xf32>
    %449 = tpu.matmul %448, %432, %cst_144 {dimension_numbers = #tpu.dot_dimension_numbers<[2], [1], [1], [2], [0, 0, 0, 1, 1, 2], [0], [0]>} : vector<1x8x8xbf16>, vector<1x8x16xbf16>, vector<1x8x16xf32> -> vector<1x8x16xf32>
    "tpu.trace_stop"() : () -> ()
    %450 = vector.extract_strided_slice %355 {offsets = [0, 0, 64], sizes = [1, 8, 16], strides = [1, 1, 1]} : vector<1x8x128xf32> to vector<1x8x16xf32>
    %451 = arith.truncf %450 : vector<1x8x16xf32> to vector<1x8x16xbf16>
    %452 = vector.extract_strided_slice %356 {offsets = [0, 0, 64], sizes = [1, 8, 16], strides = [1, 1, 1]} : vector<1x8x128xf32> to vector<1x8x16xf32>
    %453 = arith.truncf %452 : vector<1x8x16xf32> to vector<1x8x16xbf16>
    %454 = vector.extract_strided_slice %357 {offsets = [0, 0, 64], sizes = [1, 8, 16], strides = [1, 1, 1]} : vector<1x8x128xf32> to vector<1x8x16xf32>
    %455 = arith.truncf %454 : vector<1x8x16xf32> to vector<1x8x16xbf16>
    "tpu.trace_start"() <{level = 10 : i32, message = "btd,bsd->bts"}> : () -> ()
    %cst_145 = arith.constant dense<0.000000e+00> : vector<1x8x8xf32>
    %456 = tpu.matmul %451, %453, %cst_145 {dimension_numbers = #tpu.dot_dimension_numbers<[2], [2], [1], [1], [0, 0, 0, 1, 1, 1], [0], [0]>} : vector<1x8x16xbf16>, vector<1x8x16xbf16>, vector<1x8x8xf32> -> vector<1x8x8xf32>
    "tpu.trace_stop"() : () -> ()
    %cst_146 = arith.constant 2.500000e-01 : f32
    %457 = vector.broadcast %cst_146 : f32 to vector<1x8x8xf32>
    %458 = arith.mulf %456, %457 : vector<1x8x8xf32>
    %cst_147 = arith.constant -1.000000e+30 : f32
    %459 = vector.broadcast %cst_147 : f32 to vector<1x8x8xf32>
    %460 = arith.select %12, %459, %458 : vector<1x8x8xi1>, vector<1x8x8xf32>
    %cst_148 = arith.constant dense<0xFF800000> : vector<1x8xf32>
    %461 = vector.multi_reduction <maximumf>, %460, %cst_148 [2] : vector<1x8x8xf32> to vector<1x8xf32>
    %462 = vector.shape_cast %461 : vector<1x8xf32> to vector<1x8x1xf32>
    %463 = vector.broadcast %462 : vector<1x8x1xf32> to vector<1x8x8xf32>
    %464 = arith.subf %460, %463 : vector<1x8x8xf32>
    %465 = math.exp %464 : vector<1x8x8xf32>
    %cst_149 = arith.constant dense<0.000000e+00> : vector<1x8xf32>
    %466 = vector.multi_reduction <add>, %465, %cst_149 [2] : vector<1x8x8xf32> to vector<1x8xf32>
    %467 = vector.shape_cast %466 : vector<1x8xf32> to vector<1x8x1xf32>
    %468 = tpu.reciprocal %467 {approx = true} : vector<1x8x1xf32> -> vector<1x8x1xf32>
    %469 = vector.broadcast %468 : vector<1x8x1xf32> to vector<1x8x8xf32>
    %470 = arith.mulf %465, %469 : vector<1x8x8xf32>
    %471 = arith.truncf %470 : vector<1x8x8xf32> to vector<1x8x8xbf16>
    "tpu.trace_start"() <{level = 10 : i32, message = "bts,bsd->btd"}> : () -> ()
    %cst_150 = arith.constant dense<0.000000e+00> : vector<1x8x16xf32>
    %472 = tpu.matmul %471, %455, %cst_150 {dimension_numbers = #tpu.dot_dimension_numbers<[2], [1], [1], [2], [0, 0, 0, 1, 1, 2], [0], [0]>} : vector<1x8x8xbf16>, vector<1x8x16xbf16>, vector<1x8x16xf32> -> vector<1x8x16xf32>
    "tpu.trace_stop"() : () -> ()
    %473 = vector.extract_strided_slice %355 {offsets = [0, 0, 80], sizes = [1, 8, 16], strides = [1, 1, 1]} : vector<1x8x128xf32> to vector<1x8x16xf32>
    %474 = arith.truncf %473 : vector<1x8x16xf32> to vector<1x8x16xbf16>
    %475 = vector.extract_strided_slice %356 {offsets = [0, 0, 80], sizes = [1, 8, 16], strides = [1, 1, 1]} : vector<1x8x128xf32> to vector<1x8x16xf32>
    %476 = arith.truncf %475 : vector<1x8x16xf32> to vector<1x8x16xbf16>
    %477 = vector.extract_strided_slice %357 {offsets = [0, 0, 80], sizes = [1, 8, 16], strides = [1, 1, 1]} : vector<1x8x128xf32> to vector<1x8x16xf32>
    %478 = arith.truncf %477 : vector<1x8x16xf32> to vector<1x8x16xbf16>
    "tpu.trace_start"() <{level = 10 : i32, message = "btd,bsd->bts"}> : () -> ()
    %cst_151 = arith.constant dense<0.000000e+00> : vector<1x8x8xf32>
    %479 = tpu.matmul %474, %476, %cst_151 {dimension_numbers = #tpu.dot_dimension_numbers<[2], [2], [1], [1], [0, 0, 0, 1, 1, 1], [0], [0]>} : vector<1x8x16xbf16>, vector<1x8x16xbf16>, vector<1x8x8xf32> -> vector<1x8x8xf32>
    "tpu.trace_stop"() : () -> ()
    %cst_152 = arith.constant 2.500000e-01 : f32
    %480 = vector.broadcast %cst_152 : f32 to vector<1x8x8xf32>
    %481 = arith.mulf %479, %480 : vector<1x8x8xf32>
    %cst_153 = arith.constant -1.000000e+30 : f32
    %482 = vector.broadcast %cst_153 : f32 to vector<1x8x8xf32>
    %483 = arith.select %12, %482, %481 : vector<1x8x8xi1>, vector<1x8x8xf32>
    %cst_154 = arith.constant dense<0xFF800000> : vector<1x8xf32>
    %484 = vector.multi_reduction <maximumf>, %483, %cst_154 [2] : vector<1x8x8xf32> to vector<1x8xf32>
    %485 = vector.shape_cast %484 : vector<1x8xf32> to vector<1x8x1xf32>
    %486 = vector.broadcast %485 : vector<1x8x1xf32> to vector<1x8x8xf32>
    %487 = arith.subf %483, %486 : vector<1x8x8xf32>
    %488 = math.exp %487 : vector<1x8x8xf32>
    %cst_155 = arith.constant dense<0.000000e+00> : vector<1x8xf32>
    %489 = vector.multi_reduction <add>, %488, %cst_155 [2] : vector<1x8x8xf32> to vector<1x8xf32>
    %490 = vector.shape_cast %489 : vector<1x8xf32> to vector<1x8x1xf32>
    %491 = tpu.reciprocal %490 {approx = true} : vector<1x8x1xf32> -> vector<1x8x1xf32>
    %492 = vector.broadcast %491 : vector<1x8x1xf32> to vector<1x8x8xf32>
    %493 = arith.mulf %488, %492 : vector<1x8x8xf32>
    %494 = arith.truncf %493 : vector<1x8x8xf32> to vector<1x8x8xbf16>
    "tpu.trace_start"() <{level = 10 : i32, message = "bts,bsd->btd"}> : () -> ()
    %cst_156 = arith.constant dense<0.000000e+00> : vector<1x8x16xf32>
    %495 = tpu.matmul %494, %478, %cst_156 {dimension_numbers = #tpu.dot_dimension_numbers<[2], [1], [1], [2], [0, 0, 0, 1, 1, 2], [0], [0]>} : vector<1x8x8xbf16>, vector<1x8x16xbf16>, vector<1x8x16xf32> -> vector<1x8x16xf32>
    "tpu.trace_stop"() : () -> ()
    %496 = vector.extract_strided_slice %355 {offsets = [0, 0, 96], sizes = [1, 8, 16], strides = [1, 1, 1]} : vector<1x8x128xf32> to vector<1x8x16xf32>
    %497 = arith.truncf %496 : vector<1x8x16xf32> to vector<1x8x16xbf16>
    %498 = vector.extract_strided_slice %356 {offsets = [0, 0, 96], sizes = [1, 8, 16], strides = [1, 1, 1]} : vector<1x8x128xf32> to vector<1x8x16xf32>
    %499 = arith.truncf %498 : vector<1x8x16xf32> to vector<1x8x16xbf16>
    %500 = vector.extract_strided_slice %357 {offsets = [0, 0, 96], sizes = [1, 8, 16], strides = [1, 1, 1]} : vector<1x8x128xf32> to vector<1x8x16xf32>
    %501 = arith.truncf %500 : vector<1x8x16xf32> to vector<1x8x16xbf16>
    "tpu.trace_start"() <{level = 10 : i32, message = "btd,bsd->bts"}> : () -> ()
    %cst_157 = arith.constant dense<0.000000e+00> : vector<1x8x8xf32>
    %502 = tpu.matmul %497, %499, %cst_157 {dimension_numbers = #tpu.dot_dimension_numbers<[2], [2], [1], [1], [0, 0, 0, 1, 1, 1], [0], [0]>} : vector<1x8x16xbf16>, vector<1x8x16xbf16>, vector<1x8x8xf32> -> vector<1x8x8xf32>
    "tpu.trace_stop"() : () -> ()
    %cst_158 = arith.constant 2.500000e-01 : f32
    %503 = vector.broadcast %cst_158 : f32 to vector<1x8x8xf32>
    %504 = arith.mulf %502, %503 : vector<1x8x8xf32>
    %cst_159 = arith.constant -1.000000e+30 : f32
    %505 = vector.broadcast %cst_159 : f32 to vector<1x8x8xf32>
    %506 = arith.select %12, %505, %504 : vector<1x8x8xi1>, vector<1x8x8xf32>
    %cst_160 = arith.constant dense<0xFF800000> : vector<1x8xf32>
    %507 = vector.multi_reduction <maximumf>, %506, %cst_160 [2] : vector<1x8x8xf32> to vector<1x8xf32>
    %508 = vector.shape_cast %507 : vector<1x8xf32> to vector<1x8x1xf32>
    %509 = vector.broadcast %508 : vector<1x8x1xf32> to vector<1x8x8xf32>
    %510 = arith.subf %506, %509 : vector<1x8x8xf32>
    %511 = math.exp %510 : vector<1x8x8xf32>
    %cst_161 = arith.constant dense<0.000000e+00> : vector<1x8xf32>
    %512 = vector.multi_reduction <add>, %511, %cst_161 [2] : vector<1x8x8xf32> to vector<1x8xf32>
    %513 = vector.shape_cast %512 : vector<1x8xf32> to vector<1x8x1xf32>
    %514 = tpu.reciprocal %513 {approx = true} : vector<1x8x1xf32> -> vector<1x8x1xf32>
    %515 = vector.broadcast %514 : vector<1x8x1xf32> to vector<1x8x8xf32>
    %516 = arith.mulf %511, %515 : vector<1x8x8xf32>
    %517 = arith.truncf %516 : vector<1x8x8xf32> to vector<1x8x8xbf16>
    "tpu.trace_start"() <{level = 10 : i32, message = "bts,bsd->btd"}> : () -> ()
    %cst_162 = arith.constant dense<0.000000e+00> : vector<1x8x16xf32>
    %518 = tpu.matmul %517, %501, %cst_162 {dimension_numbers = #tpu.dot_dimension_numbers<[2], [1], [1], [2], [0, 0, 0, 1, 1, 2], [0], [0]>} : vector<1x8x8xbf16>, vector<1x8x16xbf16>, vector<1x8x16xf32> -> vector<1x8x16xf32>
    "tpu.trace_stop"() : () -> ()
    %519 = vector.extract_strided_slice %355 {offsets = [0, 0, 112], sizes = [1, 8, 16], strides = [1, 1, 1]} : vector<1x8x128xf32> to vector<1x8x16xf32>
    %520 = arith.truncf %519 : vector<1x8x16xf32> to vector<1x8x16xbf16>
    %521 = vector.extract_strided_slice %356 {offsets = [0, 0, 112], sizes = [1, 8, 16], strides = [1, 1, 1]} : vector<1x8x128xf32> to vector<1x8x16xf32>
    %522 = arith.truncf %521 : vector<1x8x16xf32> to vector<1x8x16xbf16>
    %523 = vector.extract_strided_slice %357 {offsets = [0, 0, 112], sizes = [1, 8, 16], strides = [1, 1, 1]} : vector<1x8x128xf32> to vector<1x8x16xf32>
    %524 = arith.truncf %523 : vector<1x8x16xf32> to vector<1x8x16xbf16>
    "tpu.trace_start"() <{level = 10 : i32, message = "btd,bsd->bts"}> : () -> ()
    %cst_163 = arith.constant dense<0.000000e+00> : vector<1x8x8xf32>
    %525 = tpu.matmul %520, %522, %cst_163 {dimension_numbers = #tpu.dot_dimension_numbers<[2], [2], [1], [1], [0, 0, 0, 1, 1, 1], [0], [0]>} : vector<1x8x16xbf16>, vector<1x8x16xbf16>, vector<1x8x8xf32> -> vector<1x8x8xf32>
    "tpu.trace_stop"() : () -> ()
    %cst_164 = arith.constant 2.500000e-01 : f32
    %526 = vector.broadcast %cst_164 : f32 to vector<1x8x8xf32>
    %527 = arith.mulf %525, %526 : vector<1x8x8xf32>
    %cst_165 = arith.constant -1.000000e+30 : f32
    %528 = vector.broadcast %cst_165 : f32 to vector<1x8x8xf32>
    %529 = arith.select %12, %528, %527 : vector<1x8x8xi1>, vector<1x8x8xf32>
    %cst_166 = arith.constant dense<0xFF800000> : vector<1x8xf32>
    %530 = vector.multi_reduction <maximumf>, %529, %cst_166 [2] : vector<1x8x8xf32> to vector<1x8xf32>
    %531 = vector.shape_cast %530 : vector<1x8xf32> to vector<1x8x1xf32>
    %532 = vector.broadcast %531 : vector<1x8x1xf32> to vector<1x8x8xf32>
    %533 = arith.subf %529, %532 : vector<1x8x8xf32>
    %534 = math.exp %533 : vector<1x8x8xf32>
    %cst_167 = arith.constant dense<0.000000e+00> : vector<1x8xf32>
    %535 = vector.multi_reduction <add>, %534, %cst_167 [2] : vector<1x8x8xf32> to vector<1x8xf32>
    %536 = vector.shape_cast %535 : vector<1x8xf32> to vector<1x8x1xf32>
    %537 = tpu.reciprocal %536 {approx = true} : vector<1x8x1xf32> -> vector<1x8x1xf32>
    %538 = vector.broadcast %537 : vector<1x8x1xf32> to vector<1x8x8xf32>
    %539 = arith.mulf %534, %538 : vector<1x8x8xf32>
    %540 = arith.truncf %539 : vector<1x8x8xf32> to vector<1x8x8xbf16>
    "tpu.trace_start"() <{level = 10 : i32, message = "bts,bsd->btd"}> : () -> ()
    %cst_168 = arith.constant dense<0.000000e+00> : vector<1x8x16xf32>
    %541 = tpu.matmul %540, %524, %cst_168 {dimension_numbers = #tpu.dot_dimension_numbers<[2], [1], [1], [2], [0, 0, 0, 1, 1, 2], [0], [0]>} : vector<1x8x8xbf16>, vector<1x8x16xbf16>, vector<1x8x16xf32> -> vector<1x8x16xf32>
    "tpu.trace_stop"() : () -> ()
    %542 = tpu.concatenate %380, %403, %426, %449, %472, %495, %518, %541 in 2 : vector<1x8x16xf32>, vector<1x8x16xf32>, vector<1x8x16xf32>, vector<1x8x16xf32>, vector<1x8x16xf32>, vector<1x8x16xf32>, vector<1x8x16xf32>, vector<1x8x16xf32> -> vector<1x8x128xf32>
    %543 = vector.shape_cast %542 : vector<1x8x128xf32> to vector<8x128xf32>
    %c1_169 = arith.constant 1 : index
    %c0_170 = arith.constant 0 : index
    %c0_171 = arith.constant 0 : index
    %544 = vector.load %arg9[%c1_169, %c0_170, %c0_171] : memref<2x128x128xbf16, #tpu.memory_space<vmem>>, vector<1x128x128xbf16>
    %545 = vector.shape_cast %544 : vector<1x128x128xbf16> to vector<128x128xbf16>
    %546 = arith.truncf %543 : vector<8x128xf32> to vector<8x128xbf16>
    %cst_172 = arith.constant dense<0.000000e+00> : vector<8x128xf32>
    %547 = tpu.matmul %546, %545, %cst_172 {dimension_numbers = #tpu.dot_dimension_numbers<[1], [0], [0], [1], [0, 0, 1, 1], [], []>} : vector<8x128xbf16>, vector<128x128xbf16>, vector<8x128xf32> -> vector<8x128xf32>
    %c1_173 = arith.constant 1 : index
    %c0_174 = arith.constant 0 : index
    %548 = vector.load %arg10[%c1_173, %c0_174] : memref<2x128xf32, #tpu.memory_space<vmem>>, vector<1x128xf32>
    %549 = vector.shape_cast %548 : vector<1x128xf32> to vector<128xf32>
    %550 = vector.shape_cast %549 : vector<128xf32> to vector<1x128xf32>
    %551 = vector.broadcast %550 : vector<1x128xf32> to vector<8x128xf32>
    %552 = arith.addf %547, %551 : vector<8x128xf32>
    %553 = arith.addf %334, %552 : vector<8x128xf32>
    %c1_175 = arith.constant 1 : index
    %c0_176 = arith.constant 0 : index
    %554 = vector.load %arg11[%c1_175, %c0_176] : memref<2x128xf32, #tpu.memory_space<vmem>>, vector<1x128xf32>
    %555 = vector.shape_cast %554 : vector<1x128xf32> to vector<128xf32>
    %c1_177 = arith.constant 1 : index
    %c0_178 = arith.constant 0 : index
    %556 = vector.load %arg12[%c1_177, %c0_178] : memref<2x128xf32, #tpu.memory_space<vmem>>, vector<1x128xf32>
    %557 = vector.shape_cast %556 : vector<1x128xf32> to vector<128xf32>
    %cst_179 = arith.constant dense<0.000000e+00> : vector<8xf32>
    %558 = vector.multi_reduction <add>, %553, %cst_179 [1] : vector<8x128xf32> to vector<8xf32>
    %559 = vector.shape_cast %558 : vector<8xf32> to vector<8x1xf32>
    %cst_180 = arith.constant 1.280000e+02 : f32
    %560 = vector.broadcast %cst_180 : f32 to vector<8x1xf32>
    %561 = arith.divf %559, %560 : vector<8x1xf32>
    %562 = vector.broadcast %561 : vector<8x1xf32> to vector<8x128xf32>
    %563 = arith.subf %553, %562 : vector<8x128xf32>
    %564 = arith.mulf %563, %563 : vector<8x128xf32>
    %cst_181 = arith.constant dense<0.000000e+00> : vector<8xf32>
    %565 = vector.multi_reduction <add>, %564, %cst_181 [1] : vector<8x128xf32> to vector<8xf32>
    %566 = vector.shape_cast %565 : vector<8xf32> to vector<8x1xf32>
    %cst_182 = arith.constant 1.280000e+02 : f32
    %567 = vector.broadcast %cst_182 : f32 to vector<8x1xf32>
    %568 = arith.divf %566, %567 : vector<8x1xf32>
    %cst_183 = arith.constant 9.99999993E-9 : f32
    %569 = vector.broadcast %cst_183 : f32 to vector<8x1xf32>
    %570 = arith.addf %568, %569 : vector<8x1xf32>
    %571 = math.rsqrt %570 : vector<8x1xf32>
    %572 = vector.broadcast %571 : vector<8x1xf32> to vector<8x128xf32>
    %573 = arith.mulf %563, %572 : vector<8x128xf32>
    %574 = vector.shape_cast %555 : vector<128xf32> to vector<1x128xf32>
    %575 = vector.broadcast %574 : vector<1x128xf32> to vector<8x128xf32>
    %576 = arith.mulf %573, %575 : vector<8x128xf32>
    %577 = vector.shape_cast %557 : vector<128xf32> to vector<1x128xf32>
    %578 = vector.broadcast %577 : vector<1x128xf32> to vector<8x128xf32>
    %579 = arith.addf %576, %578 : vector<8x128xf32>
    %c1_184 = arith.constant 1 : index
    %c0_185 = arith.constant 0 : index
    %c0_186 = arith.constant 0 : index
    %580 = vector.load %arg13[%c1_184, %c0_185, %c0_186] : memref<2x128x128xbf16, #tpu.memory_space<vmem>>, vector<1x128x128xbf16>
    %581 = vector.shape_cast %580 : vector<1x128x128xbf16> to vector<128x128xbf16>
    %582 = arith.truncf %579 : vector<8x128xf32> to vector<8x128xbf16>
    %cst_187 = arith.constant dense<0.000000e+00> : vector<8x128xf32>
    %583 = tpu.matmul %582, %581, %cst_187 {dimension_numbers = #tpu.dot_dimension_numbers<[1], [0], [0], [1], [0, 0, 1, 1], [], []>} : vector<8x128xbf16>, vector<128x128xbf16>, vector<8x128xf32> -> vector<8x128xf32>
    %c1_188 = arith.constant 1 : index
    %c0_189 = arith.constant 0 : index
    %584 = vector.load %arg14[%c1_188, %c0_189] : memref<2x128xf32, #tpu.memory_space<vmem>>, vector<1x128xf32>
    %585 = vector.shape_cast %584 : vector<1x128xf32> to vector<128xf32>
    %586 = vector.shape_cast %585 : vector<128xf32> to vector<1x128xf32>
    %587 = vector.broadcast %586 : vector<1x128xf32> to vector<8x128xf32>
    %588 = arith.addf %583, %587 : vector<8x128xf32>
    %cst_190 = arith.constant 0.000000e+00 : f32
    %589 = vector.broadcast %cst_190 : f32 to vector<8x128xf32>
    %590 = arith.maximumf %588, %589 : vector<8x128xf32>
    %c1_191 = arith.constant 1 : index
    %c0_192 = arith.constant 0 : index
    %c0_193 = arith.constant 0 : index
    %591 = vector.load %arg15[%c1_191, %c0_192, %c0_193] : memref<2x128x128xbf16, #tpu.memory_space<vmem>>, vector<1x128x128xbf16>
    %592 = vector.shape_cast %591 : vector<1x128x128xbf16> to vector<128x128xbf16>
    %593 = arith.truncf %590 : vector<8x128xf32> to vector<8x128xbf16>
    %cst_194 = arith.constant dense<0.000000e+00> : vector<8x128xf32>
    %594 = tpu.matmul %593, %592, %cst_194 {dimension_numbers = #tpu.dot_dimension_numbers<[1], [0], [0], [1], [0, 0, 1, 1], [], []>} : vector<8x128xbf16>, vector<128x128xbf16>, vector<8x128xf32> -> vector<8x128xf32>
    %c1_195 = arith.constant 1 : index
    %c0_196 = arith.constant 0 : index
    %595 = vector.load %arg16[%c1_195, %c0_196] : memref<2x128xf32, #tpu.memory_space<vmem>>, vector<1x128xf32>
    %596 = vector.shape_cast %595 : vector<1x128xf32> to vector<128xf32>
    %597 = vector.shape_cast %596 : vector<128xf32> to vector<1x128xf32>
    %598 = vector.broadcast %597 : vector<1x128xf32> to vector<8x128xf32>
    %599 = arith.addf %594, %598 : vector<8x128xf32>
    %600 = arith.addf %599, %579 : vector<8x128xf32>
    %601 = vector.shape_cast %600 : vector<8x128xf32> to vector<1x8x128xf32>
    %602 = arith.mulf %601, %7 : vector<1x8x128xf32>
    %603 = vector.shape_cast %602 : vector<1x8x128xf32> to vector<8x128xf32>
    %c0_197 = arith.constant 0 : index
    %c0_198 = arith.constant 0 : index
    %604 = vector.load %arg17[%c0_197, %c0_198] : memref<1x128xf32, #tpu.memory_space<vmem>>, vector<1x128xf32>
    %605 = vector.shape_cast %604 : vector<1x128xf32> to vector<128xf32>
    %c0_199 = arith.constant 0 : index
    %c0_200 = arith.constant 0 : index
    %606 = vector.load %arg18[%c0_199, %c0_200] : memref<1x128xf32, #tpu.memory_space<vmem>>, vector<1x128xf32>
    %607 = vector.shape_cast %606 : vector<1x128xf32> to vector<128xf32>
    %cst_201 = arith.constant dense<0.000000e+00> : vector<8xf32>
    %608 = vector.multi_reduction <add>, %603, %cst_201 [1] : vector<8x128xf32> to vector<8xf32>
    %609 = vector.shape_cast %608 : vector<8xf32> to vector<8x1xf32>
    %cst_202 = arith.constant 1.280000e+02 : f32
    %610 = vector.broadcast %cst_202 : f32 to vector<8x1xf32>
    %611 = arith.divf %609, %610 : vector<8x1xf32>
    %612 = vector.broadcast %611 : vector<8x1xf32> to vector<8x128xf32>
    %613 = arith.subf %603, %612 : vector<8x128xf32>
    %614 = arith.mulf %613, %613 : vector<8x128xf32>
    %cst_203 = arith.constant dense<0.000000e+00> : vector<8xf32>
    %615 = vector.multi_reduction <add>, %614, %cst_203 [1] : vector<8x128xf32> to vector<8xf32>
    %616 = vector.shape_cast %615 : vector<8xf32> to vector<8x1xf32>
    %cst_204 = arith.constant 1.280000e+02 : f32
    %617 = vector.broadcast %cst_204 : f32 to vector<8x1xf32>
    %618 = arith.divf %616, %617 : vector<8x1xf32>
    %cst_205 = arith.constant 9.99999993E-9 : f32
    %619 = vector.broadcast %cst_205 : f32 to vector<8x1xf32>
    %620 = arith.addf %618, %619 : vector<8x1xf32>
    %621 = math.rsqrt %620 : vector<8x1xf32>
    %622 = vector.broadcast %621 : vector<8x1xf32> to vector<8x128xf32>
    %623 = arith.mulf %613, %622 : vector<8x128xf32>
    %624 = vector.shape_cast %605 : vector<128xf32> to vector<1x128xf32>
    %625 = vector.broadcast %624 : vector<1x128xf32> to vector<8x128xf32>
    %626 = arith.mulf %623, %625 : vector<8x128xf32>
    %627 = vector.shape_cast %607 : vector<128xf32> to vector<1x128xf32>
    %628 = vector.broadcast %627 : vector<1x128xf32> to vector<8x128xf32>
    %629 = arith.addf %626, %628 : vector<8x128xf32>
    %630 = vector.shape_cast %629 : vector<8x128xf32> to vector<1x8x128xf32>
    %c0_206 = arith.constant 0 : index
    %c0_207 = arith.constant 0 : index
    %c0_208 = arith.constant 0 : index
    %631 = vector.load %arg19[%c0_206, %c0_207, %c0_208] : memref<1x8x128xf32, #tpu.memory_space<vmem>>, vector<1x8x128xf32>
    tpu.vector_store %arg19[%c0_206, %c0_207, %c0_208], %630 {strides = array<i32>} : memref<1x8x128xf32, #tpu.memory_space<vmem>>, vector<1x8x128xf32>,
    return
  }
  func.func @transform_0(%arg0: i32) -> (i32, i32, i32) {
    %c0_i32 = arith.constant 0 : i32
    %c0_i32_0 = arith.constant 0 : i32
    %c0_i32_1 = arith.constant 0 : i32
    return %arg0, %c0_i32, %c0_i32_0 : i32, i32, i32
  }
  func.func @transform_1(%arg0: i32) -> (i32, i32) {
    %c0_i32 = arith.constant 0 : i32
    %c0_i32_0 = arith.constant 0 : i32
    %c0_i32_1 = arith.constant 0 : i32
    return %c0_i32, %c0_i32_0 : i32, i32
  }
  func.func @transform_2(%arg0: i32) -> (i32, i32) {
    %c0_i32 = arith.constant 0 : i32
    %c0_i32_0 = arith.constant 0 : i32
    %c0_i32_1 = arith.constant 0 : i32
    return %c0_i32, %c0_i32_0 : i32, i32
  }
  func.func @transform_3(%arg0: i32) -> (i32, i32) {
    %c0_i32 = arith.constant 0 : i32
    %c0_i32_0 = arith.constant 0 : i32
    %c0_i32_1 = arith.constant 0 : i32
    return %c0_i32, %c0_i32_0 : i32, i32
  }
  func.func @transform_4(%arg0: i32) -> (i32, i32, i32) {
    %c0_i32 = arith.constant 0 : i32
    %c0_i32_0 = arith.constant 0 : i32
    %c0_i32_1 = arith.constant 0 : i32
    %c0_i32_2 = arith.constant 0 : i32
    return %c0_i32, %c0_i32_0, %c0_i32_1 : i32, i32, i32
  }
  func.func @transform_5(%arg0: i32) -> (i32, i32) {
    %c0_i32 = arith.constant 0 : i32
    %c0_i32_0 = arith.constant 0 : i32
    %c0_i32_1 = arith.constant 0 : i32
    return %c0_i32, %c0_i32_0 : i32, i32
  }
  func.func @transform_6(%arg0: i32) -> (i32, i32, i32) {
    %c0_i32 = arith.constant 0 : i32
    %c0_i32_0 = arith.constant 0 : i32
    %c0_i32_1 = arith.constant 0 : i32
    %c0_i32_2 = arith.constant 0 : i32
    return %c0_i32, %c0_i32_0, %c0_i32_1 : i32, i32, i32
  }
  func.func @transform_7(%arg0: i32) -> (i32, i32) {
    %c0_i32 = arith.constant 0 : i32
    %c0_i32_0 = arith.constant 0 : i32
    %c0_i32_1 = arith.constant 0 : i32
    return %c0_i32, %c0_i32_0 : i32, i32
  }
  func.func @transform_8(%arg0: i32) -> (i32, i32, i32) {
    %c0_i32 = arith.constant 0 : i32
    %c0_i32_0 = arith.constant 0 : i32
    %c0_i32_1 = arith.constant 0 : i32
    %c0_i32_2 = arith.constant 0 : i32
    return %c0_i32, %c0_i32_0, %c0_i32_1 : i32, i32, i32
  }
  func.func @transform_9(%arg0: i32) -> (i32, i32) {
    %c0_i32 = arith.constant 0 : i32
    %c0_i32_0 = arith.constant 0 : i32
    %c0_i32_1 = arith.constant 0 : i32
    return %c0_i32, %c0_i32_0 : i32, i32
  }
  func.func @transform_10(%arg0: i32) -> (i32, i32) {
    %c0_i32 = arith.constant 0 : i32
    %c0_i32_0 = arith.constant 0 : i32
    %c0_i32_1 = arith.constant 0 : i32
    return %c0_i32, %c0_i32_0 : i32, i32
  }
  func.func @transform_11(%arg0: i32) -> (i32, i32) {
    %c0_i32 = arith.constant 0 : i32
    %c0_i32_0 = arith.constant 0 : i32
    %c0_i32_1 = arith.constant 0 : i32
    return %c0_i32, %c0_i32_0 : i32, i32
  }
  func.func @transform_12(%arg0: i32) -> (i32, i32, i32) {
    %c0_i32 = arith.constant 0 : i32
    %c0_i32_0 = arith.constant 0 : i32
    %c0_i32_1 = arith.constant 0 : i32
    %c0_i32_2 = arith.constant 0 : i32
    return %c0_i32, %c0_i32_0, %c0_i32_1 : i32, i32, i32
  }
  func.func @transform_13(%arg0: i32) -> (i32, i32) {
    %c0_i32 = arith.constant 0 : i32
    %c0_i32_0 = arith.constant 0 : i32
    %c0_i32_1 = arith.constant 0 : i32
    return %c0_i32, %c0_i32_0 : i32, i32
  }
  func.func @transform_14(%arg0: i32) -> (i32, i32, i32) {
    %c0_i32 = arith.constant 0 : i32
    %c0_i32_0 = arith.constant 0 : i32
    %c0_i32_1 = arith.constant 0 : i32
    %c0_i32_2 = arith.constant 0 : i32
    return %c0_i32, %c0_i32_0, %c0_i32_1 : i32, i32, i32
  }
  func.func @transform_15(%arg0: i32) -> (i32, i32) {
    %c0_i32 = arith.constant 0 : i32
    %c0_i32_0 = arith.constant 0 : i32
    %c0_i32_1 = arith.constant 0 : i32
    return %c0_i32, %c0_i32_0 : i32, i32
  }
  func.func @transform_16(%arg0: i32) -> (i32, i32) {
    %c0_i32 = arith.constant 0 : i32
    %c0_i32_0 = arith.constant 0 : i32
    %c0_i32_1 = arith.constant 0 : i32
    return %c0_i32, %c0_i32_0 : i32, i32
  }
  func.func @transform_17(%arg0: i32) -> (i32, i32) {
    %c0_i32 = arith.constant 0 : i32
    %c0_i32_0 = arith.constant 0 : i32
    %c0_i32_1 = arith.constant 0 : i32
    return %c0_i32, %c0_i32_0 : i32, i32
  }
  func.func @transform_18(%arg0: i32) -> (i32, i32, i32) {
    %c0_i32 = arith.constant 0 : i32
    %c0_i32_0 = arith.constant 0 : i32
    %c0_i32_1 = arith.constant 0 : i32
    return %arg0, %c0_i32, %c0_i32_0 : i32, i32, i32
  }
}

</mosaic_0001>

<llo_original>
// kernel: log2feats_forward.1
$region0: #{log2feats_forward.1}
  #allocation0 [shape = 'u32[]', space=smem, size = 0x4, offset = 0x4, fixed_abs, tag = 'smem constant byte address 0x4 - core index']
  #allocation1 [shape = 'u32[144,128]{1,0:T(1,128)}', space=vmem, size = 0x12000, scoped, tag = 'internal scratch']
  %s0 = inlined_call_operand.vmem [shape: f32[2,8,128], index: 0, kind: input, shape index: {}]
  %s1 = inlined_call_operand.vmem [shape: f32[8,128], index: 1, kind: input, shape index: {}]
  %s2 = inlined_call_operand.vmem [shape: f32[2,128], index: 2, kind: input, shape index: {}]
  %s3 = inlined_call_operand.hbm [shape: f32[2,128], index: 3, kind: input, shape index: {}]
  %s4 = inlined_call_operand.hbm [shape: bf16[2,128,128], index: 4, kind: input, shape index: {}]
  %s5 = inlined_call_operand.hbm [shape: f32[2,128], index: 5, kind: input, shape index: {}]
  %s6 = inlined_call_operand.hbm [shape: bf16[2,128,256], index: 6, kind: input, shape index: {}]
  %s7 = inlined_call_operand.vmem [shape: f32[2,256], index: 7, kind: input, shape index: {}]
  %s8 = inlined_call_operand.hbm [shape: bf16[2,128,128], index: 8, kind: input, shape index: {}]
  %s9 = inlined_call_operand.hbm [shape: f32[2,128], index: 9, kind: input, shape index: {}]
  %s10 = inlined_call_operand.hbm [shape: f32[2,128], index: 10, kind: input, shape index: {}]
  %s11 = inlined_call_operand.hbm [shape: f32[2,128], index: 11, kind: input, shape index: {}]
  %s12 = inlined_call_operand.hbm [shape: bf16[2,128,128], index: 12, kind: input, shape index: {}]
  %s13 = inlined_call_operand.hbm [shape: f32[2,128], index: 13, kind: input, shape index: {}]
  %s14 = inlined_call_operand.hbm [shape: bf16[2,128,128], index: 14, kind: input, shape index: {}]
  %s15 = inlined_call_operand.hbm [shape: f32[2,128], index: 15, kind: input, shape index: {}]
  %s16 = inlined_call_operand.vmem [shape: f32[1,128], index: 16, kind: input, shape index: {}]
  %s17 = inlined_call_operand.vmem [shape: f32[1,128], index: 17, kind: input, shape index: {}]
  %s18 = inlined_call_operand.hbm [shape: f32[2,8,128], index: 18, kind: output, shape index: {}]
  %s19 = sld [smem:[#allocation0]]
  $region153: #{log2feats_forward.1} parent=0
    _
  %s21 = ssub.s32 1, %s19
  %s22 = scalar_select 0, %s21, %s19
  $region1: #{log2feats_forward.1} parent=0
    #allocation2 [shape = 'u8[1024]{0}', space=vmem, size = 0x400, scoped, tag = 'input window, operand 3, single buffered']
    #allocation3 [shape = 's32[2]{0}', space=sflag, size = 0x8, scoped, tag = 'scoped memory for log2feats_forward.1']
    #allocation4 [shape = 's32[2]{0}', space=sflag, size = 0x8, scoped, tag = 'scoped memory for log2feats_forward.1']
    #allocation5 [shape = 'u8[65536]{0}', space=vmem, size = 0x10000, scoped, tag = 'input window, operand 4, single buffered']
    #allocation6 [shape = 's32[1]{0}', space=sflag, size = 0x4, scoped, tag = 'scoped memory for log2feats_forward.1']
    #allocation7 [shape = 'u8[1024]{0}', space=vmem, size = 0x400, scoped, tag = 'input window, operand 5, single buffered']
    #allocation8 [shape = 'u8[131072]{0}', space=vmem, size = 0x20000, scoped, tag = 'input window, operand 6, single buffered']
    #allocation9 [shape = 's32[1]{0}', space=sflag, size = 0x4, scoped, tag = 'scoped memory for log2feats_forward.1']
    #allocation10 [shape = 'u8[65536]{0}', space=vmem, size = 0x10000, scoped, tag = 'input window, operand 8, single buffered']
    #allocation11 [shape = 'u8[1024]{0}', space=vmem, size = 0x400, scoped, tag = 'input window, operand 9, single buffered']
    #allocation12 [shape = 's32[1]{0}', space=sflag, size = 0x4, scoped, tag = 'scoped memory for log2feats_forward.1']
    #allocation13 [shape = 'u8[1024]{0}', space=vmem, size = 0x400, scoped, tag = 'input window, operand 10, single buffered']
    #allocation14 [shape = 'u8[1024]{0}', space=vmem, size = 0x400, scoped, tag = 'input window, operand 11, single buffered']
    #allocation15 [shape = 's32[1]{0}', space=sflag, size = 0x4, scoped, tag = 'scoped memory for log2feats_forward.1']
    #allocation16 [shape = 'u8[65536]{0}', space=vmem, size = 0x10000, scoped, tag = 'input window, operand 12, single buffered']
    #allocation17 [shape = 'u8[1024]{0}', space=vmem, size = 0x400, scoped, tag = 'input window, operand 13, single buffered']
    #allocation18 [shape = 's32[1]{0}', space=sflag, size = 0x4, scoped, tag = 'scoped memory for log2feats_forward.1']
    #allocation19 [shape = 'u8[65536]{0}', space=vmem, size = 0x10000, scoped, tag = 'input window, operand 14, single buffered']
    #allocation20 [shape = 'u8[1024]{0}', space=vmem, size = 0x400, scoped, tag = 'input window, operand 15, single buffered']
    #allocation21 [shape = 's32[1]{0}', space=sflag, size = 0x4, scoped, tag = 'scoped memory for log2feats_forward.1']
    #allocation22 [shape = 'u8[8192]{0}', space=vmem, size = 0x2000, scoped, tag = 'output window, operand 0']
    %23 = vsyncpa [#allocation3], 0
    %24 = vsyncpa [#allocation6], 0
    %25 = vsyncpa [#allocation9], 0
    %26 = vsyncpa [#allocation12], 0
    %27 = vsyncpa [#allocation15], 0
    %28 = vsyncpa [#allocation18], 0
    %29 = vsyncpa [#allocation21], 0
    %30 = vsyncpa [#allocation4], 0
    %s31 = scalar_lea.sflag [#allocation4], 1
    %32 = vsyncpa %s31, 0
    loop: start=0, step=1, limit=4
    $region2: #{log2feats_forward.1} parent=1 // loop_pre_header
      _
    $region3: #{log2feats_forward.1} parent=1 // loop_header
      %s34 = sphi 0, %s38
      %p35 = scmp.ge.s32.totalorder %s34, 4
      %s44 = sphi 0, %s46
      %s47 = sphi 0, %s44
      %s48 = sphi 0, %s47
      %s64 = sphi 0, %s48
      %s68 = sphi 0, %s68
      %s70 = sphi 0, %s68
      %s71 = sphi 0, %s70
      %s85 = sphi 0, %s71
      %s89 = sphi 0, %s89
      %s91 = sphi 0, %s89
      %s92 = sphi 0, %s91
      %s106 = sphi 0, %s92
      %s110 = sphi 0, %s110
      %s112 = sphi 0, %s110
      %s113 = sphi 0, %s112
      %s127 = sphi 0, %s113
      %s131 = sphi 0, %s131
      %s133 = sphi 0, %s131
      %s134 = sphi 0, %s133
      %s148 = sphi 0, %s134
      %s152 = sphi 0, %s152
      %s154 = sphi 0, %s152
      %s155 = sphi 0, %s154
      %s169 = sphi 0, %s155
      %s173 = sphi 0, %s173
      %s175 = sphi 0, %s173
      %s176 = sphi 0, %s175
      %s190 = sphi 0, %s176
      %s194 = sphi 0, %s194
      %s196 = sphi 0, %s194
      %s197 = sphi 0, %s196
      %s211 = sphi 0, %s197
      %s215 = sphi 0, %s215
      %s217 = sphi 0, %s215
      %s218 = sphi 0, %s217
      %s232 = sphi 0, %s218
      %s236 = sphi 0, %s236
      %s238 = sphi 0, %s236
      %s239 = sphi 0, %s238
      %s253 = sphi 0, %s239
      %s257 = sphi 0, %s257
      %s259 = sphi 0, %s257
      %s260 = sphi 0, %s259
      %s274 = sphi 0, %s260
      %s278 = sphi 0, %s278
      %s280 = sphi 0, %s278
      %s281 = sphi 0, %s280
      %s295 = sphi 0, %s281
      %s299 = sphi 0, %s299
      %s301 = sphi 0, %s299
      %s302 = sphi 0, %s301
      %s316 = sphi 0, %s302
      %s320 = sphi 0, %s320
      %s322 = sphi 0, %s320
      %s323 = sphi 0, %s322
      %s337 = sphi 0, %s323
      %s341 = sphi 0, %s341
      %s343 = sphi 0, %s341
      %s344 = sphi 0, %s343
      %s358 = sphi 0, %s344
      %s362 = sphi 0, %s362
      %s364 = sphi 0, %s362
      %s365 = sphi 0, %s364
      %s379 = sphi 0, %s365
      %s383 = sphi 0, %s383
      %s385 = sphi 0, %s383
      %s386 = sphi 0, %s385
      %s400 = sphi 0, %s386
      %s404 = sphi 0, %s404
      %s406 = sphi 0, %s404
      %s407 = sphi 0, %s406
      %s421 = sphi 0, %s407
      %s427 = sphi 0, %s429
      %s430 = sphi 0, %s427
      %s431 = sphi 0, %s430
      %s447 = sphi 0, %s431
    $region4: #{log2feats_forward.1} parent=1 // loop_header_branch
      %37 = sbr.rel (%p35) target = $region8
    $region5: #{log2feats_forward.1} parent=1 // loop_body
      %s39 = ssub.s32 %s34, 1
      %s40 = ssub.s32 %s34, 2
      %s41 = sadd.s32 %s34, 1
      %s42 = ssub.s32 %s34, %s41
      %p43 = scmp.eq.s32.totalorder %s42, 0
      %s45 = sadd.s32 %s44, 1
      %s46 = scalar_select %p43, %s44, %s45
      %p49 = pneg %p43
      %p50 = scmp.eq.s32.totalorder %s34, 1
      %p51 = por %p49, %p50
      %p52 = scmp.ne.s32.totalorder %s44, %s47
      %p53 = scmp.eq.s32.totalorder %s34, 0
      %p54 = por %p52, %p53
      %p55 = scmp.ne.s32.totalorder %s44, %s47
      %p56 = scmp.eq.s32.totalorder %s39, 1
      %p57 = por %p55, %p56
      %p58 = scmp.ne.s32.totalorder %s47, %s48
      %p59 = scmp.eq.s32.totalorder %s39, 0
      %p60 = por %p58, %p59
      %p61 = scmp.ne.s32.totalorder %s47, %s48
      %p62 = scmp.eq.s32.totalorder %s40, 1
      %p63 = por %p61, %p62
      %p65 = scmp.ne.s32.totalorder %s48, %s64
      %p66 = scmp.eq.s32.totalorder %s40, 0
      %p67 = por %p65, %p66
      %s69 = sadd.s32 %s68, 1
      %p72 = scmp.eq.s32.totalorder %s34, 1
      %p73 = scmp.ne.s32.totalorder %s68, %s70
      %p74 = scmp.eq.s32.totalorder %s34, 0
      %p75 = por %p73, %p74
      %p76 = scmp.ne.s32.totalorder %s68, %s70
      %p77 = scmp.eq.s32.totalorder %s39, 1
      %p78 = por %p76, %p77
      %p79 = scmp.ne.s32.totalorder %s70, %s71
      %p80 = scmp.eq.s32.totalorder %s39, 0
      %p81 = por %p79, %p80
      %p82 = scmp.ne.s32.totalorder %s70, %s71
      %p83 = scmp.eq.s32.totalorder %s40, 1
      %p84 = por %p82, %p83
      %p86 = scmp.ne.s32.totalorder %s71, %s85
      %p87 = scmp.eq.s32.totalorder %s40, 0
      %p88 = por %p86, %p87
      %s90 = sadd.s32 %s89, 1
      %p93 = scmp.eq.s32.totalorder %s34, 1
      %p94 = scmp.ne.s32.totalorder %s89, %s91
      %p95 = scmp.eq.s32.totalorder %s34, 0
      %p96 = por %p94, %p95
      %p97 = scmp.ne.s32.totalorder %s89, %s91
      %p98 = scmp.eq.s32.totalorder %s39, 1
      %p99 = por %p97, %p98
      %p100 = scmp.ne.s32.totalorder %s91, %s92
      %p101 = scmp.eq.s32.totalorder %s39, 0
      %p102 = por %p100, %p101
      %p103 = scmp.ne.s32.totalorder %s91, %s92
      %p104 = scmp.eq.s32.totalorder %s40, 1
      %p105 = por %p103, %p104
      %p107 = scmp.ne.s32.totalorder %s92, %s106
      %p108 = scmp.eq.s32.totalorder %s40, 0
      %p109 = por %p107, %p108
      %s111 = sadd.s32 %s110, 1
      %p114 = scmp.eq.s32.totalorder %s34, 1
      %p115 = scmp.ne.s32.totalorder %s110, %s112
      %p116 = scmp.eq.s32.totalorder %s34, 0
      %p117 = por %p115, %p116
      %p118 = scmp.ne.s32.totalorder %s110, %s112
      %p119 = scmp.eq.s32.totalorder %s39, 1
      %p120 = por %p118, %p119
      %p121 = scmp.ne.s32.totalorder %s112, %s113
      %p122 = scmp.eq.s32.totalorder %s39, 0
      %p123 = por %p121, %p122
      %p124 = scmp.ne.s32.totalorder %s112, %s113
      %p125 = scmp.eq.s32.totalorder %s40, 1
      %p126 = por %p124, %p125
      %p128 = scmp.ne.s32.totalorder %s113, %s127
      %p129 = scmp.eq.s32.totalorder %s40, 0
      %p130 = por %p128, %p129
      %s132 = sadd.s32 %s131, 1
      %p135 = scmp.eq.s32.totalorder %s34, 1
      %p136 = scmp.ne.s32.totalorder %s131, %s133
      %p137 = scmp.eq.s32.totalorder %s34, 0
      %p138 = por %p136, %p137
      %p139 = scmp.ne.s32.totalorder %s131, %s133
      %p140 = scmp.eq.s32.totalorder %s39, 1
      %p141 = por %p139, %p140
      %p142 = scmp.ne.s32.totalorder %s133, %s134
      %p143 = scmp.eq.s32.totalorder %s39, 0
      %p144 = por %p142, %p143
      %p145 = scmp.ne.s32.totalorder %s133, %s134
      %p146 = scmp.eq.s32.totalorder %s40, 1
      %p147 = por %p145, %p146
      %p149 = scmp.ne.s32.totalorder %s134, %s148
      %p150 = scmp.eq.s32.totalorder %s40, 0
      %p151 = por %p149, %p150
      %s153 = sadd.s32 %s152, 1
      %p156 = scmp.eq.s32.totalorder %s34, 1
      %p157 = scmp.ne.s32.totalorder %s152, %s154
      %p158 = scmp.eq.s32.totalorder %s34, 0
      %p159 = por %p157, %p158
      %p160 = scmp.ne.s32.totalorder %s152, %s154
      %p161 = scmp.eq.s32.totalorder %s39, 1
      %p162 = por %p160, %p161
      %p163 = scmp.ne.s32.totalorder %s154, %s155
      %p164 = scmp.eq.s32.totalorder %s39, 0
      %p165 = por %p163, %p164
      %p166 = scmp.ne.s32.totalorder %s154, %s155
      %p167 = scmp.eq.s32.totalorder %s40, 1
      %p168 = por %p166, %p167
      %p170 = scmp.ne.s32.totalorder %s155, %s169
      %p171 = scmp.eq.s32.totalorder %s40, 0
      %p172 = por %p170, %p171
      %s174 = sadd.s32 %s173, 1
      %p177 = scmp.eq.s32.totalorder %s34, 1
      %p178 = scmp.ne.s32.totalorder %s173, %s175
      %p179 = scmp.eq.s32.totalorder %s34, 0
      %p180 = por %p178, %p179
      %p181 = scmp.ne.s32.totalorder %s173, %s175
      %p182 = scmp.eq.s32.totalorder %s39, 1
      %p183 = por %p181, %p182
      %p184 = scmp.ne.s32.totalorder %s175, %s176
      %p185 = scmp.eq.s32.totalorder %s39, 0
      %p186 = por %p184, %p185
      %p187 = scmp.ne.s32.totalorder %s175, %s176
      %p188 = scmp.eq.s32.totalorder %s40, 1
      %p189 = por %p187, %p188
      %p191 = scmp.ne.s32.totalorder %s176, %s190
      %p192 = scmp.eq.s32.totalorder %s40, 0
      %p193 = por %p191, %p192
      %s195 = sadd.s32 %s194, 1
      %p198 = scmp.eq.s32.totalorder %s34, 1
      %p199 = scmp.ne.s32.totalorder %s194, %s196
      %p200 = scmp.eq.s32.totalorder %s34, 0
      %p201 = por %p199, %p200
      %p202 = scmp.ne.s32.totalorder %s194, %s196
      %p203 = scmp.eq.s32.totalorder %s39, 1
      %p204 = por %p202, %p203
      %p205 = scmp.ne.s32.totalorder %s196, %s197
      %p206 = scmp.eq.s32.totalorder %s39, 0
      %p207 = por %p205, %p206
      %p208 = scmp.ne.s32.totalorder %s196, %s197
      %p209 = scmp.eq.s32.totalorder %s40, 1
      %p210 = por %p208, %p209
      %p212 = scmp.ne.s32.totalorder %s197, %s211
      %p213 = scmp.eq.s32.totalorder %s40, 0
      %p214 = por %p212, %p213
      %s216 = sadd.s32 %s215, 1
      %p219 = scmp.eq.s32.totalorder %s34, 1
      %p220 = scmp.ne.s32.totalorder %s215, %s217
      %p221 = scmp.eq.s32.totalorder %s34, 0
      %p222 = por %p220, %p221
      %p223 = scmp.ne.s32.totalorder %s215, %s217
      %p224 = scmp.eq.s32.totalorder %s39, 1
      %p225 = por %p223, %p224
      %p226 = scmp.ne.s32.totalorder %s217, %s218
      %p227 = scmp.eq.s32.totalorder %s39, 0
      %p228 = por %p226, %p227
      %p229 = scmp.ne.s32.totalorder %s217, %s218
      %p230 = scmp.eq.s32.totalorder %s40, 1
      %p231 = por %p229, %p230
      %p233 = scmp.ne.s32.totalorder %s218, %s232
      %p234 = scmp.eq.s32.totalorder %s40, 0
      %p235 = por %p233, %p234
      %s237 = sadd.s32 %s236, 1
      %p240 = scmp.eq.s32.totalorder %s34, 1
      %p241 = scmp.ne.s32.totalorder %s236, %s238
      %p242 = scmp.eq.s32.totalorder %s34, 0
      %p243 = por %p241, %p242
      %p244 = scmp.ne.s32.totalorder %s236, %s238
      %p245 = scmp.eq.s32.totalorder %s39, 1
      %p246 = por %p244, %p245
      %p247 = scmp.ne.s32.totalorder %s238, %s239
      %p248 = scmp.eq.s32.totalorder %s39, 0
      %p249 = por %p247, %p248
      %p250 = scmp.ne.s32.totalorder %s238, %s239
      %p251 = scmp.eq.s32.totalorder %s40, 1
      %p252 = por %p250, %p251
      %p254 = scmp.ne.s32.totalorder %s239, %s253
      %p255 = scmp.eq.s32.totalorder %s40, 0
      %p256 = por %p254, %p255
      %s258 = sadd.s32 %s257, 1
      %p261 = scmp.eq.s32.totalorder %s34, 1
      %p262 = scmp.ne.s32.totalorder %s257, %s259
      %p263 = scmp.eq.s32.totalorder %s34, 0
      %p264 = por %p262, %p263
      %p265 = scmp.ne.s32.totalorder %s257, %s259
      %p266 = scmp.eq.s32.totalorder %s39, 1
      %p267 = por %p265, %p266
      %p268 = scmp.ne.s32.totalorder %s259, %s260
      %p269 = scmp.eq.s32.totalorder %s39, 0
      %p270 = por %p268, %p269
      %p271 = scmp.ne.s32.totalorder %s259, %s260
      %p272 = scmp.eq.s32.totalorder %s40, 1
      %p273 = por %p271, %p272
      %p275 = scmp.ne.s32.totalorder %s260, %s274
      %p276 = scmp.eq.s32.totalorder %s40, 0
      %p277 = por %p275, %p276
      %s279 = sadd.s32 %s278, 1
      %p282 = scmp.eq.s32.totalorder %s34, 1
      %p283 = scmp.ne.s32.totalorder %s278, %s280
      %p284 = scmp.eq.s32.totalorder %s34, 0
      %p285 = por %p283, %p284
      %p286 = scmp.ne.s32.totalorder %s278, %s280
      %p287 = scmp.eq.s32.totalorder %s39, 1
      %p288 = por %p286, %p287
      %p289 = scmp.ne.s32.totalorder %s280, %s281
      %p290 = scmp.eq.s32.totalorder %s39, 0
      %p291 = por %p289, %p290
      %p292 = scmp.ne.s32.totalorder %s280, %s281
      %p293 = scmp.eq.s32.totalorder %s40, 1
      %p294 = por %p292, %p293
      %p296 = scmp.ne.s32.totalorder %s281, %s295
      %p297 = scmp.eq.s32.totalorder %s40, 0
      %p298 = por %p296, %p297
      %s300 = sadd.s32 %s299, 1
      %p303 = scmp.eq.s32.totalorder %s34, 1
      %p304 = scmp.ne.s32.totalorder %s299, %s301
      %p305 = scmp.eq.s32.totalorder %s34, 0
      %p306 = por %p304, %p305
      %p307 = scmp.ne.s32.totalorder %s299, %s301
      %p308 = scmp.eq.s32.totalorder %s39, 1
      %p309 = por %p307, %p308
      %p310 = scmp.ne.s32.totalorder %s301, %s302
      %p311 = scmp.eq.s32.totalorder %s39, 0
      %p312 = por %p310, %p311
      %p313 = scmp.ne.s32.totalorder %s301, %s302
      %p314 = scmp.eq.s32.totalorder %s40, 1
      %p315 = por %p313, %p314
      %p317 = scmp.ne.s32.totalorder %s302, %s316
      %p318 = scmp.eq.s32.totalorder %s40, 0
      %p319 = por %p317, %p318
      %s321 = sadd.s32 %s320, 1
      %p324 = scmp.eq.s32.totalorder %s34, 1
      %p325 = scmp.ne.s32.totalorder %s320, %s322
      %p326 = scmp.eq.s32.totalorder %s34, 0
      %p327 = por %p325, %p326
      %p328 = scmp.ne.s32.totalorder %s320, %s322
      %p329 = scmp.eq.s32.totalorder %s39, 1
      %p330 = por %p328, %p329
      %p331 = scmp.ne.s32.totalorder %s322, %s323
      %p332 = scmp.eq.s32.totalorder %s39, 0
      %p333 = por %p331, %p332
      %p334 = scmp.ne.s32.totalorder %s322, %s323
      %p335 = scmp.eq.s32.totalorder %s40, 1
      %p336 = por %p334, %p335
      %p338 = scmp.ne.s32.totalorder %s323, %s337
      %p339 = scmp.eq.s32.totalorder %s40, 0
      %p340 = por %p338, %p339
      %s342 = sadd.s32 %s341, 1
      %p345 = scmp.eq.s32.totalorder %s34, 1
      %p346 = scmp.ne.s32.totalorder %s341, %s343
      %p347 = scmp.eq.s32.totalorder %s34, 0
      %p348 = por %p346, %p347
      %p349 = scmp.ne.s32.totalorder %s341, %s343
      %p350 = scmp.eq.s32.totalorder %s39, 1
      %p351 = por %p349, %p350
      %p352 = scmp.ne.s32.totalorder %s343, %s344
      %p353 = scmp.eq.s32.totalorder %s39, 0
      %p354 = por %p352, %p353
      %p355 = scmp.ne.s32.totalorder %s343, %s344
      %p356 = scmp.eq.s32.totalorder %s40, 1
      %p357 = por %p355, %p356
      %p359 = scmp.ne.s32.totalorder %s344, %s358
      %p360 = scmp.eq.s32.totalorder %s40, 0
      %p361 = por %p359, %p360
      %s363 = sadd.s32 %s362, 1
      %p366 = scmp.eq.s32.totalorder %s34, 1
      %p367 = scmp.ne.s32.totalorder %s362, %s364
      %p368 = scmp.eq.s32.totalorder %s34, 0
      %p369 = por %p367, %p368
      %p370 = scmp.ne.s32.totalorder %s362, %s364
      %p371 = scmp.eq.s32.totalorder %s39, 1
      %p372 = por %p370, %p371
      %p373 = scmp.ne.s32.totalorder %s364, %s365
      %p374 = scmp.eq.s32.totalorder %s39, 0
      %p375 = por %p373, %p374
      %p376 = scmp.ne.s32.totalorder %s364, %s365
      %p377 = scmp.eq.s32.totalorder %s40, 1
      %p378 = por %p376, %p377
      %p380 = scmp.ne.s32.totalorder %s365, %s379
      %p381 = scmp.eq.s32.totalorder %s40, 0
      %p382 = por %p380, %p381
      %s384 = sadd.s32 %s383, 1
      %p387 = scmp.eq.s32.totalorder %s34, 1
      %p388 = scmp.ne.s32.totalorder %s383, %s385
      %p389 = scmp.eq.s32.totalorder %s34, 0
      %p390 = por %p388, %p389
      %p391 = scmp.ne.s32.totalorder %s383, %s385
      %p392 = scmp.eq.s32.totalorder %s39, 1
      %p393 = por %p391, %p392
      %p394 = scmp.ne.s32.totalorder %s385, %s386
      %p395 = scmp.eq.s32.totalorder %s39, 0
      %p396 = por %p394, %p395
      %p397 = scmp.ne.s32.totalorder %s385, %s386
      %p398 = scmp.eq.s32.totalorder %s40, 1
      %p399 = por %p397, %p398
      %p401 = scmp.ne.s32.totalorder %s386, %s400
      %p402 = scmp.eq.s32.totalorder %s40, 0
      %p403 = por %p401, %p402
      %s405 = sadd.s32 %s404, 1
      %p408 = scmp.eq.s32.totalorder %s34, 1
      %p409 = scmp.ne.s32.totalorder %s404, %s406
      %p410 = scmp.eq.s32.totalorder %s34, 0
      %p411 = por %p409, %p410
      %p412 = scmp.ne.s32.totalorder %s404, %s406
      %p413 = scmp.eq.s32.totalorder %s39, 1
      %p414 = por %p412, %p413
      %p415 = scmp.ne.s32.totalorder %s406, %s407
      %p416 = scmp.eq.s32.totalorder %s39, 0
      %p417 = por %p415, %p416
      %p418 = scmp.ne.s32.totalorder %s406, %s407
      %p419 = scmp.eq.s32.totalorder %s40, 1
      %p420 = por %p418, %p419
      %p422 = scmp.ne.s32.totalorder %s407, %s421
      %p423 = scmp.eq.s32.totalorder %s40, 0
      %p424 = por %p422, %p423
      %s425 = ssub.s32 %s34, %s41
      %p426 = scmp.eq.s32.totalorder %s425, 0
      %s428 = sadd.s32 %s427, 1
      %s429 = scalar_select %p426, %s427, %s428
      %p432 = pneg %p426
      %p433 = scmp.eq.s32.totalorder %s34, 1
      %p434 = por %p432, %p433
      %p435 = scmp.ne.s32.totalorder %s427, %s430
      %p436 = scmp.eq.s32.totalorder %s34, 0
      %p437 = por %p435, %p436
      %p438 = scmp.ne.s32.totalorder %s427, %s430
      %p439 = scmp.eq.s32.totalorder %s39, 1
      %p440 = por %p438, %p439
      %p441 = scmp.ne.s32.totalorder %s430, %s431
      %p442 = scmp.eq.s32.totalorder %s39, 0
      %p443 = por %p441, %p442
      %p444 = scmp.ne.s32.totalorder %s430, %s431
      %p445 = scmp.eq.s32.totalorder %s40, 1
      %p446 = por %p444, %p445
      %p448 = scmp.ne.s32.totalorder %s431, %s447
      %p449 = scmp.eq.s32.totalorder %s40, 0
      %p450 = por %p448, %p449
      %p451 = scmp.le.s32.totalorder 1, %s34
      %p452 = scmp.lt.s32.totalorder %s34, 3
      %p453 = pnand %p451, %p452
      %p454 = pneg %p453
      // Predicated region
      $region9: #{log2feats_forward.1} parent=5 // pred_check
        _
      $region10: #{log2feats_forward.1} parent=5 // pred_check_branch
        %456 = sbr.rel (%p453) target = $region12
      $region11: #{log2feats_forward.1} parent=5 // pred_region
        %s457 = ssub.s32 %s34, 1
        // Predicated region
        $region13: #{log2feats_forward.1} parent=11 // pred_check
          %p458 = pneg %p81
        $region14: #{log2feats_forward.1} parent=11 // pred_check_branch
          %460 = sbr.rel (%p458) target = $region16
        $region15: #{log2feats_forward.1} parent=11 // pred_region
          _
        $region16: #{log2feats_forward.1} parent=11 // pred_fallthru
          _
        // Predicated region
        $region17: #{log2feats_forward.1} parent=11 // pred_check
          %p461 = pneg %p102
        $region18: #{log2feats_forward.1} parent=11 // pred_check_branch
          %463 = sbr.rel (%p461) target = $region20
        $region19: #{log2feats_forward.1} parent=11 // pred_region
          _
        $region20: #{log2feats_forward.1} parent=11 // pred_fallthru
          _
        // Predicated region
        $region21: #{log2feats_forward.1} parent=11 // pred_check
          %p464 = pneg %p123
        $region22: #{log2feats_forward.1} parent=11 // pred_check_branch
          %466 = sbr.rel (%p464) target = $region24
        $region23: #{log2feats_forward.1} parent=11 // pred_region
          %s468 = ssub.s32 32, 32
          %469 = vsyncadd [#allocation3], %s468
          %s471 = sshll.u32 [#allocation2], 4
          %s472 = int_to_ptr.vmem [resolvable:$true] %s471
          %474 = dma.hbm_to_vmem [thread:$0]  %s3, 32, %s472, [#allocation3]
        $region24: #{log2feats_forward.1} parent=11 // pred_fallthru
          _
        // Predicated region
        $region25: #{log2feats_forward.1} parent=11 // pred_check
          %p475 = pneg %p144
        $region26: #{log2feats_forward.1} parent=11 // pred_check_branch
          %477 = sbr.rel (%p475) target = $region28
        $region27: #{log2feats_forward.1} parent=11 // pred_region
          %s479 = ssub.s32 2048, 2048
          %480 = vsyncadd [#allocation6], %s479
          %s481 = sshll.u32 [#allocation5], 4
          %s482 = int_to_ptr.vmem [resolvable:$true] %s481
          %487 = dma.hbm_to_vmem [thread:$0]  %s4, 2048, %s482, [#allocation6], 64, 64, 4
        $region28: #{log2feats_forward.1} parent=11 // pred_fallthru
          _
        // Predicated region
        $region29: #{log2feats_forward.1} parent=11 // pred_check
          %p488 = pneg %p165
        $region30: #{log2feats_forward.1} parent=11 // pred_check_branch
          %490 = sbr.rel (%p488) target = $region32
        $region31: #{log2feats_forward.1} parent=11 // pred_region
          %s492 = ssub.s32 32, 32
          %493 = vsyncadd [#allocation6], %s492
          %s495 = sshll.u32 [#allocation7], 4
          %s496 = int_to_ptr.vmem [resolvable:$true] %s495
          %498 = dma.hbm_to_vmem [thread:$0]  %s5, 32, %s496, [#allocation6]
        $region32: #{log2feats_forward.1} parent=11 // pred_fallthru
          _
        // Predicated region
        $region33: #{log2feats_forward.1} parent=11 // pred_check
          %p499 = pneg %p186
        $region34: #{log2feats_forward.1} parent=11 // pred_check_branch
          %501 = sbr.rel (%p499) target = $region36
        $region35: #{log2feats_forward.1} parent=11 // pred_region
          %s503 = ssub.s32 4096, 4096
          %504 = vsyncadd [#allocation9], %s503
          %s505 = sshll.u32 [#allocation8], 4
          %s506 = int_to_ptr.vmem [resolvable:$true] %s505
          %511 = dma.hbm_to_vmem [thread:$0]  %s6, 4096, %s506, [#allocation9], 128, 128, 8
        $region36: #{log2feats_forward.1} parent=11 // pred_fallthru
          _
        // Predicated region
        $region37: #{log2feats_forward.1} parent=11 // pred_check
          %p512 = pneg %p207
        $region38: #{log2feats_forward.1} parent=11 // pred_check_branch
          %514 = sbr.rel (%p512) target = $region40
        $region39: #{log2feats_forward.1} parent=11 // pred_region
          _
        $region40: #{log2feats_forward.1} parent=11 // pred_fallthru
          _
        // Predicated region
        $region41: #{log2feats_forward.1} parent=11 // pred_check
          %p515 = pneg %p228
        $region42: #{log2feats_forward.1} parent=11 // pred_check_branch
          %517 = sbr.rel (%p515) target = $region44
        $region43: #{log2feats_forward.1} parent=11 // pred_region
          %s519 = ssub.s32 2048, 2048
          %520 = vsyncadd [#allocation9], %s519
          %s521 = sshll.u32 [#allocation10], 4
          %s522 = int_to_ptr.vmem [resolvable:$true] %s521
          %527 = dma.hbm_to_vmem [thread:$0]  %s8, 2048, %s522, [#allocation9], 64, 64, 4
        $region44: #{log2feats_forward.1} parent=11 // pred_fallthru
          _
        // Predicated region
        $region45: #{log2feats_forward.1} parent=11 // pred_check
          %p528 = pneg %p249
        $region46: #{log2feats_forward.1} parent=11 // pred_check_branch
          %530 = sbr.rel (%p528) target = $region48
        $region47: #{log2feats_forward.1} parent=11 // pred_region
          %s532 = ssub.s32 32, 32
          %533 = vsyncadd [#allocation12], %s532
          %s535 = sshll.u32 [#allocation11], 4
          %s536 = int_to_ptr.vmem [resolvable:$true] %s535
          %538 = dma.hbm_to_vmem [thread:$0]  %s9, 32, %s536, [#allocation12]
        $region48: #{log2feats_forward.1} parent=11 // pred_fallthru
          _
        // Predicated region
        $region49: #{log2feats_forward.1} parent=11 // pred_check
          %p539 = pneg %p270
        $region50: #{log2feats_forward.1} parent=11 // pred_check_branch
          %541 = sbr.rel (%p539) target = $region52
        $region51: #{log2feats_forward.1} parent=11 // pred_region
          %s543 = ssub.s32 32, 32
          %544 = vsyncadd [#allocation12], %s543
          %s546 = sshll.u32 [#allocation13], 4
          %s547 = int_to_ptr.vmem [resolvable:$true] %s546
          %549 = dma.hbm_to_vmem [thread:$0]  %s10, 32, %s547, [#allocation12]
        $region52: #{log2feats_forward.1} parent=11 // pred_fallthru
          _
        // Predicated region
        $region53: #{log2feats_forward.1} parent=11 // pred_check
          %p550 = pneg %p291
        $region54: #{log2feats_forward.1} parent=11 // pred_check_branch
          %552 = sbr.rel (%p550) target = $region56
        $region55: #{log2feats_forward.1} parent=11 // pred_region
          %s554 = ssub.s32 32, 32
          %555 = vsyncadd [#allocation15], %s554
          %s557 = sshll.u32 [#allocation14], 4
          %s558 = int_to_ptr.vmem [resolvable:$true] %s557
          %560 = dma.hbm_to_vmem [thread:$0]  %s11, 32, %s558, [#allocation15]
        $region56: #{log2feats_forward.1} parent=11 // pred_fallthru
          _
        // Predicated region
        $region57: #{log2feats_forward.1} parent=11 // pred_check
          %p561 = pneg %p312
        $region58: #{log2feats_forward.1} parent=11 // pred_check_branch
          %563 = sbr.rel (%p561) target = $region60
        $region59: #{log2feats_forward.1} parent=11 // pred_region
          %s565 = ssub.s32 2048, 2048
          %566 = vsyncadd [#allocation15], %s565
          %s567 = sshll.u32 [#allocation16], 4
          %s568 = int_to_ptr.vmem [resolvable:$true] %s567
          %573 = dma.hbm_to_vmem [thread:$0]  %s12, 2048, %s568, [#allocation15], 64, 64, 4
        $region60: #{log2feats_forward.1} parent=11 // pred_fallthru
          _
        // Predicated region
        $region61: #{log2feats_forward.1} parent=11 // pred_check
          %p574 = pneg %p333
        $region62: #{log2feats_forward.1} parent=11 // pred_check_branch
          %576 = sbr.rel (%p574) target = $region64
        $region63: #{log2feats_forward.1} parent=11 // pred_region
          %s578 = ssub.s32 32, 32
          %579 = vsyncadd [#allocation18], %s578
          %s581 = sshll.u32 [#allocation17], 4
          %s582 = int_to_ptr.vmem [resolvable:$true] %s581
          %584 = dma.hbm_to_vmem [thread:$0]  %s13, 32, %s582, [#allocation18]
        $region64: #{log2feats_forward.1} parent=11 // pred_fallthru
          _
        // Predicated region
        $region65: #{log2feats_forward.1} parent=11 // pred_check
          %p585 = pneg %p354
        $region66: #{log2feats_forward.1} parent=11 // pred_check_branch
          %587 = sbr.rel (%p585) target = $region68
        $region67: #{log2feats_forward.1} parent=11 // pred_region
          %s589 = ssub.s32 2048, 2048
          %590 = vsyncadd [#allocation18], %s589
          %s591 = sshll.u32 [#allocation19], 4
          %s592 = int_to_ptr.vmem [resolvable:$true] %s591
          %597 = dma.hbm_to_vmem [thread:$0]  %s14, 2048, %s592, [#allocation18], 64, 64, 4
        $region68: #{log2feats_forward.1} parent=11 // pred_fallthru
          _
        // Predicated region
        $region69: #{log2feats_forward.1} parent=11 // pred_check
          %p598 = pneg %p375
        $region70: #{log2feats_forward.1} parent=11 // pred_check_branch
          %600 = sbr.rel (%p598) target = $region72
        $region71: #{log2feats_forward.1} parent=11 // pred_region
          %s602 = ssub.s32 32, 32
          %603 = vsyncadd [#allocation21], %s602
          %s605 = sshll.u32 [#allocation20], 4
          %s606 = int_to_ptr.vmem [resolvable:$true] %s605
          %608 = dma.hbm_to_vmem [thread:$0]  %s15, 32, %s606, [#allocation21]
        $region72: #{log2feats_forward.1} parent=11 // pred_fallthru
          _
        // Predicated region
        $region73: #{log2feats_forward.1} parent=11 // pred_check
          %p609 = pneg %p396
        $region74: #{log2feats_forward.1} parent=11 // pred_check_branch
          %611 = sbr.rel (%p609) target = $region76
        $region75: #{log2feats_forward.1} parent=11 // pred_region
          _
        $region76: #{log2feats_forward.1} parent=11 // pred_fallthru
          _
        // Predicated region
        $region77: #{log2feats_forward.1} parent=11 // pred_check
          %p612 = pneg %p417
        $region78: #{log2feats_forward.1} parent=11 // pred_check_branch
          %614 = sbr.rel (%p612) target = $region80
        $region79: #{log2feats_forward.1} parent=11 // pred_region
          _
        $region80: #{log2feats_forward.1} parent=11 // pred_fallthru
          _
      $region12: #{log2feats_forward.1} parent=5 // pred_fallthru
        _
      %p615 = scmp.lt.s32.totalorder %s34, 2
      // Predicated region
      $region81: #{log2feats_forward.1} parent=5 // pred_check
        %p616 = pneg %p615
      $region82: #{log2feats_forward.1} parent=5 // pred_check_branch
        %618 = sbr.rel (%p616) target = $region84
      $region83: #{log2feats_forward.1} parent=5 // pred_region
        // Predicated region
        $region85: #{log2feats_forward.1} parent=83 // pred_check
          %p619 = pneg %p54
        $region86: #{log2feats_forward.1} parent=83 // pred_check_branch
          %621 = sbr.rel (%p619) target = $region88
        $region87: #{log2feats_forward.1} parent=83 // pred_region
          %p622 = scmp.lt.s32.totalorder %s34, 1
          %s623 = scalar_select %p622, %s34, 1
          %s624 = smul.addr %s623, 8
          %s625 = scalar_lea.vmem %s0, %s624
        $region88: #{log2feats_forward.1} parent=83 // pred_fallthru
          _
      $region84: #{log2feats_forward.1} parent=5 // pred_fallthru
        _
      %p626 = scmp.le.s32.totalorder 1, %s34
      %p627 = scmp.lt.s32.totalorder %s34, 3
      %p628 = pnand %p626, %p627
      %p629 = pneg %p628
      // Predicated region
      $region89: #{log2feats_forward.1} parent=5 // pred_check
        _
      $region90: #{log2feats_forward.1} parent=5 // pred_check_branch
        %631 = sbr.rel (%p628) target = $region92
      $region91: #{log2feats_forward.1} parent=5 // pred_region
        %s632 = ssub.s32 %s34, 1
        // Predicated region
        $region93: #{log2feats_forward.1} parent=91 // pred_check
          %p633 = pneg %p123
        $region94: #{log2feats_forward.1} parent=91 // pred_check_branch
          %635 = sbr.rel (%p633) target = $region96
        $region95: #{log2feats_forward.1} parent=91 // pred_region
          %636 = dma.done [#allocation3], 32
        $region96: #{log2feats_forward.1} parent=91 // pred_fallthru
          _
        // Predicated region
        $region97: #{log2feats_forward.1} parent=91 // pred_check
          %p637 = pneg %p144
        $region98: #{log2feats_forward.1} parent=91 // pred_check_branch
          %639 = sbr.rel (%p637) target = $region100
        $region99: #{log2feats_forward.1} parent=91 // pred_region
          %640 = dma.done [#allocation6], 2048
        $region100: #{log2feats_forward.1} parent=91 // pred_fallthru
          _
        // Predicated region
        $region101: #{log2feats_forward.1} parent=91 // pred_check
          %p641 = pneg %p165
        $region102: #{log2feats_forward.1} parent=91 // pred_check_branch
          %643 = sbr.rel (%p641) target = $region104
        $region103: #{log2feats_forward.1} parent=91 // pred_region
          %644 = dma.done [#allocation6], 32
        $region104: #{log2feats_forward.1} parent=91 // pred_fallthru
          _
        // Predicated region
        $region105: #{log2feats_forward.1} parent=91 // pred_check
          %p645 = pneg %p186
        $region106: #{log2feats_forward.1} parent=91 // pred_check_branch
          %647 = sbr.rel (%p645) target = $region108
        $region107: #{log2feats_forward.1} parent=91 // pred_region
          %648 = dma.done [#allocation9], 4096
        $region108: #{log2feats_forward.1} parent=91 // pred_fallthru
          _
        // Predicated region
        $region109: #{log2feats_forward.1} parent=91 // pred_check
          %p649 = pneg %p228
        $region110: #{log2feats_forward.1} parent=91 // pred_check_branch
          %651 = sbr.rel (%p649) target = $region112
        $region111: #{log2feats_forward.1} parent=91 // pred_region
          %652 = dma.done [#allocation9], 2048
        $region112: #{log2feats_forward.1} parent=91 // pred_fallthru
          _
        // Predicated region
        $region113: #{log2feats_forward.1} parent=91 // pred_check
          %p653 = pneg %p249
        $region114: #{log2feats_forward.1} parent=91 // pred_check_branch
          %655 = sbr.rel (%p653) target = $region116
        $region115: #{log2feats_forward.1} parent=91 // pred_region
          %656 = dma.done [#allocation12], 32
        $region116: #{log2feats_forward.1} parent=91 // pred_fallthru
          _
        // Predicated region
        $region117: #{log2feats_forward.1} parent=91 // pred_check
          %p657 = pneg %p270
        $region118: #{log2feats_forward.1} parent=91 // pred_check_branch
          %659 = sbr.rel (%p657) target = $region120
        $region119: #{log2feats_forward.1} parent=91 // pred_region
          %660 = dma.done [#allocation12], 32
        $region120: #{log2feats_forward.1} parent=91 // pred_fallthru
          _
        // Predicated region
        $region121: #{log2feats_forward.1} parent=91 // pred_check
          %p661 = pneg %p291
        $region122: #{log2feats_forward.1} parent=91 // pred_check_branch
          %663 = sbr.rel (%p661) target = $region124
        $region123: #{log2feats_forward.1} parent=91 // pred_region
          %664 = dma.done [#allocation15], 32
        $region124: #{log2feats_forward.1} parent=91 // pred_fallthru
          _
        // Predicated region
        $region125: #{log2feats_forward.1} parent=91 // pred_check
          %p665 = pneg %p312
        $region126: #{log2feats_forward.1} parent=91 // pred_check_branch
          %667 = sbr.rel (%p665) target = $region128
        $region127: #{log2feats_forward.1} parent=91 // pred_region
          %668 = dma.done [#allocation15], 2048
        $region128: #{log2feats_forward.1} parent=91 // pred_fallthru
          _
        // Predicated region
        $region129: #{log2feats_forward.1} parent=91 // pred_check
          %p669 = pneg %p333
        $region130: #{log2feats_forward.1} parent=91 // pred_check_branch
          %671 = sbr.rel (%p669) target = $region132
        $region131: #{log2feats_forward.1} parent=91 // pred_region
          %672 = dma.done [#allocation18], 32
        $region132: #{log2feats_forward.1} parent=91 // pred_fallthru
          _
        // Predicated region
        $region133: #{log2feats_forward.1} parent=91 // pred_check
          %p673 = pneg %p354
        $region134: #{log2feats_forward.1} parent=91 // pred_check_branch
          %675 = sbr.rel (%p673) target = $region136
        $region135: #{log2feats_forward.1} parent=91 // pred_region
          %676 = dma.done [#allocation18], 2048
        $region136: #{log2feats_forward.1} parent=91 // pred_fallthru
          _
        // Predicated region
        $region137: #{log2feats_forward.1} parent=91 // pred_check
          %p677 = pneg %p375
        $region138: #{log2feats_forward.1} parent=91 // pred_check_branch
          %679 = sbr.rel (%p677) target = $region140
        $region139: #{log2feats_forward.1} parent=91 // pred_region
          %680 = dma.done [#allocation21], 32
        $region140: #{log2feats_forward.1} parent=91 // pred_fallthru
          _
        %p681 = scmp.lt.s32.totalorder %s39, 1
        %s682 = scalar_select %p681, %s39, 1
        %s683 = smul.addr %s682, 8
        %s684 = scalar_lea.vmem %s0, %s683
        %p685 = pneg %p60
        %p686 = pneg %p57
        %p687 = pneg %p81
        %p688 = pneg %p78
        %p689 = pneg %p102
        %p690 = pneg %p99
        %p691 = pneg %p123
        %p692 = pneg %p120
        %p693 = pneg %p144
        %p694 = pneg %p141
        %p695 = pneg %p165
        %p696 = pneg %p162
        %p697 = pneg %p186
        %p698 = pneg %p183
        %p699 = pneg %p207
        %p700 = pneg %p204
        %p701 = pneg %p228
        %p702 = pneg %p225
        %p703 = pneg %p249
        %p704 = pneg %p246
        %p705 = pneg %p270
        %p706 = pneg %p267
        %p707 = pneg %p291
        %p708 = pneg %p288
        %p709 = pneg %p312
        %p710 = pneg %p309
        %p711 = pneg %p333
        %p712 = pneg %p330
        %p713 = pneg %p354
        %p714 = pneg %p351
        %p715 = pneg %p375
        %p716 = pneg %p372
        %p717 = pneg %p396
        %p718 = pneg %p393
        %p719 = pneg %p417
        %p720 = pneg %p414
        %p721 = pneg %p443
        %p722 = pneg %p440
        %s723 = sand.u32 %s430, 1
        %s724 = scalar_lea.sflag [#allocation4], %s723
        %s725 = sand.u32 %s430, 1
        %s726 = smul.addr %s725, 8
        %s727 = scalar_lea.vmem [#allocation22], %s726
        %p728 = scmp.lt.s32.totalorder %s39, 1
        %s729 = scalar_select %p728, %s39, 1
        %s730 = smul.addr %s729, 8
        %s731 = scalar_lea.vmem %s0, %s730
        %v733 = vld [vmem:[%s731] sm:$0xff]
        %v734 = vld [vmem:[%s1] sm:$0xff]
        %v735 = vadd.f32 %v733, %v734
        %vm736 = vcmp.ne.f32.partialorder %v735, 0.0
        %v737 = vsel %vm736, 1, 0
        %v738 = vcvt.s32.f32 %v737
        %v739 = vmul.f32 %v735, %v738
        %v740 = vlaneseq
        %v741 = vshrl.u32 %v740, 7
        %v742 = vlaneseq
        %v743 = vand.u32 %v742, 127
        %vm744 = vcmp.gt.s32.totalorder %v743, %v741
        %v745 = vld [vmem:[%s2] sm:$0x1]
        %v746 = vld [vmem:[#allocation2] sm:$0x1]
        %747 = vadd.xlane.f32.xlu0 %v739
        %v748 = vpop.xlane.xlu0 %747
        %v749 = vrcp.pop 128.0
        %v750 = vmul.f32 %v748, %v749
        %v751 = vsub.f32 %v739, %v750
        %v752 = vmul.f32 %v751, %v751
        %753 = vadd.xlane.f32.xlu0 %v752
        %v754 = vpop.xlane.xlu0 %753
        %v755 = vmul.f32 %v754, %v749
        %v756 = vadd.f32 %v755, 1e-08
        %v757 = vrsqrt.pop %v756
        %v758 = vmul.f32 %v751, %v757
        %v759 = vlaneseq
        %v760 = vshrl.u32 %v759, 7
        %v761 = vsub.s32 0, %v760
        %v762 = vrot.slane %v745, %v761
        %v763 = vmul.f32 %v758, %v762
        %v764 = vlaneseq
        %v765 = vshrl.u32 %v764, 7
        %v766 = vsub.s32 0, %v765
        %v767 = vrot.slane %v746, %v766
        %v768 = vadd.f32 %v763, %v767
        %v769 = vld [vmem:[#allocation5] sm:$0xf]
        %v770 = vld [vmem:[#allocation5 + $0x4] sm:$0xf]
        %v771 = vld [vmem:[#allocation5 + $0x8] sm:$0xf]
        %v772 = vld [vmem:[#allocation5 + $0xc] sm:$0xf]
        %v773 = vld [vmem:[#allocation5 + $0x10] sm:$0xf]
        %v774 = vld [vmem:[#allocation5 + $0x14] sm:$0xf]
        %v775 = vld [vmem:[#allocation5 + $0x18] sm:$0xf]
        %v776 = vld [vmem:[#allocation5 + $0x1c] sm:$0xf]
        %v777 = vld [vmem:[#allocation5 + $0x20] sm:$0xf]
        %v778 = vld [vmem:[#allocation5 + $0x24] sm:$0xf]
        %v779 = vld [vmem:[#allocation5 + $0x28] sm:$0xf]
        %v780 = vld [vmem:[#allocation5 + $0x2c] sm:$0xf]
        %v781 = vld [vmem:[#allocation5 + $0x30] sm:$0xf]
        %v782 = vld [vmem:[#allocation5 + $0x34] sm:$0xf]
        %v783 = vld [vmem:[#allocation5 + $0x38] sm:$0xf]
        %v784 = vld [vmem:[#allocation5 + $0x3c] sm:$0xf]
        %v785 = vpack.c.bf16 %v768, %v768
        %v786 = vld [vmem:[#allocation7] sm:$0x1]
        %v787 = vlaneseq
        %v788 = vshrl.u32 %v787, 7
        %v789 = vsub.s32 0, %v788
        %v790 = vrot.slane %v786, %v789
        %v807 = vunpack.c.l.b16 %v769
        %v808 = vunpack.c.l.b16 %v770
        %v809 = vunpack.c.l.b16 %v771
        %v810 = vunpack.c.l.b16 %v772
        %v811 = vunpack.c.l.b16 %v773
        %v812 = vunpack.c.l.b16 %v774
        %v813 = vunpack.c.l.b16 %v775
        %v814 = vunpack.c.l.b16 %v776
        %v815 = vunpack.c.l.b16 %v777
        %v816 = vunpack.c.l.b16 %v778
        %v817 = vunpack.c.l.b16 %v779
        %v818 = vunpack.c.l.b16 %v780
        %v819 = vunpack.c.l.b16 %v781
        %v820 = vunpack.c.l.b16 %v782
        %v821 = vunpack.c.l.b16 %v783
        %v822 = vunpack.c.l.b16 %v784
        %v823 = vpack.c.b16 %v808, %v807
        %v824 = vpack.c.b16 %v810, %v809
        %v825 = vpack.c.b16 %v812, %v811
        %v826 = vpack.c.b16 %v814, %v813
        %v827 = vpack.c.b16 %v816, %v815
        %v828 = vpack.c.b16 %v818, %v817
        %v829 = vpack.c.b16 %v820, %v819
        %v830 = vpack.c.b16 %v822, %v821
        %839 = vmatprep.subr.bf16.mxu0 0
        %840 = vmatpush1.bf16.msra.mxu0 %v823
        %841 = vmatprep.subr.bf16.mxu0 0
        %842 = vmatpush1.bf16.msra.mxu0 %v824
        %843 = vmatprep.subr.bf16.mxu0 0
        %844 = vmatpush1.bf16.msra.mxu0 %v825
        %845 = vmatprep.subr.bf16.mxu0 0
        %846 = vmatpush1.bf16.msra.mxu0 %v826
        %847 = vmatprep.subr.bf16.mxu0 0
        %848 = vmatpush1.bf16.msra.mxu0 %v827
        %849 = vmatprep.subr.bf16.mxu0 0
        %850 = vmatpush1.bf16.msra.mxu0 %v828
        %851 = vmatprep.subr.bf16.mxu0 0
        %852 = vmatpush1.bf16.msra.mxu0 %v829
        %853 = vmatprep.subr.bf16.mxu0 0
        %854 = vmatpush1.bf16.msra.mxu0 %v830
        %855 = vmatprep.subr.bf16.mxu0 0
        %856 = vmatpush1.bf16.msra.mxu0 0
        %857 = vmatprep.subr.bf16.mxu0 0
        %858 = vmatpush1.bf16.msra.mxu0 0
        %859 = vmatprep.subr.bf16.mxu0 0
        %860 = vmatpush1.bf16.msra.mxu0 0
        %861 = vmatprep.subr.bf16.mxu0 0
        %862 = vmatpush1.bf16.msra.mxu0 0
        %863 = vmatprep.subr.bf16.mxu0 0
        %864 = vmatpush1.bf16.msra.mxu0 0
        %865 = vmatprep.subr.bf16.mxu0 0
        %866 = vmatpush1.bf16.msra.mxu0 0
        %867 = vmatprep.subr.bf16.mxu0 0
        %868 = vmatpush1.bf16.msra.mxu0 0
        %869 = vmatprep.subr.bf16.mxu0 0
        %870 = vmatpush1.bf16.msra.mxu0 0
        %871 = vmatprep.mubr.bf16.mxu0 0
        %872 = vmatmul.mubr.bf16.gmra.mrb[0].mxu0 %v785
        %v873 = vpop.f32.mrb[0].mxu0
        %v874 = vadd.f32 %v790, %v873
        %v875 = vpop.f32.mrb[0].mxu0
        %v876 = vpop.f32.mrb[0].mxu0
        %v877 = vpop.f32.mrb[0].mxu0
        %878 = vdwg.mxu0
        %v879 = vld [vmem:[#allocation8] sm:$0xff]
        %v880 = vld [vmem:[#allocation8 + $0x8] sm:$0xff]
        %v881 = vld [vmem:[#allocation8 + $0x10] sm:$0xff]
        %v882 = vld [vmem:[#allocation8 + $0x18] sm:$0xff]
        %v883 = vld [vmem:[#allocation8 + $0x20] sm:$0xff]
        %v884 = vld [vmem:[#allocation8 + $0x28] sm:$0xff]
        %v885 = vld [vmem:[#allocation8 + $0x30] sm:$0xff]
        %v886 = vld [vmem:[#allocation8 + $0x38] sm:$0xff]
        %v887 = vld [vmem:[#allocation8 + $0x40] sm:$0xff]
        %v888 = vld [vmem:[#allocation8 + $0x48] sm:$0xff]
        %v889 = vld [vmem:[#allocation8 + $0x50] sm:$0xff]
        %v890 = vld [vmem:[#allocation8 + $0x58] sm:$0xff]
        %v891 = vld [vmem:[#allocation8 + $0x60] sm:$0xff]
        %v892 = vld [vmem:[#allocation8 + $0x68] sm:$0xff]
        %v893 = vld [vmem:[#allocation8 + $0x70] sm:$0xff]
        %v894 = vld [vmem:[#allocation8 + $0x78] sm:$0xff]
        %v895 = vpack.c.bf16 %v739, %v739
        %v896 = vld [vmem:[%s7] ss:$2 sm:$0x3]
        %v898 = vlaneseq
        %v899 = vshrl.u32 %v898, 7
        %v900 = vsub.s32 0, %v899
        %v901 = vrot.slane %v896, %v900
        %v902 = vlaneseq
        %v903 = vshrl.u32 %v902, 7
        %v904 = vsub.s32 1, %v903
        %v905 = vrot.slane %v896, %v904
        %v924 = vunpack.c.l.b16 %v879
        %v925 = vunpack.c.h.b16 %v879
        %v926 = vunpack.c.l.b16 %v880
        %v927 = vunpack.c.h.b16 %v880
        %v928 = vunpack.c.l.b16 %v881
        %v929 = vunpack.c.h.b16 %v881
        %v930 = vunpack.c.l.b16 %v882
        %v931 = vunpack.c.h.b16 %v882
        %v932 = vunpack.c.l.b16 %v883
        %v933 = vunpack.c.h.b16 %v883
        %v934 = vunpack.c.l.b16 %v884
        %v935 = vunpack.c.h.b16 %v884
        %v936 = vunpack.c.l.b16 %v885
        %v937 = vunpack.c.h.b16 %v885
        %v938 = vunpack.c.l.b16 %v886
        %v939 = vunpack.c.h.b16 %v886
        %v940 = vunpack.c.l.b16 %v887
        %v941 = vunpack.c.h.b16 %v887
        %v942 = vunpack.c.l.b16 %v888
        %v943 = vunpack.c.h.b16 %v888
        %v944 = vunpack.c.l.b16 %v889
        %v945 = vunpack.c.h.b16 %v889
        %v946 = vunpack.c.l.b16 %v890
        %v947 = vunpack.c.h.b16 %v890
        %v948 = vunpack.c.l.b16 %v891
        %v949 = vunpack.c.h.b16 %v891
        %v950 = vunpack.c.l.b16 %v892
        %v951 = vunpack.c.h.b16 %v892
        %v952 = vunpack.c.l.b16 %v893
        %v953 = vunpack.c.h.b16 %v893
        %v954 = vunpack.c.l.b16 %v894
        %v955 = vunpack.c.h.b16 %v894
        %v956 = vpack.c.b16 %v926, %v924
        %v957 = vpack.c.b16 %v927, %v925
        %v958 = vpack.c.b16 %v930, %v928
        %v959 = vpack.c.b16 %v931, %v929
        %v960 = vpack.c.b16 %v934, %v932
        %v961 = vpack.c.b16 %v935, %v933
        %v962 = vpack.c.b16 %v938, %v936
        %v963 = vpack.c.b16 %v939, %v937
        %v964 = vpack.c.b16 %v942, %v940
        %v965 = vpack.c.b16 %v943, %v941
        %v966 = vpack.c.b16 %v946, %v944
        %v967 = vpack.c.b16 %v947, %v945
        %v968 = vpack.c.b16 %v950, %v948
        %v969 = vpack.c.b16 %v951, %v949
        %v970 = vpack.c.b16 %v954, %v952
        %v971 = vpack.c.b16 %v955, %v953
        %988 = vmatprep.subr.bf16.mxu0 %v957
        %989 = vmatpush1.bf16.msra.mxu0 %v956
        %990 = vmatprep.subr.bf16.mxu0 %v959
        %991 = vmatpush1.bf16.msra.mxu0 %v958
        %992 = vmatprep.subr.bf16.mxu0 %v961
        %993 = vmatpush1.bf16.msra.mxu0 %v960
        %994 = vmatprep.subr.bf16.mxu0 %v963
        %995 = vmatpush1.bf16.msra.mxu0 %v962
        %996 = vmatprep.subr.bf16.mxu0 %v965
        %997 = vmatpush1.bf16.msra.mxu0 %v964
        %998 = vmatprep.subr.bf16.mxu0 %v967
        %999 = vmatpush1.bf16.msra.mxu0 %v966
        %1000 = vmatprep.subr.bf16.mxu0 %v969
        %1001 = vmatpush1.bf16.msra.mxu0 %v968
        %1002 = vmatprep.subr.bf16.mxu0 %v971
        %1003 = vmatpush1.bf16.msra.mxu0 %v970
        %1004 = vmatprep.subr.bf16.mxu0 0
        %1005 = vmatpush1.bf16.msra.mxu0 0
        %1006 = vmatprep.subr.bf16.mxu0 0
        %1007 = vmatpush1.bf16.msra.mxu0 0
        %1008 = vmatprep.subr.bf16.mxu0 0
        %1009 = vmatpush1.bf16.msra.mxu0 0
        %1010 = vmatprep.subr.bf16.mxu0 0
        %1011 = vmatpush1.bf16.msra.mxu0 0
        %1012 = vmatprep.subr.bf16.mxu0 0
        %1013 = vmatpush1.bf16.msra.mxu0 0
        %1014 = vmatprep.subr.bf16.mxu0 0
        %1015 = vmatpush1.bf16.msra.mxu0 0
        %1016 = vmatprep.subr.bf16.mxu0 0
        %1017 = vmatpush1.bf16.msra.mxu0 0
        %1018 = vmatprep.subr.bf16.mxu0 0
        %1019 = vmatpush1.bf16.msra.mxu0 0
        %1020 = vmatprep.mubr.bf16.mxu0 0
        %1021 = vmatmul.mubr.bf16.gmra.mrb[0].mxu0 %v895
        %v1022 = vpop.f32.mrb[0].mxu0
        %v1023 = vadd.f32 %v901, %v1022
        %v1024 = vpop.f32.mrb[0].mxu0
        %v1025 = vadd.f32 %v905, %v1024
        %v1026 = vpop.f32.mrb[0].mxu0
        %v1027 = vpop.f32.mrb[0].mxu0
        %1028 = vdwg.mxu0
        %v1029 = vpack.c.bf16 %v874, %v874
        %v1030 = vpack.c.bf16 %v1023, %v1023
        %v1031 = vpack.c.bf16 %v1025, %v1025
        %vm1032 = vcmask 130048
        %v1034 = vsel %vm1032, %v1029, 0
        %v1037 = vsel %vm1032, %v1030, 0
        %1039 = vmatprep.subr.bf16.mxu0 0
        %1040 = vmatpush1.bf16.xpose.msra.mxu0 %v1037
        %1041 = vmatprep.subr.bf16.mxu0 0
        %1042 = vmatpush1.bf16.xpose.msra.mxu0 0
        %1043 = vmatprep.subr.bf16.mxu0 0
        %1044 = vmatpush1.bf16.xpose.msra.mxu0 0
        %1045 = vmatprep.subr.bf16.mxu0 0
        %1046 = vmatpush1.bf16.xpose.msra.mxu0 0
        %1047 = vmatprep.subr.bf16.mxu0 0
        %1048 = vmatpush1.bf16.xpose.msra.mxu0 0
        %1049 = vmatprep.subr.bf16.mxu0 0
        %1050 = vmatpush1.bf16.xpose.msra.mxu0 0
        %1051 = vmatprep.subr.bf16.mxu0 0
        %1052 = vmatpush1.bf16.xpose.msra.mxu0 0
        %1053 = vmatprep.subr.bf16.mxu0 0
        %1054 = vmatpush1.bf16.xpose.msra.mxu0 0
        %1055 = vmatprep.subr.bf16.mxu0 0
        %1056 = vmatpush1.bf16.xpose.msra.mxu0 0
        %1057 = vmatprep.subr.bf16.mxu0 0
        %1058 = vmatpush1.bf16.xpose.msra.mxu0 0
        %1059 = vmatprep.subr.bf16.mxu0 0
        %1060 = vmatpush1.bf16.xpose.msra.mxu0 0
        %1061 = vmatprep.subr.bf16.mxu0 0
        %1062 = vmatpush1.bf16.xpose.msra.mxu0 0
        %1063 = vmatprep.subr.bf16.mxu0 0
        %1064 = vmatpush1.bf16.xpose.msra.mxu0 0
        %1065 = vmatprep.subr.bf16.mxu0 0
        %1066 = vmatpush1.bf16.xpose.msra.mxu0 0
        %1067 = vmatprep.subr.bf16.mxu0 0
        %1068 = vmatpush1.bf16.xpose.msra.mxu0 0
        %1069 = vmatprep.subr.bf16.mxu0 0
        %1070 = vmatpush1.bf16.xpose.msra.mxu0 0
        %1071 = vmatprep.mubr.bf16.mxu0 0
        %1072 = vmatmul.mubr.bf16.gmra.mrb[0].mxu0 %v1034
        %v1073 = vpop.f32.mrb[0].mxu0
        %v1074 = vadd.f32 0.0, %v1073
        %v1075 = vpop.f32.mrb[0].mxu0
        %v1076 = vpop.f32.mrb[0].mxu0
        %v1077 = vpop.f32.mrb[0].mxu0
        %1078 = vdwg.mxu0
        %v1079 = vmul.f32 %v1074, 0.25
        %v1080 = vsel %vm744, -1e+30, %v1079
        %vm1081 = vcmask 64512
        %v1082 = vsel %vm1081, %v1080, -inf
        %1083 = vmax.xlane.f32.xlu0 %v1082
        %v1084 = vpop.xlane.xlu0 %1083
        %v1085 = vsub.f32 %v1080, %v1084
        %v1086 = vmul.f32 %v1085, 1.442695
        %v1087 = vpow.pop %v1086
        %v1088 = vsel %vm1081, %v1087, 0.0
        %1089 = vadd.xlane.f32.xlu0 %v1088
        %v1090 = vpop.xlane.xlu0 %1089
        %v1091 = vrcp.pop %v1090
        %v1092 = vmul.f32 %v1087, %v1091
        %v1093 = vpack.c.bf16 %v1092, %v1092
        %v1095 = vsel %vm1081, %v1093, 0
        %vm1097 = vcmask 1043456
        %v1099 = vsel %vm1097, %v1031, 0
        %1101 = vmatprep.subr.bf16.mxu0 0
        %1102 = vmatpush1.bf16.msra.mxu0 %v1099
        %1103 = vmatprep.subr.bf16.mxu0 0
        %1104 = vmatpush1.bf16.msra.mxu0 0
        %1105 = vmatprep.subr.bf16.mxu0 0
        %1106 = vmatpush1.bf16.msra.mxu0 0
        %1107 = vmatprep.subr.bf16.mxu0 0
        %1108 = vmatpush1.bf16.msra.mxu0 0
        %1109 = vmatprep.subr.bf16.mxu0 0
        %1110 = vmatpush1.bf16.msra.mxu0 0
        %1111 = vmatprep.subr.bf16.mxu0 0
        %1112 = vmatpush1.bf16.msra.mxu0 0
        %1113 = vmatprep.subr.bf16.mxu0 0
        %1114 = vmatpush1.bf16.msra.mxu0 0
        %1115 = vmatprep.subr.bf16.mxu0 0
        %1116 = vmatpush1.bf16.msra.mxu0 0
        %1117 = vmatprep.subr.bf16.mxu0 0
        %1118 = vmatpush1.bf16.msra.mxu0 0
        %1119 = vmatprep.subr.bf16.mxu0 0
        %1120 = vmatpush1.bf16.msra.mxu0 0
        %1121 = vmatprep.subr.bf16.mxu0 0
        %1122 = vmatpush1.bf16.msra.mxu0 0
        %1123 = vmatprep.subr.bf16.mxu0 0
        %1124 = vmatpush1.bf16.msra.mxu0 0
        %1125 = vmatprep.subr.bf16.mxu0 0
        %1126 = vmatpush1.bf16.msra.mxu0 0
        %1127 = vmatprep.subr.bf16.mxu0 0
        %1128 = vmatpush1.bf16.msra.mxu0 0
        %1129 = vmatprep.subr.bf16.mxu0 0
        %1130 = vmatpush1.bf16.msra.mxu0 0
        %1131 = vmatprep.subr.bf16.mxu0 0
        %1132 = vmatpush1.bf16.msra.mxu0 0
        %1133 = vmatprep.mubr.bf16.mxu0 0
        %1134 = vmatmul.mubr.bf16.gmra.mrb[0].mxu0 %v1095
        %v1135 = vpop.f32.mrb[0].mxu0
        %v1136 = vadd.f32 0.0, %v1135
        %v1137 = vpop.f32.mrb[0].mxu0
        %v1138 = vpop.f32.mrb[0].mxu0
        %v1139 = vpop.f32.mrb[0].mxu0
        %1140 = vdwg.mxu0
        %1142 = vrot.lane.b32.xlu0 %v1029, 112
        %v1143 = vpop.permute.xlu0 %1142
        %1145 = vrot.lane.b32.xlu0 %v1030, 112
        %v1146 = vpop.permute.xlu0 %1145
        %v1148 = vsel %vm1032, %v1143, 0
        %v1151 = vsel %vm1032, %v1146, 0
        %1153 = vmatprep.subr.bf16.mxu0 0
        %1154 = vmatpush1.bf16.xpose.msra.mxu0 %v1151
        %1155 = vmatprep.subr.bf16.mxu0 0
        %1156 = vmatpush1.bf16.xpose.msra.mxu0 0
        %1157 = vmatprep.subr.bf16.mxu0 0
        %1158 = vmatpush1.bf16.xpose.msra.mxu0 0
        %1159 = vmatprep.subr.bf16.mxu0 0
        %1160 = vmatpush1.bf16.xpose.msra.mxu0 0
        %1161 = vmatprep.subr.bf16.mxu0 0
        %1162 = vmatpush1.bf16.xpose.msra.mxu0 0
        %1163 = vmatprep.subr.bf16.mxu0 0
        %1164 = vmatpush1.bf16.xpose.msra.mxu0 0
        %1165 = vmatprep.subr.bf16.mxu0 0
        %1166 = vmatpush1.bf16.xpose.msra.mxu0 0
        %1167 = vmatprep.subr.bf16.mxu0 0
        %1168 = vmatpush1.bf16.xpose.msra.mxu0 0
        %1169 = vmatprep.subr.bf16.mxu0 0
        %1170 = vmatpush1.bf16.xpose.msra.mxu0 0
        %1171 = vmatprep.subr.bf16.mxu0 0
        %1172 = vmatpush1.bf16.xpose.msra.mxu0 0
        %1173 = vmatprep.subr.bf16.mxu0 0
        %1174 = vmatpush1.bf16.xpose.msra.mxu0 0
        %1175 = vmatprep.subr.bf16.mxu0 0
        %1176 = vmatpush1.bf16.xpose.msra.mxu0 0
        %1177 = vmatprep.subr.bf16.mxu0 0
        %1178 = vmatpush1.bf16.xpose.msra.mxu0 0
        %1179 = vmatprep.subr.bf16.mxu0 0
        %1180 = vmatpush1.bf16.xpose.msra.mxu0 0
        %1181 = vmatprep.subr.bf16.mxu0 0
        %1182 = vmatpush1.bf16.xpose.msra.mxu0 0
        %1183 = vmatprep.subr.bf16.mxu0 0
        %1184 = vmatpush1.bf16.xpose.msra.mxu0 0
        %1185 = vmatprep.mubr.bf16.mxu0 0
        %1186 = vmatmul.mubr.bf16.gmra.mrb[0].mxu0 %v1148
        %v1187 = vpop.f32.mrb[0].mxu0
        %v1188 = vadd.f32 0.0, %v1187
        %v1189 = vpop.f32.mrb[0].mxu0
        %v1190 = vpop.f32.mrb[0].mxu0
        %v1191 = vpop.f32.mrb[0].mxu0
        %1192 = vdwg.mxu0
        %v1193 = vmul.f32 %v1188, 0.25
        %v1194 = vsel %vm744, -1e+30, %v1193
        %v1195 = vsel %vm1081, %v1194, -inf
        %1196 = vmax.xlane.f32.xlu0 %v1195
        %v1197 = vpop.xlane.xlu0 %1196
        %v1198 = vsub.f32 %v1194, %v1197
        %v1199 = vmul.f32 %v1198, 1.442695
        %v1200 = vpow.pop %v1199
        %v1201 = vsel %vm1081, %v1200, 0.0
        %1202 = vadd.xlane.f32.xlu0 %v1201
        %v1203 = vpop.xlane.xlu0 %1202
        %v1204 = vrcp.pop %v1203
        %v1205 = vmul.f32 %v1200, %v1204
        %v1206 = vpack.c.bf16 %v1205, %v1205
        %1208 = vrot.lane.b32.xlu0 %v1031, 112
        %v1209 = vpop.permute.xlu0 %1208
        %v1211 = vsel %vm1081, %v1206, 0
        %v1214 = vsel %vm1097, %v1209, 0
        %1216 = vmatprep.subr.bf16.mxu0 0
        %1217 = vmatpush1.bf16.msra.mxu0 %v1214
        %1218 = vmatprep.subr.bf16.mxu0 0
        %1219 = vmatpush1.bf16.msra.mxu0 0
        %1220 = vmatprep.subr.bf16.mxu0 0
        %1221 = vmatpush1.bf16.msra.mxu0 0
        %1222 = vmatprep.subr.bf16.mxu0 0
        %1223 = vmatpush1.bf16.msra.mxu0 0
        %1224 = vmatprep.subr.bf16.mxu0 0
        %1225 = vmatpush1.bf16.msra.mxu0 0
        %1226 = vmatprep.subr.bf16.mxu0 0
        %1227 = vmatpush1.bf16.msra.mxu0 0
        %1228 = vmatprep.subr.bf16.mxu0 0
        %1229 = vmatpush1.bf16.msra.mxu0 0
        %1230 = vmatprep.subr.bf16.mxu0 0
        %1231 = vmatpush1.bf16.msra.mxu0 0
        %1232 = vmatprep.subr.bf16.mxu0 0
        %1233 = vmatpush1.bf16.msra.mxu0 0
        %1234 = vmatprep.subr.bf16.mxu0 0
        %1235 = vmatpush1.bf16.msra.mxu0 0
        %1236 = vmatprep.subr.bf16.mxu0 0
        %1237 = vmatpush1.bf16.msra.mxu0 0
        %1238 = vmatprep.subr.bf16.mxu0 0
        %1239 = vmatpush1.bf16.msra.mxu0 0
        %1240 = vmatprep.subr.bf16.mxu0 0
        %1241 = vmatpush1.bf16.msra.mxu0 0
        %1242 = vmatprep.subr.bf16.mxu0 0
        %1243 = vmatpush1.bf16.msra.mxu0 0
        %1244 = vmatprep.subr.bf16.mxu0 0
        %1245 = vmatpush1.bf16.msra.mxu0 0
        %1246 = vmatprep.subr.bf16.mxu0 0
        %1247 = vmatpush1.bf16.msra.mxu0 0
        %1248 = vmatprep.mubr.bf16.mxu0 0
        %1249 = vmatmul.mubr.bf16.gmra.mrb[0].mxu0 %v1211
        %v1250 = vpop.f32.mrb[0].mxu0
        %v1251 = vadd.f32 0.0, %v1250
        %v1252 = vpop.f32.mrb[0].mxu0
        %v1253 = vpop.f32.mrb[0].mxu0
        %v1254 = vpop.f32.mrb[0].mxu0
        %1255 = vdwg.mxu0
        %1256 = vrot.lane.b32.xlu0 %v1029, 96
        %v1257 = vpop.permute.xlu0 %1256
        %1258 = vrot.lane.b32.xlu0 %v1030, 96
        %v1259 = vpop.permute.xlu0 %1258
        %v1261 = vsel %vm1032, %v1257, 0
        %v1264 = vsel %vm1032, %v1259, 0
        %1266 = vmatprep.subr.bf16.mxu0 0
        %1267 = vmatpush1.bf16.xpose.msra.mxu0 %v1264
        %1268 = vmatprep.subr.bf16.mxu0 0
        %1269 = vmatpush1.bf16.xpose.msra.mxu0 0
        %1270 = vmatprep.subr.bf16.mxu0 0
        %1271 = vmatpush1.bf16.xpose.msra.mxu0 0
        %1272 = vmatprep.subr.bf16.mxu0 0
        %1273 = vmatpush1.bf16.xpose.msra.mxu0 0
        %1274 = vmatprep.subr.bf16.mxu0 0
        %1275 = vmatpush1.bf16.xpose.msra.mxu0 0
        %1276 = vmatprep.subr.bf16.mxu0 0
        %1277 = vmatpush1.bf16.xpose.msra.mxu0 0
        %1278 = vmatprep.subr.bf16.mxu0 0
        %1279 = vmatpush1.bf16.xpose.msra.mxu0 0
        %1280 = vmatprep.subr.bf16.mxu0 0
        %1281 = vmatpush1.bf16.xpose.msra.mxu0 0
        %1282 = vmatprep.subr.bf16.mxu0 0
        %1283 = vmatpush1.bf16.xpose.msra.mxu0 0
        %1284 = vmatprep.subr.bf16.mxu0 0
        %1285 = vmatpush1.bf16.xpose.msra.mxu0 0
        %1286 = vmatprep.subr.bf16.mxu0 0
        %1287 = vmatpush1.bf16.xpose.msra.mxu0 0
        %1288 = vmatprep.subr.bf16.mxu0 0
        %1289 = vmatpush1.bf16.xpose.msra.mxu0 0
        %1290 = vmatprep.subr.bf16.mxu0 0
        %1291 = vmatpush1.bf16.xpose.msra.mxu0 0
        %1292 = vmatprep.subr.bf16.mxu0 0
        %1293 = vmatpush1.bf16.xpose.msra.mxu0 0
        %1294 = vmatprep.subr.bf16.mxu0 0
        %1295 = vmatpush1.bf16.xpose.msra.mxu0 0
        %1296 = vmatprep.subr.bf16.mxu0 0
        %1297 = vmatpush1.bf16.xpose.msra.mxu0 0
        %1298 = vmatprep.mubr.bf16.mxu0 0
        %1299 = vmatmul.mubr.bf16.gmra.mrb[0].mxu0 %v1261
        %v1300 = vpop.f32.mrb[0].mxu0
        %v1301 = vadd.f32 0.0, %v1300
        %v1302 = vpop.f32.mrb[0].mxu0
        %v1303 = vpop.f32.mrb[0].mxu0
        %v1304 = vpop.f32.mrb[0].mxu0
        %1305 = vdwg.mxu0
        %v1306 = vmul.f32 %v1301, 0.25
        %v1307 = vsel %vm744, -1e+30, %v1306
        %v1308 = vsel %vm1081, %v1307, -inf
        %1309 = vmax.xlane.f32.xlu0 %v1308
        %v1310 = vpop.xlane.xlu0 %1309
        %v1311 = vsub.f32 %v1307, %v1310
        %v1312 = vmul.f32 %v1311, 1.442695
        %v1313 = vpow.pop %v1312
        %v1314 = vsel %vm1081, %v1313, 0.0
        %1315 = vadd.xlane.f32.xlu0 %v1314
        %v1316 = vpop.xlane.xlu0 %1315
        %v1317 = vrcp.pop %v1316
        %v1318 = vmul.f32 %v1313, %v1317
        %v1319 = vpack.c.bf16 %v1318, %v1318
        %1320 = vrot.lane.b32.xlu0 %v1031, 96
        %v1321 = vpop.permute.xlu0 %1320
        %v1323 = vsel %vm1081, %v1319, 0
        %v1326 = vsel %vm1097, %v1321, 0
        %1328 = vmatprep.subr.bf16.mxu0 0
        %1329 = vmatpush1.bf16.msra.mxu0 %v1326
        %1330 = vmatprep.subr.bf16.mxu0 0
        %1331 = vmatpush1.bf16.msra.mxu0 0
        %1332 = vmatprep.subr.bf16.mxu0 0
        %1333 = vmatpush1.bf16.msra.mxu0 0
        %1334 = vmatprep.subr.bf16.mxu0 0
        %1335 = vmatpush1.bf16.msra.mxu0 0
        %1336 = vmatprep.subr.bf16.mxu0 0
        %1337 = vmatpush1.bf16.msra.mxu0 0
        %1338 = vmatprep.subr.bf16.mxu0 0
        %1339 = vmatpush1.bf16.msra.mxu0 0
        %1340 = vmatprep.subr.bf16.mxu0 0
        %1341 = vmatpush1.bf16.msra.mxu0 0
        %1342 = vmatprep.subr.bf16.mxu0 0
        %1343 = vmatpush1.bf16.msra.mxu0 0
        %1344 = vmatprep.subr.bf16.mxu0 0
        %1345 = vmatpush1.bf16.msra.mxu0 0
        %1346 = vmatprep.subr.bf16.mxu0 0
        %1347 = vmatpush1.bf16.msra.mxu0 0
        %1348 = vmatprep.subr.bf16.mxu0 0
        %1349 = vmatpush1.bf16.msra.mxu0 0
        %1350 = vmatprep.subr.bf16.mxu0 0
        %1351 = vmatpush1.bf16.msra.mxu0 0
        %1352 = vmatprep.subr.bf16.mxu0 0
        %1353 = vmatpush1.bf16.msra.mxu0 0
        %1354 = vmatprep.subr.bf16.mxu0 0
        %1355 = vmatpush1.bf16.msra.mxu0 0
        %1356 = vmatprep.subr.bf16.mxu0 0
        %1357 = vmatpush1.bf16.msra.mxu0 0
        %1358 = vmatprep.subr.bf16.mxu0 0
        %1359 = vmatpush1.bf16.msra.mxu0 0
        %1360 = vmatprep.mubr.bf16.mxu0 0
        %1361 = vmatmul.mubr.bf16.gmra.mrb[0].mxu0 %v1323
        %v1362 = vpop.f32.mrb[0].mxu0
        %v1363 = vadd.f32 0.0, %v1362
        %v1364 = vpop.f32.mrb[0].mxu0
        %v1365 = vpop.f32.mrb[0].mxu0
        %v1366 = vpop.f32.mrb[0].mxu0
        %1367 = vdwg.mxu0
        %1368 = vrot.lane.b32.xlu0 %v1029, 80
        %v1369 = vpop.permute.xlu0 %1368
        %1370 = vrot.lane.b32.xlu0 %v1030, 80
        %v1371 = vpop.permute.xlu0 %1370
        %v1373 = vsel %vm1032, %v1369, 0
        %v1376 = vsel %vm1032, %v1371, 0
        %1378 = vmatprep.subr.bf16.mxu0 0
        %1379 = vmatpush1.bf16.xpose.msra.mxu0 %v1376
        %1380 = vmatprep.subr.bf16.mxu0 0
        %1381 = vmatpush1.bf16.xpose.msra.mxu0 0
        %1382 = vmatprep.subr.bf16.mxu0 0
        %1383 = vmatpush1.bf16.xpose.msra.mxu0 0
        %1384 = vmatprep.subr.bf16.mxu0 0
        %1385 = vmatpush1.bf16.xpose.msra.mxu0 0
        %1386 = vmatprep.subr.bf16.mxu0 0
        %1387 = vmatpush1.bf16.xpose.msra.mxu0 0
        %1388 = vmatprep.subr.bf16.mxu0 0
        %1389 = vmatpush1.bf16.xpose.msra.mxu0 0
        %1390 = vmatprep.subr.bf16.mxu0 0
        %1391 = vmatpush1.bf16.xpose.msra.mxu0 0
        %1392 = vmatprep.subr.bf16.mxu0 0
        %1393 = vmatpush1.bf16.xpose.msra.mxu0 0
        %1394 = vmatprep.subr.bf16.mxu0 0
        %1395 = vmatpush1.bf16.xpose.msra.mxu0 0
        %1396 = vmatprep.subr.bf16.mxu0 0
        %1397 = vmatpush1.bf16.xpose.msra.mxu0 0
        %1398 = vmatprep.subr.bf16.mxu0 0
        %1399 = vmatpush1.bf16.xpose.msra.mxu0 0
        %1400 = vmatprep.subr.bf16.mxu0 0
        %1401 = vmatpush1.bf16.xpose.msra.mxu0 0
        %1402 = vmatprep.subr.bf16.mxu0 0
        %1403 = vmatpush1.bf16.xpose.msra.mxu0 0
        %1404 = vmatprep.subr.bf16.mxu0 0
        %1405 = vmatpush1.bf16.xpose.msra.mxu0 0
        %1406 = vmatprep.subr.bf16.mxu0 0
        %1407 = vmatpush1.bf16.xpose.msra.mxu0 0
        %1408 = vmatprep.subr.bf16.mxu0 0
        %1409 = vmatpush1.bf16.xpose.msra.mxu0 0
        %1410 = vmatprep.mubr.bf16.mxu0 0
        %1411 = vmatmul.mubr.bf16.gmra.mrb[0].mxu0 %v1373
        %v1412 = vpop.f32.mrb[0].mxu0
        %v1413 = vadd.f32 0.0, %v1412
        %v1414 = vpop.f32.mrb[0].mxu0
        %v1415 = vpop.f32.mrb[0].mxu0
        %v1416 = vpop.f32.mrb[0].mxu0
        %1417 = vdwg.mxu0
        %v1418 = vmul.f32 %v1413, 0.25
        %v1419 = vsel %vm744, -1e+30, %v1418
        %v1420 = vsel %vm1081, %v1419, -inf
        %1421 = vmax.xlane.f32.xlu0 %v1420
        %v1422 = vpop.xlane.xlu0 %1421
        %v1423 = vsub.f32 %v1419, %v1422
        %v1424 = vmul.f32 %v1423, 1.442695
        %v1425 = vpow.pop %v1424
        %v1426 = vsel %vm1081, %v1425, 0.0
        %1427 = vadd.xlane.f32.xlu0 %v1426
        %v1428 = vpop.xlane.xlu0 %1427
        %v1429 = vrcp.pop %v1428
        %v1430 = vmul.f32 %v1425, %v1429
        %v1431 = vpack.c.bf16 %v1430, %v1430
        %1432 = vrot.lane.b32.xlu0 %v1031, 80
        %v1433 = vpop.permute.xlu0 %1432
        %v1435 = vsel %vm1081, %v1431, 0
        %v1438 = vsel %vm1097, %v1433, 0
        %1440 = vmatprep.subr.bf16.mxu0 0
        %1441 = vmatpush1.bf16.msra.mxu0 %v1438
        %1442 = vmatprep.subr.bf16.mxu0 0
        %1443 = vmatpush1.bf16.msra.mxu0 0
        %1444 = vmatprep.subr.bf16.mxu0 0
        %1445 = vmatpush1.bf16.msra.mxu0 0
        %1446 = vmatprep.subr.bf16.mxu0 0
        %1447 = vmatpush1.bf16.msra.mxu0 0
        %1448 = vmatprep.subr.bf16.mxu0 0
        %1449 = vmatpush1.bf16.msra.mxu0 0
        %1450 = vmatprep.subr.bf16.mxu0 0
        %1451 = vmatpush1.bf16.msra.mxu0 0
        %1452 = vmatprep.subr.bf16.mxu0 0
        %1453 = vmatpush1.bf16.msra.mxu0 0
        %1454 = vmatprep.subr.bf16.mxu0 0
        %1455 = vmatpush1.bf16.msra.mxu0 0
        %1456 = vmatprep.subr.bf16.mxu0 0
        %1457 = vmatpush1.bf16.msra.mxu0 0
        %1458 = vmatprep.subr.bf16.mxu0 0
        %1459 = vmatpush1.bf16.msra.mxu0 0
        %1460 = vmatprep.subr.bf16.mxu0 0
        %1461 = vmatpush1.bf16.msra.mxu0 0
        %1462 = vmatprep.subr.bf16.mxu0 0
        %1463 = vmatpush1.bf16.msra.mxu0 0
        %1464 = vmatprep.subr.bf16.mxu0 0
        %1465 = vmatpush1.bf16.msra.mxu0 0
        %1466 = vmatprep.subr.bf16.mxu0 0
        %1467 = vmatpush1.bf16.msra.mxu0 0
        %1468 = vmatprep.subr.bf16.mxu0 0
        %1469 = vmatpush1.bf16.msra.mxu0 0
        %1470 = vmatprep.subr.bf16.mxu0 0
        %1471 = vmatpush1.bf16.msra.mxu0 0
        %1472 = vmatprep.mubr.bf16.mxu0 0
        %1473 = vmatmul.mubr.bf16.gmra.mrb[0].mxu0 %v1435
        %v1474 = vpop.f32.mrb[0].mxu0
        %v1475 = vadd.f32 0.0, %v1474
        %v1476 = vpop.f32.mrb[0].mxu0
        %v1477 = vpop.f32.mrb[0].mxu0
        %v1478 = vpop.f32.mrb[0].mxu0
        %1479 = vdwg.mxu0
        %1480 = vrot.lane.b32.xlu0 %v1029, 64
        %v1481 = vpop.permute.xlu0 %1480
        %1482 = vrot.lane.b32.xlu0 %v1030, 64
        %v1483 = vpop.permute.xlu0 %1482
        %v1485 = vsel %vm1032, %v1481, 0
        %v1488 = vsel %vm1032, %v1483, 0
        %1490 = vmatprep.subr.bf16.mxu0 0
        %1491 = vmatpush1.bf16.xpose.msra.mxu0 %v1488
        %1492 = vmatprep.subr.bf16.mxu0 0
        %1493 = vmatpush1.bf16.xpose.msra.mxu0 0
        %1494 = vmatprep.subr.bf16.mxu0 0
        %1495 = vmatpush1.bf16.xpose.msra.mxu0 0
        %1496 = vmatprep.subr.bf16.mxu0 0
        %1497 = vmatpush1.bf16.xpose.msra.mxu0 0
        %1498 = vmatprep.subr.bf16.mxu0 0
        %1499 = vmatpush1.bf16.xpose.msra.mxu0 0
        %1500 = vmatprep.subr.bf16.mxu0 0
        %1501 = vmatpush1.bf16.xpose.msra.mxu0 0
        %1502 = vmatprep.subr.bf16.mxu0 0
        %1503 = vmatpush1.bf16.xpose.msra.mxu0 0
        %1504 = vmatprep.subr.bf16.mxu0 0
        %1505 = vmatpush1.bf16.xpose.msra.mxu0 0
        %1506 = vmatprep.subr.bf16.mxu0 0
        %1507 = vmatpush1.bf16.xpose.msra.mxu0 0
        %1508 = vmatprep.subr.bf16.mxu0 0
        %1509 = vmatpush1.bf16.xpose.msra.mxu0 0
        %1510 = vmatprep.subr.bf16.mxu0 0
        %1511 = vmatpush1.bf16.xpose.msra.mxu0 0
        %1512 = vmatprep.subr.bf16.mxu0 0
        %1513 = vmatpush1.bf16.xpose.msra.mxu0 0
        %1514 = vmatprep.subr.bf16.mxu0 0
        %1515 = vmatpush1.bf16.xpose.msra.mxu0 0
        %1516 = vmatprep.subr.bf16.mxu0 0
        %1517 = vmatpush1.bf16.xpose.msra.mxu0 0
        %1518 = vmatprep.subr.bf16.mxu0 0
        %1519 = vmatpush1.bf16.xpose.msra.mxu0 0
        %1520 = vmatprep.subr.bf16.mxu0 0
        %1521 = vmatpush1.bf16.xpose.msra.mxu0 0
        %1522 = vmatprep.mubr.bf16.mxu0 0
        %1523 = vmatmul.mubr.bf16.gmra.mrb[0].mxu0 %v1485
        %v1524 = vpop.f32.mrb[0].mxu0
        %v1525 = vadd.f32 0.0, %v1524
        %v1526 = vpop.f32.mrb[0].mxu0
        %v1527 = vpop.f32.mrb[0].mxu0
        %v1528 = vpop.f32.mrb[0].mxu0
        %1529 = vdwg.mxu0
        %v1530 = vmul.f32 %v1525, 0.25
        %v1531 = vsel %vm744, -1e+30, %v1530
        %v1532 = vsel %vm1081, %v1531, -inf
        %1533 = vmax.xlane.f32.xlu0 %v1532
        %v1534 = vpop.xlane.xlu0 %1533
        %v1535 = vsub.f32 %v1531, %v1534
        %v1536 = vmul.f32 %v1535, 1.442695
        %v1537 = vpow.pop %v1536
        %v1538 = vsel %vm1081, %v1537, 0.0
        %1539 = vadd.xlane.f32.xlu0 %v1538
        %v1540 = vpop.xlane.xlu0 %1539
        %v1541 = vrcp.pop %v1540
        %v1542 = vmul.f32 %v1537, %v1541
        %v1543 = vpack.c.bf16 %v1542, %v1542
        %1544 = vrot.lane.b32.xlu0 %v1031, 64
        %v1545 = vpop.permute.xlu0 %1544
        %v1547 = vsel %vm1081, %v1543, 0
        %v1550 = vsel %vm1097, %v1545, 0
        %1552 = vmatprep.subr.bf16.mxu0 0
        %1553 = vmatpush1.bf16.msra.mxu0 %v1550
        %1554 = vmatprep.subr.bf16.mxu0 0
        %1555 = vmatpush1.bf16.msra.mxu0 0
        %1556 = vmatprep.subr.bf16.mxu0 0
        %1557 = vmatpush1.bf16.msra.mxu0 0
        %1558 = vmatprep.subr.bf16.mxu0 0
        %1559 = vmatpush1.bf16.msra.mxu0 0
        %1560 = vmatprep.subr.bf16.mxu0 0
        %1561 = vmatpush1.bf16.msra.mxu0 0
        %1562 = vmatprep.subr.bf16.mxu0 0
        %1563 = vmatpush1.bf16.msra.mxu0 0
        %1564 = vmatprep.subr.bf16.mxu0 0
        %1565 = vmatpush1.bf16.msra.mxu0 0
        %1566 = vmatprep.subr.bf16.mxu0 0
        %1567 = vmatpush1.bf16.msra.mxu0 0
        %1568 = vmatprep.subr.bf16.mxu0 0
        %1569 = vmatpush1.bf16.msra.mxu0 0
        %1570 = vmatprep.subr.bf16.mxu0 0
        %1571 = vmatpush1.bf16.msra.mxu0 0
        %1572 = vmatprep.subr.bf16.mxu0 0
        %1573 = vmatpush1.bf16.msra.mxu0 0
        %1574 = vmatprep.subr.bf16.mxu0 0
        %1575 = vmatpush1.bf16.msra.mxu0 0
        %1576 = vmatprep.subr.bf16.mxu0 0
        %1577 = vmatpush1.bf16.msra.mxu0 0
        %1578 = vmatprep.subr.bf16.mxu0 0
        %1579 = vmatpush1.bf16.msra.mxu0 0
        %1580 = vmatprep.subr.bf16.mxu0 0
        %1581 = vmatpush1.bf16.msra.mxu0 0
        %1582 = vmatprep.subr.bf16.mxu0 0
        %1583 = vmatpush1.bf16.msra.mxu0 0
        %1584 = vmatprep.mubr.bf16.mxu0 0
        %1585 = vmatmul.mubr.bf16.gmra.mrb[0].mxu0 %v1547
        %v1586 = vpop.f32.mrb[0].mxu0
        %v1587 = vadd.f32 0.0, %v1586
        %v1588 = vpop.f32.mrb[0].mxu0
        %v1589 = vpop.f32.mrb[0].mxu0
        %v1590 = vpop.f32.mrb[0].mxu0
        %1591 = vdwg.mxu0
        %1592 = vrot.lane.b32.xlu0 %v1029, 48
        %v1593 = vpop.permute.xlu0 %1592
        %1594 = vrot.lane.b32.xlu0 %v1030, 48
        %v1595 = vpop.permute.xlu0 %1594
        %v1597 = vsel %vm1032, %v1593, 0
        %v1600 = vsel %vm1032, %v1595, 0
        %1602 = vmatprep.subr.bf16.mxu0 0
        %1603 = vmatpush1.bf16.xpose.msra.mxu0 %v1600
        %1604 = vmatprep.subr.bf16.mxu0 0
        %1605 = vmatpush1.bf16.xpose.msra.mxu0 0
        %1606 = vmatprep.subr.bf16.mxu0 0
        %1607 = vmatpush1.bf16.xpose.msra.mxu0 0
        %1608 = vmatprep.subr.bf16.mxu0 0
        %1609 = vmatpush1.bf16.xpose.msra.mxu0 0
        %1610 = vmatprep.subr.bf16.mxu0 0
        %1611 = vmatpush1.bf16.xpose.msra.mxu0 0
        %1612 = vmatprep.subr.bf16.mxu0 0
        %1613 = vmatpush1.bf16.xpose.msra.mxu0 0
        %1614 = vmatprep.subr.bf16.mxu0 0
        %1615 = vmatpush1.bf16.xpose.msra.mxu0 0
        %1616 = vmatprep.subr.bf16.mxu0 0
        %1617 = vmatpush1.bf16.xpose.msra.mxu0 0
        %1618 = vmatprep.subr.bf16.mxu0 0
        %1619 = vmatpush1.bf16.xpose.msra.mxu0 0
        %1620 = vmatprep.subr.bf16.mxu0 0
        %1621 = vmatpush1.bf16.xpose.msra.mxu0 0
        %1622 = vmatprep.subr.bf16.mxu0 0
        %1623 = vmatpush1.bf16.xpose.msra.mxu0 0
        %1624 = vmatprep.subr.bf16.mxu0 0
        %1625 = vmatpush1.bf16.xpose.msra.mxu0 0
        %1626 = vmatprep.subr.bf16.mxu0 0
        %1627 = vmatpush1.bf16.xpose.msra.mxu0 0
        %1628 = vmatprep.subr.bf16.mxu0 0
        %1629 = vmatpush1.bf16.xpose.msra.mxu0 0
        %1630 = vmatprep.subr.bf16.mxu0 0
        %1631 = vmatpush1.bf16.xpose.msra.mxu0 0
        %1632 = vmatprep.subr.bf16.mxu0 0
        %1633 = vmatpush1.bf16.xpose.msra.mxu0 0
        %1634 = vmatprep.mubr.bf16.mxu0 0
        %1635 = vmatmul.mubr.bf16.gmra.mrb[0].mxu0 %v1597
        %v1636 = vpop.f32.mrb[0].mxu0
        %v1637 = vadd.f32 0.0, %v1636
        %v1638 = vpop.f32.mrb[0].mxu0
        %v1639 = vpop.f32.mrb[0].mxu0
        %v1640 = vpop.f32.mrb[0].mxu0
        %1641 = vdwg.mxu0
        %v1642 = vmul.f32 %v1637, 0.25
        %v1643 = vsel %vm744, -1e+30, %v1642
        %v1644 = vsel %vm1081, %v1643, -inf
        %1645 = vmax.xlane.f32.xlu0 %v1644
        %v1646 = vpop.xlane.xlu0 %1645
        %v1647 = vsub.f32 %v1643, %v1646
        %v1648 = vmul.f32 %v1647, 1.442695
        %v1649 = vpow.pop %v1648
        %v1650 = vsel %vm1081, %v1649, 0.0
        %1651 = vadd.xlane.f32.xlu0 %v1650
        %v1652 = vpop.xlane.xlu0 %1651
        %v1653 = vrcp.pop %v1652
        %v1654 = vmul.f32 %v1649, %v1653
        %v1655 = vpack.c.bf16 %v1654, %v1654
        %1656 = vrot.lane.b32.xlu0 %v1031, 48
        %v1657 = vpop.permute.xlu0 %1656
        %v1659 = vsel %vm1081, %v1655, 0
        %v1662 = vsel %vm1097, %v1657, 0
        %1664 = vmatprep.subr.bf16.mxu0 0
        %1665 = vmatpush1.bf16.msra.mxu0 %v1662
        %1666 = vmatprep.subr.bf16.mxu0 0
        %1667 = vmatpush1.bf16.msra.mxu0 0
        %1668 = vmatprep.subr.bf16.mxu0 0
        %1669 = vmatpush1.bf16.msra.mxu0 0
        %1670 = vmatprep.subr.bf16.mxu0 0
        %1671 = vmatpush1.bf16.msra.mxu0 0
        %1672 = vmatprep.subr.bf16.mxu0 0
        %1673 = vmatpush1.bf16.msra.mxu0 0
        %1674 = vmatprep.subr.bf16.mxu0 0
        %1675 = vmatpush1.bf16.msra.mxu0 0
        %1676 = vmatprep.subr.bf16.mxu0 0
        %1677 = vmatpush1.bf16.msra.mxu0 0
        %1678 = vmatprep.subr.bf16.mxu0 0
        %1679 = vmatpush1.bf16.msra.mxu0 0
        %1680 = vmatprep.subr.bf16.mxu0 0
        %1681 = vmatpush1.bf16.msra.mxu0 0
        %1682 = vmatprep.subr.bf16.mxu0 0
        %1683 = vmatpush1.bf16.msra.mxu0 0
        %1684 = vmatprep.subr.bf16.mxu0 0
        %1685 = vmatpush1.bf16.msra.mxu0 0
        %1686 = vmatprep.subr.bf16.mxu0 0
        %1687 = vmatpush1.bf16.msra.mxu0 0
        %1688 = vmatprep.subr.bf16.mxu0 0
        %1689 = vmatpush1.bf16.msra.mxu0 0
        %1690 = vmatprep.subr.bf16.mxu0 0
        %1691 = vmatpush1.bf16.msra.mxu0 0
        %1692 = vmatprep.subr.bf16.mxu0 0
        %1693 = vmatpush1.bf16.msra.mxu0 0
        %1694 = vmatprep.subr.bf16.mxu0 0
        %1695 = vmatpush1.bf16.msra.mxu0 0
        %1696 = vmatprep.mubr.bf16.mxu0 0
        %1697 = vmatmul.mubr.bf16.gmra.mrb[0].mxu0 %v1659
        %v1698 = vpop.f32.mrb[0].mxu0
        %v1699 = vadd.f32 0.0, %v1698
        %v1700 = vpop.f32.mrb[0].mxu0
        %v1701 = vpop.f32.mrb[0].mxu0
        %v1702 = vpop.f32.mrb[0].mxu0
        %1703 = vdwg.mxu0
        %1704 = vrot.lane.b32.xlu0 %v1029, 32
        %v1705 = vpop.permute.xlu0 %1704
        %1706 = vrot.lane.b32.xlu0 %v1030, 32
        %v1707 = vpop.permute.xlu0 %1706
        %v1709 = vsel %vm1032, %v1705, 0
        %v1712 = vsel %vm1032, %v1707, 0
        %1714 = vmatprep.subr.bf16.mxu0 0
        %1715 = vmatpush1.bf16.xpose.msra.mxu0 %v1712
        %1716 = vmatprep.subr.bf16.mxu0 0
        %1717 = vmatpush1.bf16.xpose.msra.mxu0 0
        %1718 = vmatprep.subr.bf16.mxu0 0
        %1719 = vmatpush1.bf16.xpose.msra.mxu0 0
        %1720 = vmatprep.subr.bf16.mxu0 0
        %1721 = vmatpush1.bf16.xpose.msra.mxu0 0
        %1722 = vmatprep.subr.bf16.mxu0 0
        %1723 = vmatpush1.bf16.xpose.msra.mxu0 0
        %1724 = vmatprep.subr.bf16.mxu0 0
        %1725 = vmatpush1.bf16.xpose.msra.mxu0 0
        %1726 = vmatprep.subr.bf16.mxu0 0
        %1727 = vmatpush1.bf16.xpose.msra.mxu0 0
        %1728 = vmatprep.subr.bf16.mxu0 0
        %1729 = vmatpush1.bf16.xpose.msra.mxu0 0
        %1730 = vmatprep.subr.bf16.mxu0 0
        %1731 = vmatpush1.bf16.xpose.msra.mxu0 0
        %1732 = vmatprep.subr.bf16.mxu0 0
        %1733 = vmatpush1.bf16.xpose.msra.mxu0 0
        %1734 = vmatprep.subr.bf16.mxu0 0
        %1735 = vmatpush1.bf16.xpose.msra.mxu0 0
        %1736 = vmatprep.subr.bf16.mxu0 0
        %1737 = vmatpush1.bf16.xpose.msra.mxu0 0
        %1738 = vmatprep.subr.bf16.mxu0 0
        %1739 = vmatpush1.bf16.xpose.msra.mxu0 0
        %1740 = vmatprep.subr.bf16.mxu0 0
        %1741 = vmatpush1.bf16.xpose.msra.mxu0 0
        %1742 = vmatprep.subr.bf16.mxu0 0
        %1743 = vmatpush1.bf16.xpose.msra.mxu0 0
        %1744 = vmatprep.subr.bf16.mxu0 0
        %1745 = vmatpush1.bf16.xpose.msra.mxu0 0
        %1746 = vmatprep.mubr.bf16.mxu0 0
        %1747 = vmatmul.mubr.bf16.gmra.mrb[0].mxu0 %v1709
        %v1748 = vpop.f32.mrb[0].mxu0
        %v1749 = vadd.f32 0.0, %v1748
        %v1750 = vpop.f32.mrb[0].mxu0
        %v1751 = vpop.f32.mrb[0].mxu0
        %v1752 = vpop.f32.mrb[0].mxu0
        %1753 = vdwg.mxu0
        %v1754 = vmul.f32 %v1749, 0.25
        %v1755 = vsel %vm744, -1e+30, %v1754
        %v1756 = vsel %vm1081, %v1755, -inf
        %1757 = vmax.xlane.f32.xlu0 %v1756
        %v1758 = vpop.xlane.xlu0 %1757
        %v1759 = vsub.f32 %v1755, %v1758
        %v1760 = vmul.f32 %v1759, 1.442695
        %v1761 = vpow.pop %v1760
        %v1762 = vsel %vm1081, %v1761, 0.0
        %1763 = vadd.xlane.f32.xlu0 %v1762
        %v1764 = vpop.xlane.xlu0 %1763
        %v1765 = vrcp.pop %v1764
        %v1766 = vmul.f32 %v1761, %v1765
        %v1767 = vpack.c.bf16 %v1766, %v1766
        %1768 = vrot.lane.b32.xlu0 %v1031, 32
        %v1769 = vpop.permute.xlu0 %1768
        %v1771 = vsel %vm1081, %v1767, 0
        %v1774 = vsel %vm1097, %v1769, 0
        %1776 = vmatprep.subr.bf16.mxu0 0
        %1777 = vmatpush1.bf16.msra.mxu0 %v1774
        %1778 = vmatprep.subr.bf16.mxu0 0
        %1779 = vmatpush1.bf16.msra.mxu0 0
        %1780 = vmatprep.subr.bf16.mxu0 0
        %1781 = vmatpush1.bf16.msra.mxu0 0
        %1782 = vmatprep.subr.bf16.mxu0 0
        %1783 = vmatpush1.bf16.msra.mxu0 0
        %1784 = vmatprep.subr.bf16.mxu0 0
        %1785 = vmatpush1.bf16.msra.mxu0 0
        %1786 = vmatprep.subr.bf16.mxu0 0
        %1787 = vmatpush1.bf16.msra.mxu0 0
        %1788 = vmatprep.subr.bf16.mxu0 0
        %1789 = vmatpush1.bf16.msra.mxu0 0
        %1790 = vmatprep.subr.bf16.mxu0 0
        %1791 = vmatpush1.bf16.msra.mxu0 0
        %1792 = vmatprep.subr.bf16.mxu0 0
        %1793 = vmatpush1.bf16.msra.mxu0 0
        %1794 = vmatprep.subr.bf16.mxu0 0
        %1795 = vmatpush1.bf16.msra.mxu0 0
        %1796 = vmatprep.subr.bf16.mxu0 0
        %1797 = vmatpush1.bf16.msra.mxu0 0
        %1798 = vmatprep.subr.bf16.mxu0 0
        %1799 = vmatpush1.bf16.msra.mxu0 0
        %1800 = vmatprep.subr.bf16.mxu0 0
        %1801 = vmatpush1.bf16.msra.mxu0 0
        %1802 = vmatprep.subr.bf16.mxu0 0
        %1803 = vmatpush1.bf16.msra.mxu0 0
        %1804 = vmatprep.subr.bf16.mxu0 0
        %1805 = vmatpush1.bf16.msra.mxu0 0
        %1806 = vmatprep.subr.bf16.mxu0 0
        %1807 = vmatpush1.bf16.msra.mxu0 0
        %1808 = vmatprep.mubr.bf16.mxu0 0
        %1809 = vmatmul.mubr.bf16.gmra.mrb[0].mxu0 %v1771
        %v1810 = vpop.f32.mrb[0].mxu0
        %v1811 = vadd.f32 0.0, %v1810
        %v1812 = vpop.f32.mrb[0].mxu0
        %v1813 = vpop.f32.mrb[0].mxu0
        %v1814 = vpop.f32.mrb[0].mxu0
        %1815 = vdwg.mxu0
        %1816 = vrot.lane.b32.xlu0 %v1029, 16
        %v1817 = vpop.permute.xlu0 %1816
        %1818 = vrot.lane.b32.xlu0 %v1030, 16
        %v1819 = vpop.permute.xlu0 %1818
        %v1821 = vsel %vm1032, %v1817, 0
        %v1824 = vsel %vm1032, %v1819, 0
        %1826 = vmatprep.subr.bf16.mxu0 0
        %1827 = vmatpush1.bf16.xpose.msra.mxu0 %v1824
        %1828 = vmatprep.subr.bf16.mxu0 0
        %1829 = vmatpush1.bf16.xpose.msra.mxu0 0
        %1830 = vmatprep.subr.bf16.mxu0 0
        %1831 = vmatpush1.bf16.xpose.msra.mxu0 0
        %1832 = vmatprep.subr.bf16.mxu0 0
        %1833 = vmatpush1.bf16.xpose.msra.mxu0 0
        %1834 = vmatprep.subr.bf16.mxu0 0
        %1835 = vmatpush1.bf16.xpose.msra.mxu0 0
        %1836 = vmatprep.subr.bf16.mxu0 0
        %1837 = vmatpush1.bf16.xpose.msra.mxu0 0
        %1838 = vmatprep.subr.bf16.mxu0 0
        %1839 = vmatpush1.bf16.xpose.msra.mxu0 0
        %1840 = vmatprep.subr.bf16.mxu0 0
        %1841 = vmatpush1.bf16.xpose.msra.mxu0 0
        %1842 = vmatprep.subr.bf16.mxu0 0
        %1843 = vmatpush1.bf16.xpose.msra.mxu0 0
        %1844 = vmatprep.subr.bf16.mxu0 0
        %1845 = vmatpush1.bf16.xpose.msra.mxu0 0
        %1846 = vmatprep.subr.bf16.mxu0 0
        %1847 = vmatpush1.bf16.xpose.msra.mxu0 0
        %1848 = vmatprep.subr.bf16.mxu0 0
        %1849 = vmatpush1.bf16.xpose.msra.mxu0 0
        %1850 = vmatprep.subr.bf16.mxu0 0
        %1851 = vmatpush1.bf16.xpose.msra.mxu0 0
        %1852 = vmatprep.subr.bf16.mxu0 0
        %1853 = vmatpush1.bf16.xpose.msra.mxu0 0
        %1854 = vmatprep.subr.bf16.mxu0 0
        %1855 = vmatpush1.bf16.xpose.msra.mxu0 0
        %1856 = vmatprep.subr.bf16.mxu0 0
        %1857 = vmatpush1.bf16.xpose.msra.mxu0 0
        %1858 = vmatprep.mubr.bf16.mxu0 0
        %1859 = vmatmul.mubr.bf16.gmra.mrb[0].mxu0 %v1821
        %v1860 = vpop.f32.mrb[0].mxu0
        %v1861 = vadd.f32 0.0, %v1860
        %v1862 = vpop.f32.mrb[0].mxu0
        %v1863 = vpop.f32.mrb[0].mxu0
        %v1864 = vpop.f32.mrb[0].mxu0
        %1865 = vdwg.mxu0
        %v1866 = vmul.f32 %v1861, 0.25
        %v1867 = vsel %vm744, -1e+30, %v1866
        %v1868 = vsel %vm1081, %v1867, -inf
        %1869 = vmax.xlane.f32.xlu0 %v1868
        %v1870 = vpop.xlane.xlu0 %1869
        %v1871 = vsub.f32 %v1867, %v1870
        %v1872 = vmul.f32 %v1871, 1.442695
        %v1873 = vpow.pop %v1872
        %v1874 = vsel %vm1081, %v1873, 0.0
        %1875 = vadd.xlane.f32.xlu0 %v1874
        %v1876 = vpop.xlane.xlu0 %1875
        %v1877 = vrcp.pop %v1876
        %v1878 = vmul.f32 %v1873, %v1877
        %v1879 = vpack.c.bf16 %v1878, %v1878
        %1880 = vrot.lane.b32.xlu0 %v1031, 16
        %v1881 = vpop.permute.xlu0 %1880
        %v1883 = vsel %vm1081, %v1879, 0
        %v1886 = vsel %vm1097, %v1881, 0
        %1888 = vmatprep.subr.bf16.mxu0 0
        %1889 = vmatpush1.bf16.msra.mxu0 %v1886
        %1890 = vmatprep.subr.bf16.mxu0 0
        %1891 = vmatpush1.bf16.msra.mxu0 0
        %1892 = vmatprep.subr.bf16.mxu0 0
        %1893 = vmatpush1.bf16.msra.mxu0 0
        %1894 = vmatprep.subr.bf16.mxu0 0
        %1895 = vmatpush1.bf16.msra.mxu0 0
        %1896 = vmatprep.subr.bf16.mxu0 0
        %1897 = vmatpush1.bf16.msra.mxu0 0
        %1898 = vmatprep.subr.bf16.mxu0 0
        %1899 = vmatpush1.bf16.msra.mxu0 0
        %1900 = vmatprep.subr.bf16.mxu0 0
        %1901 = vmatpush1.bf16.msra.mxu0 0
        %1902 = vmatprep.subr.bf16.mxu0 0
        %1903 = vmatpush1.bf16.msra.mxu0 0
        %1904 = vmatprep.subr.bf16.mxu0 0
        %1905 = vmatpush1.bf16.msra.mxu0 0
        %1906 = vmatprep.subr.bf16.mxu0 0
        %1907 = vmatpush1.bf16.msra.mxu0 0
        %1908 = vmatprep.subr.bf16.mxu0 0
        %1909 = vmatpush1.bf16.msra.mxu0 0
        %1910 = vmatprep.subr.bf16.mxu0 0
        %1911 = vmatpush1.bf16.msra.mxu0 0
        %1912 = vmatprep.subr.bf16.mxu0 0
        %1913 = vmatpush1.bf16.msra.mxu0 0
        %1914 = vmatprep.subr.bf16.mxu0 0
        %1915 = vmatpush1.bf16.msra.mxu0 0
        %1916 = vmatprep.subr.bf16.mxu0 0
        %1917 = vmatpush1.bf16.msra.mxu0 0
        %1918 = vmatprep.subr.bf16.mxu0 0
        %1919 = vmatpush1.bf16.msra.mxu0 0
        %1920 = vmatprep.mubr.bf16.mxu0 0
        %1921 = vmatmul.mubr.bf16.gmra.mrb[0].mxu0 %v1883
        %v1922 = vpop.f32.mrb[0].mxu0
        %v1923 = vadd.f32 0.0, %v1922
        %v1924 = vpop.f32.mrb[0].mxu0
        %v1925 = vpop.f32.mrb[0].mxu0
        %v1926 = vpop.f32.mrb[0].mxu0
        %1927 = vdwg.mxu0
        %1929 = vrot.lane.b32.xlu0 %v1251, 16
        %v1930 = vpop.permute.xlu0 %1929
        %1933 = vrot.lane.b32.xlu0 %v1363, 32
        %v1934 = vpop.permute.xlu0 %1933
        %1937 = vrot.lane.b32.xlu0 %v1475, 48
        %v1938 = vpop.permute.xlu0 %1937
        %1941 = vrot.lane.b32.xlu0 %v1587, 64
        %v1942 = vpop.permute.xlu0 %1941
        %1945 = vrot.lane.b32.xlu0 %v1699, 80
        %v1946 = vpop.permute.xlu0 %1945
        %1949 = vrot.lane.b32.xlu0 %v1811, 96
        %v1950 = vpop.permute.xlu0 %1949
        %1953 = vrot.lane.b32.xlu0 %v1923, 112
        %v1954 = vpop.permute.xlu0 %1953
        %v1956 = vsel %vm1032, %v1136, %v1930
        %vm1957 = vcmask 261120
        %v1958 = vsel %vm1957, %v1956, %v1934
        %vm1959 = vcmask 392192
        %v1960 = vsel %vm1959, %v1958, %v1938
        %vm1961 = vcmask 523264
        %v1962 = vsel %vm1961, %v1960, %v1942
        %vm1963 = vcmask 654336
        %v1964 = vsel %vm1963, %v1962, %v1946
        %vm1965 = vcmask 785408
        %v1966 = vsel %vm1965, %v1964, %v1950
        %vm1967 = vcmask 916480
        %v1968 = vsel %vm1967, %v1966, %v1954
        %v1969 = vld [vmem:[#allocation10] sm:$0xf]
        %v1970 = vld [vmem:[#allocation10 + $0x4] sm:$0xf]
        %v1971 = vld [vmem:[#allocation10 + $0x8] sm:$0xf]
        %v1972 = vld [vmem:[#allocation10 + $0xc] sm:$0xf]
        %v1973 = vld [vmem:[#allocation10 + $0x10] sm:$0xf]
        %v1974 = vld [vmem:[#allocation10 + $0x14] sm:$0xf]
        %v1975 = vld [vmem:[#allocation10 + $0x18] sm:$0xf]
        %v1976 = vld [vmem:[#allocation10 + $0x1c] sm:$0xf]
        %v1977 = vld [vmem:[#allocation10 + $0x20] sm:$0xf]
        %v1978 = vld [vmem:[#allocation10 + $0x24] sm:$0xf]
        %v1979 = vld [vmem:[#allocation10 + $0x28] sm:$0xf]
        %v1980 = vld [vmem:[#allocation10 + $0x2c] sm:$0xf]
        %v1981 = vld [vmem:[#allocation10 + $0x30] sm:$0xf]
        %v1982 = vld [vmem:[#allocation10 + $0x34] sm:$0xf]
        %v1983 = vld [vmem:[#allocation10 + $0x38] sm:$0xf]
        %v1984 = vld [vmem:[#allocation10 + $0x3c] sm:$0xf]
        %v1985 = vpack.c.bf16 %v1968, %v1968
        %v1986 = vld [vmem:[#allocation11] sm:$0x1]
        %v1987 = vlaneseq
        %v1988 = vshrl.u32 %v1987, 7
        %v1989 = vsub.s32 0, %v1988
        %v1990 = vrot.slane %v1986, %v1989
        %v2007 = vunpack.c.l.b16 %v1969
        %v2008 = vunpack.c.l.b16 %v1970
        %v2009 = vunpack.c.l.b16 %v1971
        %v2010 = vunpack.c.l.b16 %v1972
        %v2011 = vunpack.c.l.b16 %v1973
        %v2012 = vunpack.c.l.b16 %v1974
        %v2013 = vunpack.c.l.b16 %v1975
        %v2014 = vunpack.c.l.b16 %v1976
        %v2015 = vunpack.c.l.b16 %v1977
        %v2016 = vunpack.c.l.b16 %v1978
        %v2017 = vunpack.c.l.b16 %v1979
        %v2018 = vunpack.c.l.b16 %v1980
        %v2019 = vunpack.c.l.b16 %v1981
        %v2020 = vunpack.c.l.b16 %v1982
        %v2021 = vunpack.c.l.b16 %v1983
        %v2022 = vunpack.c.l.b16 %v1984
        %v2023 = vpack.c.b16 %v2008, %v2007
        %v2024 = vpack.c.b16 %v2010, %v2009
        %v2025 = vpack.c.b16 %v2012, %v2011
        %v2026 = vpack.c.b16 %v2014, %v2013
        %v2027 = vpack.c.b16 %v2016, %v2015
        %v2028 = vpack.c.b16 %v2018, %v2017
        %v2029 = vpack.c.b16 %v2020, %v2019
        %v2030 = vpack.c.b16 %v2022, %v2021
        %2039 = vmatprep.subr.bf16.mxu0 0
        %2040 = vmatpush1.bf16.msra.mxu0 %v2023
        %2041 = vmatprep.subr.bf16.mxu0 0
        %2042 = vmatpush1.bf16.msra.mxu0 %v2024
        %2043 = vmatprep.subr.bf16.mxu0 0
        %2044 = vmatpush1.bf16.msra.mxu0 %v2025
        %2045 = vmatprep.subr.bf16.mxu0 0
        %2046 = vmatpush1.bf16.msra.mxu0 %v2026
        %2047 = vmatprep.subr.bf16.mxu0 0
        %2048 = vmatpush1.bf16.msra.mxu0 %v2027
        %2049 = vmatprep.subr.bf16.mxu0 0
        %2050 = vmatpush1.bf16.msra.mxu0 %v2028
        %2051 = vmatprep.subr.bf16.mxu0 0
        %2052 = vmatpush1.bf16.msra.mxu0 %v2029
        %2053 = vmatprep.subr.bf16.mxu0 0
        %2054 = vmatpush1.bf16.msra.mxu0 %v2030
        %2055 = vmatprep.subr.bf16.mxu0 0
        %2056 = vmatpush1.bf16.msra.mxu0 0
        %2057 = vmatprep.subr.bf16.mxu0 0
        %2058 = vmatpush1.bf16.msra.mxu0 0
        %2059 = vmatprep.subr.bf16.mxu0 0
        %2060 = vmatpush1.bf16.msra.mxu0 0
        %2061 = vmatprep.subr.bf16.mxu0 0
        %2062 = vmatpush1.bf16.msra.mxu0 0
        %2063 = vmatprep.subr.bf16.mxu0 0
        %2064 = vmatpush1.bf16.msra.mxu0 0
        %2065 = vmatprep.subr.bf16.mxu0 0
        %2066 = vmatpush1.bf16.msra.mxu0 0
        %2067 = vmatprep.subr.bf16.mxu0 0
        %2068 = vmatpush1.bf16.msra.mxu0 0
        %2069 = vmatprep.subr.bf16.mxu0 0
        %2070 = vmatpush1.bf16.msra.mxu0 0
        %2071 = vmatprep.mubr.bf16.mxu0 0
        %2072 = vmatmul.mubr.bf16.gmra.mrb[0].mxu0 %v1985
        %v2073 = vpop.f32.mrb[0].mxu0
        %v2074 = vadd.f32 %v1990, %v2073
        %v2075 = vpop.f32.mrb[0].mxu0
        %v2076 = vpop.f32.mrb[0].mxu0
        %v2077 = vpop.f32.mrb[0].mxu0
        %2078 = vdwg.mxu0
        %v2079 = vadd.f32 %v768, %v2074
        %v2080 = vld [vmem:[#allocation13] sm:$0x1]
        %v2081 = vld [vmem:[#allocation14] sm:$0x1]
        %2082 = vadd.xlane.f32.xlu0 %v2079
        %v2083 = vpop.xlane.xlu0 %2082
        %v2084 = vmul.f32 %v2083, %v749
        %v2085 = vsub.f32 %v2079, %v2084
        %v2086 = vmul.f32 %v2085, %v2085
        %2087 = vadd.xlane.f32.xlu0 %v2086
        %v2088 = vpop.xlane.xlu0 %2087
        %v2089 = vmul.f32 %v2088, %v749
        %v2090 = vadd.f32 %v2089, 1e-08
        %v2091 = vrsqrt.pop %v2090
        %v2092 = vmul.f32 %v2085, %v2091
        %v2093 = vlaneseq
        %v2094 = vshrl.u32 %v2093, 7
        %v2095 = vsub.s32 0, %v2094
        %v2096 = vrot.slane %v2080, %v2095
        %v2097 = vmul.f32 %v2092, %v2096
        %v2098 = vlaneseq
        %v2099 = vshrl.u32 %v2098, 7
        %v2100 = vsub.s32 0, %v2099
        %v2101 = vrot.slane %v2081, %v2100
        %v2102 = vadd.f32 %v2097, %v2101
        %v2103 = vld [vmem:[#allocation16] sm:$0xf]
        %v2104 = vld [vmem:[#allocation16 + $0x4] sm:$0xf]
        %v2105 = vld [vmem:[#allocation16 + $0x8] sm:$0xf]
        %v2106 = vld [vmem:[#allocation16 + $0xc] sm:$0xf]
        %v2107 = vld [vmem:[#allocation16 + $0x10] sm:$0xf]
        %v2108 = vld [vmem:[#allocation16 + $0x14] sm:$0xf]
        %v2109 = vld [vmem:[#allocation16 + $0x18] sm:$0xf]
        %v2110 = vld [vmem:[#allocation16 + $0x1c] sm:$0xf]
        %v2111 = vld [vmem:[#allocation16 + $0x20] sm:$0xf]
        %v2112 = vld [vmem:[#allocation16 + $0x24] sm:$0xf]
        %v2113 = vld [vmem:[#allocation16 + $0x28] sm:$0xf]
        %v2114 = vld [vmem:[#allocation16 + $0x2c] sm:$0xf]
        %v2115 = vld [vmem:[#allocation16 + $0x30] sm:$0xf]
        %v2116 = vld [vmem:[#allocation16 + $0x34] sm:$0xf]
        %v2117 = vld [vmem:[#allocation16 + $0x38] sm:$0xf]
        %v2118 = vld [vmem:[#allocation16 + $0x3c] sm:$0xf]
        %v2119 = vpack.c.bf16 %v2102, %v2102
        %v2120 = vld [vmem:[#allocation17] sm:$0x1]
        %v2121 = vlaneseq
        %v2122 = vshrl.u32 %v2121, 7
        %v2123 = vsub.s32 0, %v2122
        %v2124 = vrot.slane %v2120, %v2123
        %v2141 = vunpack.c.l.b16 %v2103
        %v2142 = vunpack.c.l.b16 %v2104
        %v2143 = vunpack.c.l.b16 %v2105
        %v2144 = vunpack.c.l.b16 %v2106
        %v2145 = vunpack.c.l.b16 %v2107
        %v2146 = vunpack.c.l.b16 %v2108
        %v2147 = vunpack.c.l.b16 %v2109
        %v2148 = vunpack.c.l.b16 %v2110
        %v2149 = vunpack.c.l.b16 %v2111
        %v2150 = vunpack.c.l.b16 %v2112
        %v2151 = vunpack.c.l.b16 %v2113
        %v2152 = vunpack.c.l.b16 %v2114
        %v2153 = vunpack.c.l.b16 %v2115
        %v2154 = vunpack.c.l.b16 %v2116
        %v2155 = vunpack.c.l.b16 %v2117
        %v2156 = vunpack.c.l.b16 %v2118
        %v2157 = vpack.c.b16 %v2142, %v2141
        %v2158 = vpack.c.b16 %v2144, %v2143
        %v2159 = vpack.c.b16 %v2146, %v2145
        %v2160 = vpack.c.b16 %v2148, %v2147
        %v2161 = vpack.c.b16 %v2150, %v2149
        %v2162 = vpack.c.b16 %v2152, %v2151
        %v2163 = vpack.c.b16 %v2154, %v2153
        %v2164 = vpack.c.b16 %v2156, %v2155
        %2173 = vmatprep.subr.bf16.mxu0 0
        %2174 = vmatpush1.bf16.msra.mxu0 %v2157
        %2175 = vmatprep.subr.bf16.mxu0 0
        %2176 = vmatpush1.bf16.msra.mxu0 %v2158
        %2177 = vmatprep.subr.bf16.mxu0 0
        %2178 = vmatpush1.bf16.msra.mxu0 %v2159
        %2179 = vmatprep.subr.bf16.mxu0 0
        %2180 = vmatpush1.bf16.msra.mxu0 %v2160
        %2181 = vmatprep.subr.bf16.mxu0 0
        %2182 = vmatpush1.bf16.msra.mxu0 %v2161
        %2183 = vmatprep.subr.bf16.mxu0 0
        %2184 = vmatpush1.bf16.msra.mxu0 %v2162
        %2185 = vmatprep.subr.bf16.mxu0 0
        %2186 = vmatpush1.bf16.msra.mxu0 %v2163
        %2187 = vmatprep.subr.bf16.mxu0 0
        %2188 = vmatpush1.bf16.msra.mxu0 %v2164
        %2189 = vmatprep.subr.bf16.mxu0 0
        %2190 = vmatpush1.bf16.msra.mxu0 0
        %2191 = vmatprep.subr.bf16.mxu0 0
        %2192 = vmatpush1.bf16.msra.mxu0 0
        %2193 = vmatprep.subr.bf16.mxu0 0
        %2194 = vmatpush1.bf16.msra.mxu0 0
        %2195 = vmatprep.subr.bf16.mxu0 0
        %2196 = vmatpush1.bf16.msra.mxu0 0
        %2197 = vmatprep.subr.bf16.mxu0 0
        %2198 = vmatpush1.bf16.msra.mxu0 0
        %2199 = vmatprep.subr.bf16.mxu0 0
        %2200 = vmatpush1.bf16.msra.mxu0 0
        %2201 = vmatprep.subr.bf16.mxu0 0
        %2202 = vmatpush1.bf16.msra.mxu0 0
        %2203 = vmatprep.subr.bf16.mxu0 0
        %2204 = vmatpush1.bf16.msra.mxu0 0
        %2205 = vmatprep.mubr.bf16.mxu0 0
        %2206 = vmatmul.mubr.bf16.gmra.mrb[0].mxu0 %v2119
        %v2207 = vpop.f32.mrb[0].mxu0
        %v2208 = vadd.f32 %v2124, %v2207
        %v2209 = vpop.f32.mrb[0].mxu0
        %v2210 = vpop.f32.mrb[0].mxu0
        %v2211 = vpop.f32.mrb[0].mxu0
        %2212 = vdwg.mxu0
        %v2213 = vmax.f32 %v2208, 0.0
        %v2214 = vld [vmem:[#allocation19] sm:$0xf]
        %v2215 = vld [vmem:[#allocation19 + $0x4] sm:$0xf]
        %v2216 = vld [vmem:[#allocation19 + $0x8] sm:$0xf]
        %v2217 = vld [vmem:[#allocation19 + $0xc] sm:$0xf]
        %v2218 = vld [vmem:[#allocation19 + $0x10] sm:$0xf]
        %v2219 = vld [vmem:[#allocation19 + $0x14] sm:$0xf]
        %v2220 = vld [vmem:[#allocation19 + $0x18] sm:$0xf]
        %v2221 = vld [vmem:[#allocation19 + $0x1c] sm:$0xf]
        %v2222 = vld [vmem:[#allocation19 + $0x20] sm:$0xf]
        %v2223 = vld [vmem:[#allocation19 + $0x24] sm:$0xf]
        %v2224 = vld [vmem:[#allocation19 + $0x28] sm:$0xf]
        %v2225 = vld [vmem:[#allocation19 + $0x2c] sm:$0xf]
        %v2226 = vld [vmem:[#allocation19 + $0x30] sm:$0xf]
        %v2227 = vld [vmem:[#allocation19 + $0x34] sm:$0xf]
        %v2228 = vld [vmem:[#allocation19 + $0x38] sm:$0xf]
        %v2229 = vld [vmem:[#allocation19 + $0x3c] sm:$0xf]
        %v2230 = vpack.c.bf16 %v2213, %v2213
        %v2231 = vld [vmem:[#allocation20] sm:$0x1]
        %v2232 = vlaneseq
        %v2233 = vshrl.u32 %v2232, 7
        %v2234 = vsub.s32 0, %v2233
        %v2235 = vrot.slane %v2231, %v2234
        %v2252 = vunpack.c.l.b16 %v2214
        %v2253 = vunpack.c.l.b16 %v2215
        %v2254 = vunpack.c.l.b16 %v2216
        %v2255 = vunpack.c.l.b16 %v2217
        %v2256 = vunpack.c.l.b16 %v2218
        %v2257 = vunpack.c.l.b16 %v2219
        %v2258 = vunpack.c.l.b16 %v2220
        %v2259 = vunpack.c.l.b16 %v2221
        %v2260 = vunpack.c.l.b16 %v2222
        %v2261 = vunpack.c.l.b16 %v2223
        %v2262 = vunpack.c.l.b16 %v2224
        %v2263 = vunpack.c.l.b16 %v2225
        %v2264 = vunpack.c.l.b16 %v2226
        %v2265 = vunpack.c.l.b16 %v2227
        %v2266 = vunpack.c.l.b16 %v2228
        %v2267 = vunpack.c.l.b16 %v2229
        %v2268 = vpack.c.b16 %v2253, %v2252
        %v2269 = vpack.c.b16 %v2255, %v2254
        %v2270 = vpack.c.b16 %v2257, %v2256
        %v2271 = vpack.c.b16 %v2259, %v2258
        %v2272 = vpack.c.b16 %v2261, %v2260
        %v2273 = vpack.c.b16 %v2263, %v2262
        %v2274 = vpack.c.b16 %v2265, %v2264
        %v2275 = vpack.c.b16 %v2267, %v2266
        %2284 = vmatprep.subr.bf16.mxu0 0
        %2285 = vmatpush1.bf16.msra.mxu0 %v2268
        %2286 = vmatprep.subr.bf16.mxu0 0
        %2287 = vmatpush1.bf16.msra.mxu0 %v2269
        %2288 = vmatprep.subr.bf16.mxu0 0
        %2289 = vmatpush1.bf16.msra.mxu0 %v2270
        %2290 = vmatprep.subr.bf16.mxu0 0
        %2291 = vmatpush1.bf16.msra.mxu0 %v2271
        %2292 = vmatprep.subr.bf16.mxu0 0
        %2293 = vmatpush1.bf16.msra.mxu0 %v2272
        %2294 = vmatprep.subr.bf16.mxu0 0
        %2295 = vmatpush1.bf16.msra.mxu0 %v2273
        %2296 = vmatprep.subr.bf16.mxu0 0
        %2297 = vmatpush1.bf16.msra.mxu0 %v2274
        %2298 = vmatprep.subr.bf16.mxu0 0
        %2299 = vmatpush1.bf16.msra.mxu0 %v2275
        %2300 = vmatprep.subr.bf16.mxu0 0
        %2301 = vmatpush1.bf16.msra.mxu0 0
        %2302 = vmatprep.subr.bf16.mxu0 0
        %2303 = vmatpush1.bf16.msra.mxu0 0
        %2304 = vmatprep.subr.bf16.mxu0 0
        %2305 = vmatpush1.bf16.msra.mxu0 0
        %2306 = vmatprep.subr.bf16.mxu0 0
        %2307 = vmatpush1.bf16.msra.mxu0 0
        %2308 = vmatprep.subr.bf16.mxu0 0
        %2309 = vmatpush1.bf16.msra.mxu0 0
        %2310 = vmatprep.subr.bf16.mxu0 0
        %2311 = vmatpush1.bf16.msra.mxu0 0
        %2312 = vmatprep.subr.bf16.mxu0 0
        %2313 = vmatpush1.bf16.msra.mxu0 0
        %2314 = vmatprep.subr.bf16.mxu0 0
        %2315 = vmatpush1.bf16.msra.mxu0 0
        %2316 = vmatprep.mubr.bf16.mxu0 0
        %2317 = vmatmul.mubr.bf16.gmra.mrb[0].mxu0 %v2230
        %v2318 = vpop.f32.mrb[0].mxu0
        %v2319 = vadd.f32 %v2235, %v2318
        %v2320 = vpop.f32.mrb[0].mxu0
        %v2321 = vpop.f32.mrb[0].mxu0
        %v2322 = vpop.f32.mrb[0].mxu0
        %2323 = vdwg.mxu0
        %v2324 = vadd.f32 %v2319, %v2102
        %v2325 = vmul.f32 %v2324, %v738
        %v2326 = vld [vmem:[%s2 + $0x1] sm:$0x1]
        %v2327 = vld [vmem:[#allocation2 + $0x1] sm:$0x1]
        %2328 = vadd.xlane.f32.xlu0 %v2325
        %v2329 = vpop.xlane.xlu0 %2328
        %v2330 = vmul.f32 %v2329, %v749
        %v2331 = vsub.f32 %v2325, %v2330
        %v2332 = vmul.f32 %v2331, %v2331
        %2333 = vadd.xlane.f32.xlu0 %v2332
        %v2334 = vpop.xlane.xlu0 %2333
        %v2335 = vmul.f32 %v2334, %v749
        %v2336 = vadd.f32 %v2335, 1e-08
        %v2337 = vrsqrt.pop %v2336
        %v2338 = vmul.f32 %v2331, %v2337
        %v2339 = vlaneseq
        %v2340 = vshrl.u32 %v2339, 7
        %v2341 = vsub.s32 0, %v2340
        %v2342 = vrot.slane %v2326, %v2341
        %v2343 = vmul.f32 %v2338, %v2342
        %v2344 = vlaneseq
        %v2345 = vshrl.u32 %v2344, 7
        %v2346 = vsub.s32 0, %v2345
        %v2347 = vrot.slane %v2327, %v2346
        %v2348 = vadd.f32 %v2343, %v2347
        %s2349 = scalar_lea.vmem [#allocation5], 64
        %v2350 = vld [vmem:[%s2349] sm:$0xf]
        %v2351 = vld [vmem:[%s2349 + $0x4] sm:$0xf]
        %v2352 = vld [vmem:[%s2349 + $0x8] sm:$0xf]
        %v2353 = vld [vmem:[%s2349 + $0xc] sm:$0xf]
        %v2354 = vld [vmem:[%s2349 + $0x10] sm:$0xf]
        %v2355 = vld [vmem:[%s2349 + $0x14] sm:$0xf]
        %v2356 = vld [vmem:[%s2349 + $0x18] sm:$0xf]
        %v2357 = vld [vmem:[%s2349 + $0x1c] sm:$0xf]
        %v2358 = vld [vmem:[%s2349 + $0x20] sm:$0xf]
        %v2359 = vld [vmem:[%s2349 + $0x24] sm:$0xf]
        %v2360 = vld [vmem:[%s2349 + $0x28] sm:$0xf]
        %v2361 = vld [vmem:[%s2349 + $0x2c] sm:$0xf]
        %v2362 = vld [vmem:[%s2349 + $0x30] sm:$0xf]
        %v2363 = vld [vmem:[%s2349 + $0x34] sm:$0xf]
        %v2364 = vld [vmem:[%s2349 + $0x38] sm:$0xf]
        %v2365 = vld [vmem:[%s2349 + $0x3c] sm:$0xf]
        %v2366 = vpack.c.bf16 %v2348, %v2348
        %v2367 = vld [vmem:[#allocation7 + $0x1] sm:$0x1]
        %v2368 = vlaneseq
        %v2369 = vshrl.u32 %v2368, 7
        %v2370 = vsub.s32 0, %v2369
        %v2371 = vrot.slane %v2367, %v2370
        %v2388 = vunpack.c.l.b16 %v2350
        %v2389 = vunpack.c.l.b16 %v2351
        %v2390 = vunpack.c.l.b16 %v2352
        %v2391 = vunpack.c.l.b16 %v2353
        %v2392 = vunpack.c.l.b16 %v2354
        %v2393 = vunpack.c.l.b16 %v2355
        %v2394 = vunpack.c.l.b16 %v2356
        %v2395 = vunpack.c.l.b16 %v2357
        %v2396 = vunpack.c.l.b16 %v2358
        %v2397 = vunpack.c.l.b16 %v2359
        %v2398 = vunpack.c.l.b16 %v2360
        %v2399 = vunpack.c.l.b16 %v2361
        %v2400 = vunpack.c.l.b16 %v2362
        %v2401 = vunpack.c.l.b16 %v2363
        %v2402 = vunpack.c.l.b16 %v2364
        %v2403 = vunpack.c.l.b16 %v2365
        %v2404 = vpack.c.b16 %v2389, %v2388
        %v2405 = vpack.c.b16 %v2391, %v2390
        %v2406 = vpack.c.b16 %v2393, %v2392
        %v2407 = vpack.c.b16 %v2395, %v2394
        %v2408 = vpack.c.b16 %v2397, %v2396
        %v2409 = vpack.c.b16 %v2399, %v2398
        %v2410 = vpack.c.b16 %v2401, %v2400
        %v2411 = vpack.c.b16 %v2403, %v2402
        %2420 = vmatprep.subr.bf16.mxu0 0
        %2421 = vmatpush1.bf16.msra.mxu0 %v2404
        %2422 = vmatprep.subr.bf16.mxu0 0
        %2423 = vmatpush1.bf16.msra.mxu0 %v2405
        %2424 = vmatprep.subr.bf16.mxu0 0
        %2425 = vmatpush1.bf16.msra.mxu0 %v2406
        %2426 = vmatprep.subr.bf16.mxu0 0
        %2427 = vmatpush1.bf16.msra.mxu0 %v2407
        %2428 = vmatprep.subr.bf16.mxu0 0
        %2429 = vmatpush1.bf16.msra.mxu0 %v2408
        %2430 = vmatprep.subr.bf16.mxu0 0
        %2431 = vmatpush1.bf16.msra.mxu0 %v2409
        %2432 = vmatprep.subr.bf16.mxu0 0
        %2433 = vmatpush1.bf16.msra.mxu0 %v2410
        %2434 = vmatprep.subr.bf16.mxu0 0
        %2435 = vmatpush1.bf16.msra.mxu0 %v2411
        %2436 = vmatprep.subr.bf16.mxu0 0
        %2437 = vmatpush1.bf16.msra.mxu0 0
        %2438 = vmatprep.subr.bf16.mxu0 0
        %2439 = vmatpush1.bf16.msra.mxu0 0
        %2440 = vmatprep.subr.bf16.mxu0 0
        %2441 = vmatpush1.bf16.msra.mxu0 0
        %2442 = vmatprep.subr.bf16.mxu0 0
        %2443 = vmatpush1.bf16.msra.mxu0 0
        %2444 = vmatprep.subr.bf16.mxu0 0
        %2445 = vmatpush1.bf16.msra.mxu0 0
        %2446 = vmatprep.subr.bf16.mxu0 0
        %2447 = vmatpush1.bf16.msra.mxu0 0
        %2448 = vmatprep.subr.bf16.mxu0 0
        %2449 = vmatpush1.bf16.msra.mxu0 0
        %2450 = vmatprep.subr.bf16.mxu0 0
        %2451 = vmatpush1.bf16.msra.mxu0 0
        %2452 = vmatprep.mubr.bf16.mxu0 0
        %2453 = vmatmul.mubr.bf16.gmra.mrb[0].mxu0 %v2366
        %v2454 = vpop.f32.mrb[0].mxu0
        %v2455 = vadd.f32 %v2371, %v2454
        %v2456 = vpop.f32.mrb[0].mxu0
        %v2457 = vpop.f32.mrb[0].mxu0
        %v2458 = vpop.f32.mrb[0].mxu0
        %2459 = vdwg.mxu0
        %s2460 = scalar_lea.vmem [#allocation8], 128
        %v2461 = vld [vmem:[%s2460] sm:$0xff]
        %v2462 = vld [vmem:[%s2460 + $0x8] sm:$0xff]
        %v2463 = vld [vmem:[%s2460 + $0x10] sm:$0xff]
        %v2464 = vld [vmem:[%s2460 + $0x18] sm:$0xff]
        %v2465 = vld [vmem:[%s2460 + $0x20] sm:$0xff]
        %v2466 = vld [vmem:[%s2460 + $0x28] sm:$0xff]
        %v2467 = vld [vmem:[%s2460 + $0x30] sm:$0xff]
        %v2468 = vld [vmem:[%s2460 + $0x38] sm:$0xff]
        %v2469 = vld [vmem:[%s2460 + $0x40] sm:$0xff]
        %v2470 = vld [vmem:[%s2460 + $0x48] sm:$0xff]
        %v2471 = vld [vmem:[%s2460 + $0x50] sm:$0xff]
        %v2472 = vld [vmem:[%s2460 + $0x58] sm:$0xff]
        %v2473 = vld [vmem:[%s2460 + $0x60] sm:$0xff]
        %v2474 = vld [vmem:[%s2460 + $0x68] sm:$0xff]
        %v2475 = vld [vmem:[%s2460 + $0x70] sm:$0xff]
        %v2476 = vld [vmem:[%s2460 + $0x78] sm:$0xff]
        %v2477 = vpack.c.bf16 %v2325, %v2325
        %s2478 = scalar_lea.vmem %s7, 1
        %v2479 = vld [vmem:[%s2478] ss:$2 sm:$0x3]
        %v2481 = vlaneseq
        %v2482 = vshrl.u32 %v2481, 7
        %v2483 = vsub.s32 0, %v2482
        %v2484 = vrot.slane %v2479, %v2483
        %v2485 = vlaneseq
        %v2486 = vshrl.u32 %v2485, 7
        %v2487 = vsub.s32 1, %v2486
        %v2488 = vrot.slane %v2479, %v2487
        %v2507 = vunpack.c.l.b16 %v2461
        %v2508 = vunpack.c.h.b16 %v2461
        %v2509 = vunpack.c.l.b16 %v2462
        %v2510 = vunpack.c.h.b16 %v2462
        %v2511 = vunpack.c.l.b16 %v2463
        %v2512 = vunpack.c.h.b16 %v2463
        %v2513 = vunpack.c.l.b16 %v2464
        %v2514 = vunpack.c.h.b16 %v2464
        %v2515 = vunpack.c.l.b16 %v2465
        %v2516 = vunpack.c.h.b16 %v2465
        %v2517 = vunpack.c.l.b16 %v2466
        %v2518 = vunpack.c.h.b16 %v2466
        %v2519 = vunpack.c.l.b16 %v2467
        %v2520 = vunpack.c.h.b16 %v2467
        %v2521 = vunpack.c.l.b16 %v2468
        %v2522 = vunpack.c.h.b16 %v2468
        %v2523 = vunpack.c.l.b16 %v2469
        %v2524 = vunpack.c.h.b16 %v2469
        %v2525 = vunpack.c.l.b16 %v2470
        %v2526 = vunpack.c.h.b16 %v2470
        %v2527 = vunpack.c.l.b16 %v2471
        %v2528 = vunpack.c.h.b16 %v2471
        %v2529 = vunpack.c.l.b16 %v2472
        %v2530 = vunpack.c.h.b16 %v2472
        %v2531 = vunpack.c.l.b16 %v2473
        %v2532 = vunpack.c.h.b16 %v2473
        %v2533 = vunpack.c.l.b16 %v2474
        %v2534 = vunpack.c.h.b16 %v2474
        %v2535 = vunpack.c.l.b16 %v2475
        %v2536 = vunpack.c.h.b16 %v2475
        %v2537 = vunpack.c.l.b16 %v2476
        %v2538 = vunpack.c.h.b16 %v2476
        %v2539 = vpack.c.b16 %v2509, %v2507
        %v2540 = vpack.c.b16 %v2510, %v2508
        %v2541 = vpack.c.b16 %v2513, %v2511
        %v2542 = vpack.c.b16 %v2514, %v2512
        %v2543 = vpack.c.b16 %v2517, %v2515
        %v2544 = vpack.c.b16 %v2518, %v2516
        %v2545 = vpack.c.b16 %v2521, %v2519
        %v2546 = vpack.c.b16 %v2522, %v2520
        %v2547 = vpack.c.b16 %v2525, %v2523
        %v2548 = vpack.c.b16 %v2526, %v2524
        %v2549 = vpack.c.b16 %v2529, %v2527
        %v2550 = vpack.c.b16 %v2530, %v2528
        %v2551 = vpack.c.b16 %v2533, %v2531
        %v2552 = vpack.c.b16 %v2534, %v2532
        %v2553 = vpack.c.b16 %v2537, %v2535
        %v2554 = vpack.c.b16 %v2538, %v2536
        %2571 = vmatprep.subr.bf16.mxu0 %v2540
        %2572 = vmatpush1.bf16.msra.mxu0 %v2539
        %2573 = vmatprep.subr.bf16.mxu0 %v2542
        %2574 = vmatpush1.bf16.msra.mxu0 %v2541
        %2575 = vmatprep.subr.bf16.mxu0 %v2544
        %2576 = vmatpush1.bf16.msra.mxu0 %v2543
        %2577 = vmatprep.subr.bf16.mxu0 %v2546
        %2578 = vmatpush1.bf16.msra.mxu0 %v2545
        %2579 = vmatprep.subr.bf16.mxu0 %v2548
        %2580 = vmatpush1.bf16.msra.mxu0 %v2547
        %2581 = vmatprep.subr.bf16.mxu0 %v2550
        %2582 = vmatpush1.bf16.msra.mxu0 %v2549
        %2583 = vmatprep.subr.bf16.mxu0 %v2552
        %2584 = vmatpush1.bf16.msra.mxu0 %v2551
        %2585 = vmatprep.subr.bf16.mxu0 %v2554
        %2586 = vmatpush1.bf16.msra.mxu0 %v2553
        %2587 = vmatprep.subr.bf16.mxu0 0
        %2588 = vmatpush1.bf16.msra.mxu0 0
        %2589 = vmatprep.subr.bf16.mxu0 0
        %2590 = vmatpush1.bf16.msra.mxu0 0
        %2591 = vmatprep.subr.bf16.mxu0 0
        %2592 = vmatpush1.bf16.msra.mxu0 0
        %2593 = vmatprep.subr.bf16.mxu0 0
        %2594 = vmatpush1.bf16.msra.mxu0 0
        %2595 = vmatprep.subr.bf16.mxu0 0
        %2596 = vmatpush1.bf16.msra.mxu0 0
        %2597 = vmatprep.subr.bf16.mxu0 0
        %2598 = vmatpush1.bf16.msra.mxu0 0
        %2599 = vmatprep.subr.bf16.mxu0 0
        %2600 = vmatpush1.bf16.msra.mxu0 0
        %2601 = vmatprep.subr.bf16.mxu0 0
        %2602 = vmatpush1.bf16.msra.mxu0 0
        %2603 = vmatprep.mubr.bf16.mxu0 0
        %2604 = vmatmul.mubr.bf16.gmra.mrb[0].mxu0 %v2477
        %v2605 = vpop.f32.mrb[0].mxu0
        %v2606 = vadd.f32 %v2484, %v2605
        %v2607 = vpop.f32.mrb[0].mxu0
        %v2608 = vadd.f32 %v2488, %v2607
        %v2609 = vpop.f32.mrb[0].mxu0
        %v2610 = vpop.f32.mrb[0].mxu0
        %2611 = vdwg.mxu0
        %v2612 = vpack.c.bf16 %v2455, %v2455
        %v2613 = vpack.c.bf16 %v2606, %v2606
        %v2614 = vpack.c.bf16 %v2608, %v2608
        %v2616 = vsel %vm1032, %v2612, 0
        %v2619 = vsel %vm1032, %v2613, 0
        %2621 = vmatprep.subr.bf16.mxu0 0
        %2622 = vmatpush1.bf16.xpose.msra.mxu0 %v2619
        %2623 = vmatprep.subr.bf16.mxu0 0
        %2624 = vmatpush1.bf16.xpose.msra.mxu0 0
        %2625 = vmatprep.subr.bf16.mxu0 0
        %2626 = vmatpush1.bf16.xpose.msra.mxu0 0
        %2627 = vmatprep.subr.bf16.mxu0 0
        %2628 = vmatpush1.bf16.xpose.msra.mxu0 0
        %2629 = vmatprep.subr.bf16.mxu0 0
        %2630 = vmatpush1.bf16.xpose.msra.mxu0 0
        %2631 = vmatprep.subr.bf16.mxu0 0
        %2632 = vmatpush1.bf16.xpose.msra.mxu0 0
        %2633 = vmatprep.subr.bf16.mxu0 0
        %2634 = vmatpush1.bf16.xpose.msra.mxu0 0
        %2635 = vmatprep.subr.bf16.mxu0 0
        %2636 = vmatpush1.bf16.xpose.msra.mxu0 0
        %2637 = vmatprep.subr.bf16.mxu0 0
        %2638 = vmatpush1.bf16.xpose.msra.mxu0 0
        %2639 = vmatprep.subr.bf16.mxu0 0
        %2640 = vmatpush1.bf16.xpose.msra.mxu0 0
        %2641 = vmatprep.subr.bf16.mxu0 0
        %2642 = vmatpush1.bf16.xpose.msra.mxu0 0
        %2643 = vmatprep.subr.bf16.mxu0 0
        %2644 = vmatpush1.bf16.xpose.msra.mxu0 0
        %2645 = vmatprep.subr.bf16.mxu0 0
        %2646 = vmatpush1.bf16.xpose.msra.mxu0 0
        %2647 = vmatprep.subr.bf16.mxu0 0
        %2648 = vmatpush1.bf16.xpose.msra.mxu0 0
        %2649 = vmatprep.subr.bf16.mxu0 0
        %2650 = vmatpush1.bf16.xpose.msra.mxu0 0
        %2651 = vmatprep.subr.bf16.mxu0 0
        %2652 = vmatpush1.bf16.xpose.msra.mxu0 0
        %2653 = vmatprep.mubr.bf16.mxu0 0
        %2654 = vmatmul.mubr.bf16.gmra.mrb[0].mxu0 %v2616
        %v2655 = vpop.f32.mrb[0].mxu0
        %v2656 = vadd.f32 0.0, %v2655
        %v2657 = vpop.f32.mrb[0].mxu0
        %v2658 = vpop.f32.mrb[0].mxu0
        %v2659 = vpop.f32.mrb[0].mxu0
        %2660 = vdwg.mxu0
        %v2661 = vmul.f32 %v2656, 0.25
        %v2662 = vsel %vm744, -1e+30, %v2661
        %v2663 = vsel %vm1081, %v2662, -inf
        %2664 = vmax.xlane.f32.xlu0 %v2663
        %v2665 = vpop.xlane.xlu0 %2664
        %v2666 = vsub.f32 %v2662, %v2665
        %v2667 = vmul.f32 %v2666, 1.442695
        %v2668 = vpow.pop %v2667
        %v2669 = vsel %vm1081, %v2668, 0.0
        %2670 = vadd.xlane.f32.xlu0 %v2669
        %v2671 = vpop.xlane.xlu0 %2670
        %v2672 = vrcp.pop %v2671
        %v2673 = vmul.f32 %v2668, %v2672
        %v2674 = vpack.c.bf16 %v2673, %v2673
        %v2676 = vsel %vm1081, %v2674, 0
        %v2679 = vsel %vm1097, %v2614, 0
        %2681 = vmatprep.subr.bf16.mxu0 0
        %2682 = vmatpush1.bf16.msra.mxu0 %v2679
        %2683 = vmatprep.subr.bf16.mxu0 0
        %2684 = vmatpush1.bf16.msra.mxu0 0
        %2685 = vmatprep.subr.bf16.mxu0 0
        %2686 = vmatpush1.bf16.msra.mxu0 0
        %2687 = vmatprep.subr.bf16.mxu0 0
        %2688 = vmatpush1.bf16.msra.mxu0 0
        %2689 = vmatprep.subr.bf16.mxu0 0
        %2690 = vmatpush1.bf16.msra.mxu0 0
        %2691 = vmatprep.subr.bf16.mxu0 0
        %2692 = vmatpush1.bf16.msra.mxu0 0
        %2693 = vmatprep.subr.bf16.mxu0 0
        %2694 = vmatpush1.bf16.msra.mxu0 0
        %2695 = vmatprep.subr.bf16.mxu0 0
        %2696 = vmatpush1.bf16.msra.mxu0 0
        %2697 = vmatprep.subr.bf16.mxu0 0
        %2698 = vmatpush1.bf16.msra.mxu0 0
        %2699 = vmatprep.subr.bf16.mxu0 0
        %2700 = vmatpush1.bf16.msra.mxu0 0
        %2701 = vmatprep.subr.bf16.mxu0 0
        %2702 = vmatpush1.bf16.msra.mxu0 0
        %2703 = vmatprep.subr.bf16.mxu0 0
        %2704 = vmatpush1.bf16.msra.mxu0 0
        %2705 = vmatprep.subr.bf16.mxu0 0
        %2706 = vmatpush1.bf16.msra.mxu0 0
        %2707 = vmatprep.subr.bf16.mxu0 0
        %2708 = vmatpush1.bf16.msra.mxu0 0
        %2709 = vmatprep.subr.bf16.mxu0 0
        %2710 = vmatpush1.bf16.msra.mxu0 0
        %2711 = vmatprep.subr.bf16.mxu0 0
        %2712 = vmatpush1.bf16.msra.mxu0 0
        %2713 = vmatprep.mubr.bf16.mxu0 0
        %2714 = vmatmul.mubr.bf16.gmra.mrb[0].mxu0 %v2676
        %v2715 = vpop.f32.mrb[0].mxu0
        %v2716 = vadd.f32 0.0, %v2715
        %v2717 = vpop.f32.mrb[0].mxu0
        %v2718 = vpop.f32.mrb[0].mxu0
        %v2719 = vpop.f32.mrb[0].mxu0
        %2720 = vdwg.mxu0
        %2722 = vrot.lane.b32.xlu0 %v2612, 112
        %v2723 = vpop.permute.xlu0 %2722
        %2725 = vrot.lane.b32.xlu0 %v2613, 112
        %v2726 = vpop.permute.xlu0 %2725
        %v2728 = vsel %vm1032, %v2723, 0
        %v2731 = vsel %vm1032, %v2726, 0
        %2733 = vmatprep.subr.bf16.mxu0 0
        %2734 = vmatpush1.bf16.xpose.msra.mxu0 %v2731
        %2735 = vmatprep.subr.bf16.mxu0 0
        %2736 = vmatpush1.bf16.xpose.msra.mxu0 0
        %2737 = vmatprep.subr.bf16.mxu0 0
        %2738 = vmatpush1.bf16.xpose.msra.mxu0 0
        %2739 = vmatprep.subr.bf16.mxu0 0
        %2740 = vmatpush1.bf16.xpose.msra.mxu0 0
        %2741 = vmatprep.subr.bf16.mxu0 0
        %2742 = vmatpush1.bf16.xpose.msra.mxu0 0
        %2743 = vmatprep.subr.bf16.mxu0 0
        %2744 = vmatpush1.bf16.xpose.msra.mxu0 0
        %2745 = vmatprep.subr.bf16.mxu0 0
        %2746 = vmatpush1.bf16.xpose.msra.mxu0 0
        %2747 = vmatprep.subr.bf16.mxu0 0
        %2748 = vmatpush1.bf16.xpose.msra.mxu0 0
        %2749 = vmatprep.subr.bf16.mxu0 0
        %2750 = vmatpush1.bf16.xpose.msra.mxu0 0
        %2751 = vmatprep.subr.bf16.mxu0 0
        %2752 = vmatpush1.bf16.xpose.msra.mxu0 0
        %2753 = vmatprep.subr.bf16.mxu0 0
        %2754 = vmatpush1.bf16.xpose.msra.mxu0 0
        %2755 = vmatprep.subr.bf16.mxu0 0
        %2756 = vmatpush1.bf16.xpose.msra.mxu0 0
        %2757 = vmatprep.subr.bf16.mxu0 0
        %2758 = vmatpush1.bf16.xpose.msra.mxu0 0
        %2759 = vmatprep.subr.bf16.mxu0 0
        %2760 = vmatpush1.bf16.xpose.msra.mxu0 0
        %2761 = vmatprep.subr.bf16.mxu0 0
        %2762 = vmatpush1.bf16.xpose.msra.mxu0 0
        %2763 = vmatprep.subr.bf16.mxu0 0
        %2764 = vmatpush1.bf16.xpose.msra.mxu0 0
        %2765 = vmatprep.mubr.bf16.mxu0 0
        %2766 = vmatmul.mubr.bf16.gmra.mrb[0].mxu0 %v2728
        %v2767 = vpop.f32.mrb[0].mxu0
        %v2768 = vadd.f32 0.0, %v2767
        %v2769 = vpop.f32.mrb[0].mxu0
        %v2770 = vpop.f32.mrb[0].mxu0
        %v2771 = vpop.f32.mrb[0].mxu0
        %2772 = vdwg.mxu0
        %v2773 = vmul.f32 %v2768, 0.25
        %v2774 = vsel %vm744, -1e+30, %v2773
        %v2775 = vsel %vm1081, %v2774, -inf
        %2776 = vmax.xlane.f32.xlu0 %v2775
        %v2777 = vpop.xlane.xlu0 %2776
        %v2778 = vsub.f32 %v2774, %v2777
        %v2779 = vmul.f32 %v2778, 1.442695
        %v2780 = vpow.pop %v2779
        %v2781 = vsel %vm1081, %v2780, 0.0
        %2782 = vadd.xlane.f32.xlu0 %v2781
        %v2783 = vpop.xlane.xlu0 %2782
        %v2784 = vrcp.pop %v2783
        %v2785 = vmul.f32 %v2780, %v2784
        %v2786 = vpack.c.bf16 %v2785, %v2785
        %2788 = vrot.lane.b32.xlu0 %v2614, 112
        %v2789 = vpop.permute.xlu0 %2788
        %v2791 = vsel %vm1081, %v2786, 0
        %v2794 = vsel %vm1097, %v2789, 0
        %2796 = vmatprep.subr.bf16.mxu0 0
        %2797 = vmatpush1.bf16.msra.mxu0 %v2794
        %2798 = vmatprep.subr.bf16.mxu0 0
        %2799 = vmatpush1.bf16.msra.mxu0 0
        %2800 = vmatprep.subr.bf16.mxu0 0
        %2801 = vmatpush1.bf16.msra.mxu0 0
        %2802 = vmatprep.subr.bf16.mxu0 0
        %2803 = vmatpush1.bf16.msra.mxu0 0
        %2804 = vmatprep.subr.bf16.mxu0 0
        %2805 = vmatpush1.bf16.msra.mxu0 0
        %2806 = vmatprep.subr.bf16.mxu0 0
        %2807 = vmatpush1.bf16.msra.mxu0 0
        %2808 = vmatprep.subr.bf16.mxu0 0
        %2809 = vmatpush1.bf16.msra.mxu0 0
        %2810 = vmatprep.subr.bf16.mxu0 0
        %2811 = vmatpush1.bf16.msra.mxu0 0
        %2812 = vmatprep.subr.bf16.mxu0 0
        %2813 = vmatpush1.bf16.msra.mxu0 0
        %2814 = vmatprep.subr.bf16.mxu0 0
        %2815 = vmatpush1.bf16.msra.mxu0 0
        %2816 = vmatprep.subr.bf16.mxu0 0
        %2817 = vmatpush1.bf16.msra.mxu0 0
        %2818 = vmatprep.subr.bf16.mxu0 0
        %2819 = vmatpush1.bf16.msra.mxu0 0
        %2820 = vmatprep.subr.bf16.mxu0 0
        %2821 = vmatpush1.bf16.msra.mxu0 0
        %2822 = vmatprep.subr.bf16.mxu0 0
        %2823 = vmatpush1.bf16.msra.mxu0 0
        %2824 = vmatprep.subr.bf16.mxu0 0
        %2825 = vmatpush1.bf16.msra.mxu0 0
        %2826 = vmatprep.subr.bf16.mxu0 0
        %2827 = vmatpush1.bf16.msra.mxu0 0
        %2828 = vmatprep.mubr.bf16.mxu0 0
        %2829 = vmatmul.mubr.bf16.gmra.mrb[0].mxu0 %v2791
        %v2830 = vpop.f32.mrb[0].mxu0
        %v2831 = vadd.f32 0.0, %v2830
        %v2832 = vpop.f32.mrb[0].mxu0
        %v2833 = vpop.f32.mrb[0].mxu0
        %v2834 = vpop.f32.mrb[0].mxu0
        %2835 = vdwg.mxu0
        %2836 = vrot.lane.b32.xlu0 %v2612, 96
        %v2837 = vpop.permute.xlu0 %2836
        %2838 = vrot.lane.b32.xlu0 %v2613, 96
        %v2839 = vpop.permute.xlu0 %2838
        %v2841 = vsel %vm1032, %v2837, 0
        %v2844 = vsel %vm1032, %v2839, 0
        %2846 = vmatprep.subr.bf16.mxu0 0
        %2847 = vmatpush1.bf16.xpose.msra.mxu0 %v2844
        %2848 = vmatprep.subr.bf16.mxu0 0
        %2849 = vmatpush1.bf16.xpose.msra.mxu0 0
        %2850 = vmatprep.subr.bf16.mxu0 0
        %2851 = vmatpush1.bf16.xpose.msra.mxu0 0
        %2852 = vmatprep.subr.bf16.mxu0 0
        %2853 = vmatpush1.bf16.xpose.msra.mxu0 0
        %2854 = vmatprep.subr.bf16.mxu0 0
        %2855 = vmatpush1.bf16.xpose.msra.mxu0 0
        %2856 = vmatprep.subr.bf16.mxu0 0
        %2857 = vmatpush1.bf16.xpose.msra.mxu0 0
        %2858 = vmatprep.subr.bf16.mxu0 0
        %2859 = vmatpush1.bf16.xpose.msra.mxu0 0
        %2860 = vmatprep.subr.bf16.mxu0 0
        %2861 = vmatpush1.bf16.xpose.msra.mxu0 0
        %2862 = vmatprep.subr.bf16.mxu0 0
        %2863 = vmatpush1.bf16.xpose.msra.mxu0 0
        %2864 = vmatprep.subr.bf16.mxu0 0
        %2865 = vmatpush1.bf16.xpose.msra.mxu0 0
        %2866 = vmatprep.subr.bf16.mxu0 0
        %2867 = vmatpush1.bf16.xpose.msra.mxu0 0
        %2868 = vmatprep.subr.bf16.mxu0 0
        %2869 = vmatpush1.bf16.xpose.msra.mxu0 0
        %2870 = vmatprep.subr.bf16.mxu0 0
        %2871 = vmatpush1.bf16.xpose.msra.mxu0 0
        %2872 = vmatprep.subr.bf16.mxu0 0
        %2873 = vmatpush1.bf16.xpose.msra.mxu0 0
        %2874 = vmatprep.subr.bf16.mxu0 0
        %2875 = vmatpush1.bf16.xpose.msra.mxu0 0
        %2876 = vmatprep.subr.bf16.mxu0 0
        %2877 = vmatpush1.bf16.xpose.msra.mxu0 0
        %2878 = vmatprep.mubr.bf16.mxu0 0
        %2879 = vmatmul.mubr.bf16.gmra.mrb[0].mxu0 %v2841
        %v2880 = vpop.f32.mrb[0].mxu0
        %v2881 = vadd.f32 0.0, %v2880
        %v2882 = vpop.f32.mrb[0].mxu0
        %v2883 = vpop.f32.mrb[0].mxu0
        %v2884 = vpop.f32.mrb[0].mxu0
        %2885 = vdwg.mxu0
        %v2886 = vmul.f32 %v2881, 0.25
        %v2887 = vsel %vm744, -1e+30, %v2886
        %v2888 = vsel %vm1081, %v2887, -inf
        %2889 = vmax.xlane.f32.xlu0 %v2888
        %v2890 = vpop.xlane.xlu0 %2889
        %v2891 = vsub.f32 %v2887, %v2890
        %v2892 = vmul.f32 %v2891, 1.442695
        %v2893 = vpow.pop %v2892
        %v2894 = vsel %vm1081, %v2893, 0.0
        %2895 = vadd.xlane.f32.xlu0 %v2894
        %v2896 = vpop.xlane.xlu0 %2895
        %v2897 = vrcp.pop %v2896
        %v2898 = vmul.f32 %v2893, %v2897
        %v2899 = vpack.c.bf16 %v2898, %v2898
        %2900 = vrot.lane.b32.xlu0 %v2614, 96
        %v2901 = vpop.permute.xlu0 %2900
        %v2903 = vsel %vm1081, %v2899, 0
        %v2906 = vsel %vm1097, %v2901, 0
        %2908 = vmatprep.subr.bf16.mxu0 0
        %2909 = vmatpush1.bf16.msra.mxu0 %v2906
        %2910 = vmatprep.subr.bf16.mxu0 0
        %2911 = vmatpush1.bf16.msra.mxu0 0
        %2912 = vmatprep.subr.bf16.mxu0 0
        %2913 = vmatpush1.bf16.msra.mxu0 0
        %2914 = vmatprep.subr.bf16.mxu0 0
        %2915 = vmatpush1.bf16.msra.mxu0 0
        %2916 = vmatprep.subr.bf16.mxu0 0
        %2917 = vmatpush1.bf16.msra.mxu0 0
        %2918 = vmatprep.subr.bf16.mxu0 0
        %2919 = vmatpush1.bf16.msra.mxu0 0
        %2920 = vmatprep.subr.bf16.mxu0 0
        %2921 = vmatpush1.bf16.msra.mxu0 0
        %2922 = vmatprep.subr.bf16.mxu0 0
        %2923 = vmatpush1.bf16.msra.mxu0 0
        %2924 = vmatprep.subr.bf16.mxu0 0
        %2925 = vmatpush1.bf16.msra.mxu0 0
        %2926 = vmatprep.subr.bf16.mxu0 0
        %2927 = vmatpush1.bf16.msra.mxu0 0
        %2928 = vmatprep.subr.bf16.mxu0 0
        %2929 = vmatpush1.bf16.msra.mxu0 0
        %2930 = vmatprep.subr.bf16.mxu0 0
        %2931 = vmatpush1.bf16.msra.mxu0 0
        %2932 = vmatprep.subr.bf16.mxu0 0
        %2933 = vmatpush1.bf16.msra.mxu0 0
        %2934 = vmatprep.subr.bf16.mxu0 0
        %2935 = vmatpush1.bf16.msra.mxu0 0
        %2936 = vmatprep.subr.bf16.mxu0 0
        %2937 = vmatpush1.bf16.msra.mxu0 0
        %2938 = vmatprep.subr.bf16.mxu0 0
        %2939 = vmatpush1.bf16.msra.mxu0 0
        %2940 = vmatprep.mubr.bf16.mxu0 0
        %2941 = vmatmul.mubr.bf16.gmra.mrb[0].mxu0 %v2903
        %v2942 = vpop.f32.mrb[0].mxu0
        %v2943 = vadd.f32 0.0, %v2942
        %v2944 = vpop.f32.mrb[0].mxu0
        %v2945 = vpop.f32.mrb[0].mxu0
        %v2946 = vpop.f32.mrb[0].mxu0
        %2947 = vdwg.mxu0
        %2948 = vrot.lane.b32.xlu0 %v2612, 80
        %v2949 = vpop.permute.xlu0 %2948
        %2950 = vrot.lane.b32.xlu0 %v2613, 80
        %v2951 = vpop.permute.xlu0 %2950
        %v2953 = vsel %vm1032, %v2949, 0
        %v2956 = vsel %vm1032, %v2951, 0
        %2958 = vmatprep.subr.bf16.mxu0 0
        %2959 = vmatpush1.bf16.xpose.msra.mxu0 %v2956
        %2960 = vmatprep.subr.bf16.mxu0 0
        %2961 = vmatpush1.bf16.xpose.msra.mxu0 0
        %2962 = vmatprep.subr.bf16.mxu0 0
        %2963 = vmatpush1.bf16.xpose.msra.mxu0 0
        %2964 = vmatprep.subr.bf16.mxu0 0
        %2965 = vmatpush1.bf16.xpose.msra.mxu0 0
        %2966 = vmatprep.subr.bf16.mxu0 0
        %2967 = vmatpush1.bf16.xpose.msra.mxu0 0
        %2968 = vmatprep.subr.bf16.mxu0 0
        %2969 = vmatpush1.bf16.xpose.msra.mxu0 0
        %2970 = vmatprep.subr.bf16.mxu0 0
        %2971 = vmatpush1.bf16.xpose.msra.mxu0 0
        %2972 = vmatprep.subr.bf16.mxu0 0
        %2973 = vmatpush1.bf16.xpose.msra.mxu0 0
        %2974 = vmatprep.subr.bf16.mxu0 0
        %2975 = vmatpush1.bf16.xpose.msra.mxu0 0
        %2976 = vmatprep.subr.bf16.mxu0 0
        %2977 = vmatpush1.bf16.xpose.msra.mxu0 0
        %2978 = vmatprep.subr.bf16.mxu0 0
        %2979 = vmatpush1.bf16.xpose.msra.mxu0 0
        %2980 = vmatprep.subr.bf16.mxu0 0
        %2981 = vmatpush1.bf16.xpose.msra.mxu0 0
        %2982 = vmatprep.subr.bf16.mxu0 0
        %2983 = vmatpush1.bf16.xpose.msra.mxu0 0
        %2984 = vmatprep.subr.bf16.mxu0 0
        %2985 = vmatpush1.bf16.xpose.msra.mxu0 0
        %2986 = vmatprep.subr.bf16.mxu0 0
        %2987 = vmatpush1.bf16.xpose.msra.mxu0 0
        %2988 = vmatprep.subr.bf16.mxu0 0
        %2989 = vmatpush1.bf16.xpose.msra.mxu0 0
        %2990 = vmatprep.mubr.bf16.mxu0 0
        %2991 = vmatmul.mubr.bf16.gmra.mrb[0].mxu0 %v2953
        %v2992 = vpop.f32.mrb[0].mxu0
        %v2993 = vadd.f32 0.0, %v2992
        %v2994 = vpop.f32.mrb[0].mxu0
        %v2995 = vpop.f32.mrb[0].mxu0
        %v2996 = vpop.f32.mrb[0].mxu0
        %2997 = vdwg.mxu0
        %v2998 = vmul.f32 %v2993, 0.25
        %v2999 = vsel %vm744, -1e+30, %v2998
        %v3000 = vsel %vm1081, %v2999, -inf
        %3001 = vmax.xlane.f32.xlu0 %v3000
        %v3002 = vpop.xlane.xlu0 %3001
        %v3003 = vsub.f32 %v2999, %v3002
        %v3004 = vmul.f32 %v3003, 1.442695
        %v3005 = vpow.pop %v3004
        %v3006 = vsel %vm1081, %v3005, 0.0
        %3007 = vadd.xlane.f32.xlu0 %v3006
        %v3008 = vpop.xlane.xlu0 %3007
        %v3009 = vrcp.pop %v3008
        %v3010 = vmul.f32 %v3005, %v3009
        %v3011 = vpack.c.bf16 %v3010, %v3010
        %3012 = vrot.lane.b32.xlu0 %v2614, 80
        %v3013 = vpop.permute.xlu0 %3012
        %v3015 = vsel %vm1081, %v3011, 0
        %v3018 = vsel %vm1097, %v3013, 0
        %3020 = vmatprep.subr.bf16.mxu0 0
        %3021 = vmatpush1.bf16.msra.mxu0 %v3018
        %3022 = vmatprep.subr.bf16.mxu0 0
        %3023 = vmatpush1.bf16.msra.mxu0 0
        %3024 = vmatprep.subr.bf16.mxu0 0
        %3025 = vmatpush1.bf16.msra.mxu0 0
        %3026 = vmatprep.subr.bf16.mxu0 0
        %3027 = vmatpush1.bf16.msra.mxu0 0
        %3028 = vmatprep.subr.bf16.mxu0 0
        %3029 = vmatpush1.bf16.msra.mxu0 0
        %3030 = vmatprep.subr.bf16.mxu0 0
        %3031 = vmatpush1.bf16.msra.mxu0 0
        %3032 = vmatprep.subr.bf16.mxu0 0
        %3033 = vmatpush1.bf16.msra.mxu0 0
        %3034 = vmatprep.subr.bf16.mxu0 0
        %3035 = vmatpush1.bf16.msra.mxu0 0
        %3036 = vmatprep.subr.bf16.mxu0 0
        %3037 = vmatpush1.bf16.msra.mxu0 0
        %3038 = vmatprep.subr.bf16.mxu0 0
        %3039 = vmatpush1.bf16.msra.mxu0 0
        %3040 = vmatprep.subr.bf16.mxu0 0
        %3041 = vmatpush1.bf16.msra.mxu0 0
        %3042 = vmatprep.subr.bf16.mxu0 0
        %3043 = vmatpush1.bf16.msra.mxu0 0
        %3044 = vmatprep.subr.bf16.mxu0 0
        %3045 = vmatpush1.bf16.msra.mxu0 0
        %3046 = vmatprep.subr.bf16.mxu0 0
        %3047 = vmatpush1.bf16.msra.mxu0 0
        %3048 = vmatprep.subr.bf16.mxu0 0
        %3049 = vmatpush1.bf16.msra.mxu0 0
        %3050 = vmatprep.subr.bf16.mxu0 0
        %3051 = vmatpush1.bf16.msra.mxu0 0
        %3052 = vmatprep.mubr.bf16.mxu0 0
        %3053 = vmatmul.mubr.bf16.gmra.mrb[0].mxu0 %v3015
        %v3054 = vpop.f32.mrb[0].mxu0
        %v3055 = vadd.f32 0.0, %v3054
        %v3056 = vpop.f32.mrb[0].mxu0
        %v3057 = vpop.f32.mrb[0].mxu0
        %v3058 = vpop.f32.mrb[0].mxu0
        %3059 = vdwg.mxu0
        %3060 = vrot.lane.b32.xlu0 %v2612, 64
        %v3061 = vpop.permute.xlu0 %3060
        %3062 = vrot.lane.b32.xlu0 %v2613, 64
        %v3063 = vpop.permute.xlu0 %3062
        %v3065 = vsel %vm1032, %v3061, 0
        %v3068 = vsel %vm1032, %v3063, 0
        %3070 = vmatprep.subr.bf16.mxu0 0
        %3071 = vmatpush1.bf16.xpose.msra.mxu0 %v3068
        %3072 = vmatprep.subr.bf16.mxu0 0
        %3073 = vmatpush1.bf16.xpose.msra.mxu0 0
        %3074 = vmatprep.subr.bf16.mxu0 0
        %3075 = vmatpush1.bf16.xpose.msra.mxu0 0
        %3076 = vmatprep.subr.bf16.mxu0 0
        %3077 = vmatpush1.bf16.xpose.msra.mxu0 0
        %3078 = vmatprep.subr.bf16.mxu0 0
        %3079 = vmatpush1.bf16.xpose.msra.mxu0 0
        %3080 = vmatprep.subr.bf16.mxu0 0
        %3081 = vmatpush1.bf16.xpose.msra.mxu0 0
        %3082 = vmatprep.subr.bf16.mxu0 0
        %3083 = vmatpush1.bf16.xpose.msra.mxu0 0
        %3084 = vmatprep.subr.bf16.mxu0 0
        %3085 = vmatpush1.bf16.xpose.msra.mxu0 0
        %3086 = vmatprep.subr.bf16.mxu0 0
        %3087 = vmatpush1.bf16.xpose.msra.mxu0 0
        %3088 = vmatprep.subr.bf16.mxu0 0
        %3089 = vmatpush1.bf16.xpose.msra.mxu0 0
        %3090 = vmatprep.subr.bf16.mxu0 0
        %3091 = vmatpush1.bf16.xpose.msra.mxu0 0
        %3092 = vmatprep.subr.bf16.mxu0 0
        %3093 = vmatpush1.bf16.xpose.msra.mxu0 0
        %3094 = vmatprep.subr.bf16.mxu0 0
        %3095 = vmatpush1.bf16.xpose.msra.mxu0 0
        %3096 = vmatprep.subr.bf16.mxu0 0
        %3097 = vmatpush1.bf16.xpose.msra.mxu0 0
        %3098 = vmatprep.subr.bf16.mxu0 0
        %3099 = vmatpush1.bf16.xpose.msra.mxu0 0
        %3100 = vmatprep.subr.bf16.mxu0 0
        %3101 = vmatpush1.bf16.xpose.msra.mxu0 0
        %3102 = vmatprep.mubr.bf16.mxu0 0
        %3103 = vmatmul.mubr.bf16.gmra.mrb[0].mxu0 %v3065
        %v3104 = vpop.f32.mrb[0].mxu0
        %v3105 = vadd.f32 0.0, %v3104
        %v3106 = vpop.f32.mrb[0].mxu0
        %v3107 = vpop.f32.mrb[0].mxu0
        %v3108 = vpop.f32.mrb[0].mxu0
        %3109 = vdwg.mxu0
        %v3110 = vmul.f32 %v3105, 0.25
        %v3111 = vsel %vm744, -1e+30, %v3110
        %v3112 = vsel %vm1081, %v3111, -inf
        %3113 = vmax.xlane.f32.xlu0 %v3112
        %v3114 = vpop.xlane.xlu0 %3113
        %v3115 = vsub.f32 %v3111, %v3114
        %v3116 = vmul.f32 %v3115, 1.442695
        %v3117 = vpow.pop %v3116
        %v3118 = vsel %vm1081, %v3117, 0.0
        %3119 = vadd.xlane.f32.xlu0 %v3118
        %v3120 = vpop.xlane.xlu0 %3119
        %v3121 = vrcp.pop %v3120
        %v3122 = vmul.f32 %v3117, %v3121
        %v3123 = vpack.c.bf16 %v3122, %v3122
        %3124 = vrot.lane.b32.xlu0 %v2614, 64
        %v3125 = vpop.permute.xlu0 %3124
        %v3127 = vsel %vm1081, %v3123, 0
        %v3130 = vsel %vm1097, %v3125, 0
        %3132 = vmatprep.subr.bf16.mxu0 0
        %3133 = vmatpush1.bf16.msra.mxu0 %v3130
        %3134 = vmatprep.subr.bf16.mxu0 0
        %3135 = vmatpush1.bf16.msra.mxu0 0
        %3136 = vmatprep.subr.bf16.mxu0 0
        %3137 = vmatpush1.bf16.msra.mxu0 0
        %3138 = vmatprep.subr.bf16.mxu0 0
        %3139 = vmatpush1.bf16.msra.mxu0 0
        %3140 = vmatprep.subr.bf16.mxu0 0
        %3141 = vmatpush1.bf16.msra.mxu0 0
        %3142 = vmatprep.subr.bf16.mxu0 0
        %3143 = vmatpush1.bf16.msra.mxu0 0
        %3144 = vmatprep.subr.bf16.mxu0 0
        %3145 = vmatpush1.bf16.msra.mxu0 0
        %3146 = vmatprep.subr.bf16.mxu0 0
        %3147 = vmatpush1.bf16.msra.mxu0 0
        %3148 = vmatprep.subr.bf16.mxu0 0
        %3149 = vmatpush1.bf16.msra.mxu0 0
        %3150 = vmatprep.subr.bf16.mxu0 0
        %3151 = vmatpush1.bf16.msra.mxu0 0
        %3152 = vmatprep.subr.bf16.mxu0 0
        %3153 = vmatpush1.bf16.msra.mxu0 0
        %3154 = vmatprep.subr.bf16.mxu0 0
        %3155 = vmatpush1.bf16.msra.mxu0 0
        %3156 = vmatprep.subr.bf16.mxu0 0
        %3157 = vmatpush1.bf16.msra.mxu0 0
        %3158 = vmatprep.subr.bf16.mxu0 0
        %3159 = vmatpush1.bf16.msra.mxu0 0
        %3160 = vmatprep.subr.bf16.mxu0 0
        %3161 = vmatpush1.bf16.msra.mxu0 0
        %3162 = vmatprep.subr.bf16.mxu0 0
        %3163 = vmatpush1.bf16.msra.mxu0 0
        %3164 = vmatprep.mubr.bf16.mxu0 0
        %3165 = vmatmul.mubr.bf16.gmra.mrb[0].mxu0 %v3127
        %v3166 = vpop.f32.mrb[0].mxu0
        %v3167 = vadd.f32 0.0, %v3166
        %v3168 = vpop.f32.mrb[0].mxu0
        %v3169 = vpop.f32.mrb[0].mxu0
        %v3170 = vpop.f32.mrb[0].mxu0
        %3171 = vdwg.mxu0
        %3172 = vrot.lane.b32.xlu0 %v2612, 48
        %v3173 = vpop.permute.xlu0 %3172
        %3174 = vrot.lane.b32.xlu0 %v2613, 48
        %v3175 = vpop.permute.xlu0 %3174
        %v3177 = vsel %vm1032, %v3173, 0
        %v3180 = vsel %vm1032, %v3175, 0
        %3182 = vmatprep.subr.bf16.mxu0 0
        %3183 = vmatpush1.bf16.xpose.msra.mxu0 %v3180
        %3184 = vmatprep.subr.bf16.mxu0 0
        %3185 = vmatpush1.bf16.xpose.msra.mxu0 0
        %3186 = vmatprep.subr.bf16.mxu0 0
        %3187 = vmatpush1.bf16.xpose.msra.mxu0 0
        %3188 = vmatprep.subr.bf16.mxu0 0
        %3189 = vmatpush1.bf16.xpose.msra.mxu0 0
        %3190 = vmatprep.subr.bf16.mxu0 0
        %3191 = vmatpush1.bf16.xpose.msra.mxu0 0
        %3192 = vmatprep.subr.bf16.mxu0 0
        %3193 = vmatpush1.bf16.xpose.msra.mxu0 0
        %3194 = vmatprep.subr.bf16.mxu0 0
        %3195 = vmatpush1.bf16.xpose.msra.mxu0 0
        %3196 = vmatprep.subr.bf16.mxu0 0
        %3197 = vmatpush1.bf16.xpose.msra.mxu0 0
        %3198 = vmatprep.subr.bf16.mxu0 0
        %3199 = vmatpush1.bf16.xpose.msra.mxu0 0
        %3200 = vmatprep.subr.bf16.mxu0 0
        %3201 = vmatpush1.bf16.xpose.msra.mxu0 0
        %3202 = vmatprep.subr.bf16.mxu0 0
        %3203 = vmatpush1.bf16.xpose.msra.mxu0 0
        %3204 = vmatprep.subr.bf16.mxu0 0
        %3205 = vmatpush1.bf16.xpose.msra.mxu0 0
        %3206 = vmatprep.subr.bf16.mxu0 0
        %3207 = vmatpush1.bf16.xpose.msra.mxu0 0
        %3208 = vmatprep.subr.bf16.mxu0 0
        %3209 = vmatpush1.bf16.xpose.msra.mxu0 0
        %3210 = vmatprep.subr.bf16.mxu0 0
        %3211 = vmatpush1.bf16.xpose.msra.mxu0 0
        %3212 = vmatprep.subr.bf16.mxu0 0
        %3213 = vmatpush1.bf16.xpose.msra.mxu0 0
        %3214 = vmatprep.mubr.bf16.mxu0 0
        %3215 = vmatmul.mubr.bf16.gmra.mrb[0].mxu0 %v3177
        %v3216 = vpop.f32.mrb[0].mxu0
        %v3217 = vadd.f32 0.0, %v3216
        %v3218 = vpop.f32.mrb[0].mxu0
        %v3219 = vpop.f32.mrb[0].mxu0
        %v3220 = vpop.f32.mrb[0].mxu0
        %3221 = vdwg.mxu0
        %v3222 = vmul.f32 %v3217, 0.25
        %v3223 = vsel %vm744, -1e+30, %v3222
        %v3224 = vsel %vm1081, %v3223, -inf
        %3225 = vmax.xlane.f32.xlu0 %v3224
        %v3226 = vpop.xlane.xlu0 %3225
        %v3227 = vsub.f32 %v3223, %v3226
        %v3228 = vmul.f32 %v3227, 1.442695
        %v3229 = vpow.pop %v3228
        %v3230 = vsel %vm1081, %v3229, 0.0
        %3231 = vadd.xlane.f32.xlu0 %v3230
        %v3232 = vpop.xlane.xlu0 %3231
        %v3233 = vrcp.pop %v3232
        %v3234 = vmul.f32 %v3229, %v3233
        %v3235 = vpack.c.bf16 %v3234, %v3234
        %3236 = vrot.lane.b32.xlu0 %v2614, 48
        %v3237 = vpop.permute.xlu0 %3236
        %v3239 = vsel %vm1081, %v3235, 0
        %v3242 = vsel %vm1097, %v3237, 0
        %3244 = vmatprep.subr.bf16.mxu0 0
        %3245 = vmatpush1.bf16.msra.mxu0 %v3242
        %3246 = vmatprep.subr.bf16.mxu0 0
        %3247 = vmatpush1.bf16.msra.mxu0 0
        %3248 = vmatprep.subr.bf16.mxu0 0
        %3249 = vmatpush1.bf16.msra.mxu0 0
        %3250 = vmatprep.subr.bf16.mxu0 0
        %3251 = vmatpush1.bf16.msra.mxu0 0
        %3252 = vmatprep.subr.bf16.mxu0 0
        %3253 = vmatpush1.bf16.msra.mxu0 0
        %3254 = vmatprep.subr.bf16.mxu0 0
        %3255 = vmatpush1.bf16.msra.mxu0 0
        %3256 = vmatprep.subr.bf16.mxu0 0
        %3257 = vmatpush1.bf16.msra.mxu0 0
        %3258 = vmatprep.subr.bf16.mxu0 0
        %3259 = vmatpush1.bf16.msra.mxu0 0
        %3260 = vmatprep.subr.bf16.mxu0 0
        %3261 = vmatpush1.bf16.msra.mxu0 0
        %3262 = vmatprep.subr.bf16.mxu0 0
        %3263 = vmatpush1.bf16.msra.mxu0 0
        %3264 = vmatprep.subr.bf16.mxu0 0
        %3265 = vmatpush1.bf16.msra.mxu0 0
        %3266 = vmatprep.subr.bf16.mxu0 0
        %3267 = vmatpush1.bf16.msra.mxu0 0
        %3268 = vmatprep.subr.bf16.mxu0 0
        %3269 = vmatpush1.bf16.msra.mxu0 0
        %3270 = vmatprep.subr.bf16.mxu0 0
        %3271 = vmatpush1.bf16.msra.mxu0 0
        %3272 = vmatprep.subr.bf16.mxu0 0
        %3273 = vmatpush1.bf16.msra.mxu0 0
        %3274 = vmatprep.subr.bf16.mxu0 0
        %3275 = vmatpush1.bf16.msra.mxu0 0
        %3276 = vmatprep.mubr.bf16.mxu0 0
        %3277 = vmatmul.mubr.bf16.gmra.mrb[0].mxu0 %v3239
        %v3278 = vpop.f32.mrb[0].mxu0
        %v3279 = vadd.f32 0.0, %v3278
        %v3280 = vpop.f32.mrb[0].mxu0
        %v3281 = vpop.f32.mrb[0].mxu0
        %v3282 = vpop.f32.mrb[0].mxu0
        %3283 = vdwg.mxu0
        %3284 = vrot.lane.b32.xlu0 %v2612, 32
        %v3285 = vpop.permute.xlu0 %3284
        %3286 = vrot.lane.b32.xlu0 %v2613, 32
        %v3287 = vpop.permute.xlu0 %3286
        %v3289 = vsel %vm1032, %v3285, 0
        %v3292 = vsel %vm1032, %v3287, 0
        %3294 = vmatprep.subr.bf16.mxu0 0
        %3295 = vmatpush1.bf16.xpose.msra.mxu0 %v3292
        %3296 = vmatprep.subr.bf16.mxu0 0
        %3297 = vmatpush1.bf16.xpose.msra.mxu0 0
        %3298 = vmatprep.subr.bf16.mxu0 0
        %3299 = vmatpush1.bf16.xpose.msra.mxu0 0
        %3300 = vmatprep.subr.bf16.mxu0 0
        %3301 = vmatpush1.bf16.xpose.msra.mxu0 0
        %3302 = vmatprep.subr.bf16.mxu0 0
        %3303 = vmatpush1.bf16.xpose.msra.mxu0 0
        %3304 = vmatprep.subr.bf16.mxu0 0
        %3305 = vmatpush1.bf16.xpose.msra.mxu0 0
        %3306 = vmatprep.subr.bf16.mxu0 0
        %3307 = vmatpush1.bf16.xpose.msra.mxu0 0
        %3308 = vmatprep.subr.bf16.mxu0 0
        %3309 = vmatpush1.bf16.xpose.msra.mxu0 0
        %3310 = vmatprep.subr.bf16.mxu0 0
        %3311 = vmatpush1.bf16.xpose.msra.mxu0 0
        %3312 = vmatprep.subr.bf16.mxu0 0
        %3313 = vmatpush1.bf16.xpose.msra.mxu0 0
        %3314 = vmatprep.subr.bf16.mxu0 0
        %3315 = vmatpush1.bf16.xpose.msra.mxu0 0
        %3316 = vmatprep.subr.bf16.mxu0 0
        %3317 = vmatpush1.bf16.xpose.msra.mxu0 0
        %3318 = vmatprep.subr.bf16.mxu0 0
        %3319 = vmatpush1.bf16.xpose.msra.mxu0 0
        %3320 = vmatprep.subr.bf16.mxu0 0
        %3321 = vmatpush1.bf16.xpose.msra.mxu0 0
        %3322 = vmatprep.subr.bf16.mxu0 0
        %3323 = vmatpush1.bf16.xpose.msra.mxu0 0
        %3324 = vmatprep.subr.bf16.mxu0 0
        %3325 = vmatpush1.bf16.xpose.msra.mxu0 0
        %3326 = vmatprep.mubr.bf16.mxu0 0
        %3327 = vmatmul.mubr.bf16.gmra.mrb[0].mxu0 %v3289
        %v3328 = vpop.f32.mrb[0].mxu0
        %v3329 = vadd.f32 0.0, %v3328
        %v3330 = vpop.f32.mrb[0].mxu0
        %v3331 = vpop.f32.mrb[0].mxu0
        %v3332 = vpop.f32.mrb[0].mxu0
        %3333 = vdwg.mxu0
        %v3334 = vmul.f32 %v3329, 0.25
        %v3335 = vsel %vm744, -1e+30, %v3334
        %v3336 = vsel %vm1081, %v3335, -inf
        %3337 = vmax.xlane.f32.xlu0 %v3336
        %v3338 = vpop.xlane.xlu0 %3337
        %v3339 = vsub.f32 %v3335, %v3338
        %v3340 = vmul.f32 %v3339, 1.442695
        %v3341 = vpow.pop %v3340
        %v3342 = vsel %vm1081, %v3341, 0.0
        %3343 = vadd.xlane.f32.xlu0 %v3342
        %v3344 = vpop.xlane.xlu0 %3343
        %v3345 = vrcp.pop %v3344
        %v3346 = vmul.f32 %v3341, %v3345
        %v3347 = vpack.c.bf16 %v3346, %v3346
        %3348 = vrot.lane.b32.xlu0 %v2614, 32
        %v3349 = vpop.permute.xlu0 %3348
        %v3351 = vsel %vm1081, %v3347, 0
        %v3354 = vsel %vm1097, %v3349, 0
        %3356 = vmatprep.subr.bf16.mxu0 0
        %3357 = vmatpush1.bf16.msra.mxu0 %v3354
        %3358 = vmatprep.subr.bf16.mxu0 0
        %3359 = vmatpush1.bf16.msra.mxu0 0
        %3360 = vmatprep.subr.bf16.mxu0 0
        %3361 = vmatpush1.bf16.msra.mxu0 0
        %3362 = vmatprep.subr.bf16.mxu0 0
        %3363 = vmatpush1.bf16.msra.mxu0 0
        %3364 = vmatprep.subr.bf16.mxu0 0
        %3365 = vmatpush1.bf16.msra.mxu0 0
        %3366 = vmatprep.subr.bf16.mxu0 0
        %3367 = vmatpush1.bf16.msra.mxu0 0
        %3368 = vmatprep.subr.bf16.mxu0 0
        %3369 = vmatpush1.bf16.msra.mxu0 0
        %3370 = vmatprep.subr.bf16.mxu0 0
        %3371 = vmatpush1.bf16.msra.mxu0 0
        %3372 = vmatprep.subr.bf16.mxu0 0
        %3373 = vmatpush1.bf16.msra.mxu0 0
        %3374 = vmatprep.subr.bf16.mxu0 0
        %3375 = vmatpush1.bf16.msra.mxu0 0
        %3376 = vmatprep.subr.bf16.mxu0 0
        %3377 = vmatpush1.bf16.msra.mxu0 0
        %3378 = vmatprep.subr.bf16.mxu0 0
        %3379 = vmatpush1.bf16.msra.mxu0 0
        %3380 = vmatprep.subr.bf16.mxu0 0
        %3381 = vmatpush1.bf16.msra.mxu0 0
        %3382 = vmatprep.subr.bf16.mxu0 0
        %3383 = vmatpush1.bf16.msra.mxu0 0
        %3384 = vmatprep.subr.bf16.mxu0 0
        %3385 = vmatpush1.bf16.msra.mxu0 0
        %3386 = vmatprep.subr.bf16.mxu0 0
        %3387 = vmatpush1.bf16.msra.mxu0 0
        %3388 = vmatprep.mubr.bf16.mxu0 0
        %3389 = vmatmul.mubr.bf16.gmra.mrb[0].mxu0 %v3351
        %v3390 = vpop.f32.mrb[0].mxu0
        %v3391 = vadd.f32 0.0, %v3390
        %v3392 = vpop.f32.mrb[0].mxu0
        %v3393 = vpop.f32.mrb[0].mxu0
        %v3394 = vpop.f32.mrb[0].mxu0
        %3395 = vdwg.mxu0
        %3396 = vrot.lane.b32.xlu0 %v2612, 16
        %v3397 = vpop.permute.xlu0 %3396
        %3398 = vrot.lane.b32.xlu0 %v2613, 16
        %v3399 = vpop.permute.xlu0 %3398
        %v3401 = vsel %vm1032, %v3397, 0
        %v3404 = vsel %vm1032, %v3399, 0
        %3406 = vmatprep.subr.bf16.mxu0 0
        %3407 = vmatpush1.bf16.xpose.msra.mxu0 %v3404
        %3408 = vmatprep.subr.bf16.mxu0 0
        %3409 = vmatpush1.bf16.xpose.msra.mxu0 0
        %3410 = vmatprep.subr.bf16.mxu0 0
        %3411 = vmatpush1.bf16.xpose.msra.mxu0 0
        %3412 = vmatprep.subr.bf16.mxu0 0
        %3413 = vmatpush1.bf16.xpose.msra.mxu0 0
        %3414 = vmatprep.subr.bf16.mxu0 0
        %3415 = vmatpush1.bf16.xpose.msra.mxu0 0
        %3416 = vmatprep.subr.bf16.mxu0 0
        %3417 = vmatpush1.bf16.xpose.msra.mxu0 0
        %3418 = vmatprep.subr.bf16.mxu0 0
        %3419 = vmatpush1.bf16.xpose.msra.mxu0 0
        %3420 = vmatprep.subr.bf16.mxu0 0
        %3421 = vmatpush1.bf16.xpose.msra.mxu0 0
        %3422 = vmatprep.subr.bf16.mxu0 0
        %3423 = vmatpush1.bf16.xpose.msra.mxu0 0
        %3424 = vmatprep.subr.bf16.mxu0 0
        %3425 = vmatpush1.bf16.xpose.msra.mxu0 0
        %3426 = vmatprep.subr.bf16.mxu0 0
        %3427 = vmatpush1.bf16.xpose.msra.mxu0 0
        %3428 = vmatprep.subr.bf16.mxu0 0
        %3429 = vmatpush1.bf16.xpose.msra.mxu0 0
        %3430 = vmatprep.subr.bf16.mxu0 0
        %3431 = vmatpush1.bf16.xpose.msra.mxu0 0
        %3432 = vmatprep.subr.bf16.mxu0 0
        %3433 = vmatpush1.bf16.xpose.msra.mxu0 0
        %3434 = vmatprep.subr.bf16.mxu0 0
        %3435 = vmatpush1.bf16.xpose.msra.mxu0 0
        %3436 = vmatprep.subr.bf16.mxu0 0
        %3437 = vmatpush1.bf16.xpose.msra.mxu0 0
        %3438 = vmatprep.mubr.bf16.mxu0 0
        %3439 = vmatmul.mubr.bf16.gmra.mrb[0].mxu0 %v3401
        %v3440 = vpop.f32.mrb[0].mxu0
        %v3441 = vadd.f32 0.0, %v3440
        %v3442 = vpop.f32.mrb[0].mxu0
        %v3443 = vpop.f32.mrb[0].mxu0
        %v3444 = vpop.f32.mrb[0].mxu0
        %3445 = vdwg.mxu0
        %v3446 = vmul.f32 %v3441, 0.25
        %v3447 = vsel %vm744, -1e+30, %v3446
        %v3448 = vsel %vm1081, %v3447, -inf
        %3449 = vmax.xlane.f32.xlu0 %v3448
        %v3450 = vpop.xlane.xlu0 %3449
        %v3451 = vsub.f32 %v3447, %v3450
        %v3452 = vmul.f32 %v3451, 1.442695
        %v3453 = vpow.pop %v3452
        %v3454 = vsel %vm1081, %v3453, 0.0
        %3455 = vadd.xlane.f32.xlu0 %v3454
        %v3456 = vpop.xlane.xlu0 %3455
        %v3457 = vrcp.pop %v3456
        %v3458 = vmul.f32 %v3453, %v3457
        %v3459 = vpack.c.bf16 %v3458, %v3458
        %3460 = vrot.lane.b32.xlu0 %v2614, 16
        %v3461 = vpop.permute.xlu0 %3460
        %v3463 = vsel %vm1081, %v3459, 0
        %v3466 = vsel %vm1097, %v3461, 0
        %3468 = vmatprep.subr.bf16.mxu0 0
        %3469 = vmatpush1.bf16.msra.mxu0 %v3466
        %3470 = vmatprep.subr.bf16.mxu0 0
        %3471 = vmatpush1.bf16.msra.mxu0 0
        %3472 = vmatprep.subr.bf16.mxu0 0
        %3473 = vmatpush1.bf16.msra.mxu0 0
        %3474 = vmatprep.subr.bf16.mxu0 0
        %3475 = vmatpush1.bf16.msra.mxu0 0
        %3476 = vmatprep.subr.bf16.mxu0 0
        %3477 = vmatpush1.bf16.msra.mxu0 0
        %3478 = vmatprep.subr.bf16.mxu0 0
        %3479 = vmatpush1.bf16.msra.mxu0 0
        %3480 = vmatprep.subr.bf16.mxu0 0
        %3481 = vmatpush1.bf16.msra.mxu0 0
        %3482 = vmatprep.subr.bf16.mxu0 0
        %3483 = vmatpush1.bf16.msra.mxu0 0
        %3484 = vmatprep.subr.bf16.mxu0 0
        %3485 = vmatpush1.bf16.msra.mxu0 0
        %3486 = vmatprep.subr.bf16.mxu0 0
        %3487 = vmatpush1.bf16.msra.mxu0 0
        %3488 = vmatprep.subr.bf16.mxu0 0
        %3489 = vmatpush1.bf16.msra.mxu0 0
        %3490 = vmatprep.subr.bf16.mxu0 0
        %3491 = vmatpush1.bf16.msra.mxu0 0
        %3492 = vmatprep.subr.bf16.mxu0 0
        %3493 = vmatpush1.bf16.msra.mxu0 0
        %3494 = vmatprep.subr.bf16.mxu0 0
        %3495 = vmatpush1.bf16.msra.mxu0 0
        %3496 = vmatprep.subr.bf16.mxu0 0
        %3497 = vmatpush1.bf16.msra.mxu0 0
        %3498 = vmatprep.subr.bf16.mxu0 0
        %3499 = vmatpush1.bf16.msra.mxu0 0
        %3500 = vmatprep.mubr.bf16.mxu0 0
        %3501 = vmatmul.mubr.bf16.gmra.mrb[0].mxu0 %v3463
        %v3502 = vpop.f32.mrb[0].mxu0
        %v3503 = vadd.f32 0.0, %v3502
        %v3504 = vpop.f32.mrb[0].mxu0
        %v3505 = vpop.f32.mrb[0].mxu0
        %v3506 = vpop.f32.mrb[0].mxu0
        %3507 = vdwg.mxu0
        %3509 = vrot.lane.b32.xlu0 %v2831, 16
        %v3510 = vpop.permute.xlu0 %3509
        %3513 = vrot.lane.b32.xlu0 %v2943, 32
        %v3514 = vpop.permute.xlu0 %3513
        %3517 = vrot.lane.b32.xlu0 %v3055, 48
        %v3518 = vpop.permute.xlu0 %3517
        %3521 = vrot.lane.b32.xlu0 %v3167, 64
        %v3522 = vpop.permute.xlu0 %3521
        %3525 = vrot.lane.b32.xlu0 %v3279, 80
        %v3526 = vpop.permute.xlu0 %3525
        %3529 = vrot.lane.b32.xlu0 %v3391, 96
        %v3530 = vpop.permute.xlu0 %3529
        %3533 = vrot.lane.b32.xlu0 %v3503, 112
        %v3534 = vpop.permute.xlu0 %3533
        %v3536 = vsel %vm1032, %v2716, %v3510
        %v3537 = vsel %vm1957, %v3536, %v3514
        %v3538 = vsel %vm1959, %v3537, %v3518
        %v3539 = vsel %vm1961, %v3538, %v3522
        %v3540 = vsel %vm1963, %v3539, %v3526
        %v3541 = vsel %vm1965, %v3540, %v3530
        %v3542 = vsel %vm1967, %v3541, %v3534
        %s3543 = scalar_lea.vmem [#allocation10], 64
        %v3544 = vld [vmem:[%s3543] sm:$0xf]
        %v3545 = vld [vmem:[%s3543 + $0x4] sm:$0xf]
        %v3546 = vld [vmem:[%s3543 + $0x8] sm:$0xf]
        %v3547 = vld [vmem:[%s3543 + $0xc] sm:$0xf]
        %v3548 = vld [vmem:[%s3543 + $0x10] sm:$0xf]
        %v3549 = vld [vmem:[%s3543 + $0x14] sm:$0xf]
        %v3550 = vld [vmem:[%s3543 + $0x18] sm:$0xf]
        %v3551 = vld [vmem:[%s3543 + $0x1c] sm:$0xf]
        %v3552 = vld [vmem:[%s3543 + $0x20] sm:$0xf]
        %v3553 = vld [vmem:[%s3543 + $0x24] sm:$0xf]
        %v3554 = vld [vmem:[%s3543 + $0x28] sm:$0xf]
        %v3555 = vld [vmem:[%s3543 + $0x2c] sm:$0xf]
        %v3556 = vld [vmem:[%s3543 + $0x30] sm:$0xf]
        %v3557 = vld [vmem:[%s3543 + $0x34] sm:$0xf]
        %v3558 = vld [vmem:[%s3543 + $0x38] sm:$0xf]
        %v3559 = vld [vmem:[%s3543 + $0x3c] sm:$0xf]
        %v3560 = vpack.c.bf16 %v3542, %v3542
        %v3561 = vld [vmem:[#allocation11 + $0x1] sm:$0x1]
        %v3562 = vlaneseq
        %v3563 = vshrl.u32 %v3562, 7
        %v3564 = vsub.s32 0, %v3563
        %v3565 = vrot.slane %v3561, %v3564
        %v3582 = vunpack.c.l.b16 %v3544
        %v3583 = vunpack.c.l.b16 %v3545
        %v3584 = vunpack.c.l.b16 %v3546
        %v3585 = vunpack.c.l.b16 %v3547
        %v3586 = vunpack.c.l.b16 %v3548
        %v3587 = vunpack.c.l.b16 %v3549
        %v3588 = vunpack.c.l.b16 %v3550
        %v3589 = vunpack.c.l.b16 %v3551
        %v3590 = vunpack.c.l.b16 %v3552
        %v3591 = vunpack.c.l.b16 %v3553
        %v3592 = vunpack.c.l.b16 %v3554
        %v3593 = vunpack.c.l.b16 %v3555
        %v3594 = vunpack.c.l.b16 %v3556
        %v3595 = vunpack.c.l.b16 %v3557
        %v3596 = vunpack.c.l.b16 %v3558
        %v3597 = vunpack.c.l.b16 %v3559
        %v3598 = vpack.c.b16 %v3583, %v3582
        %v3599 = vpack.c.b16 %v3585, %v3584
        %v3600 = vpack.c.b16 %v3587, %v3586
        %v3601 = vpack.c.b16 %v3589, %v3588
        %v3602 = vpack.c.b16 %v3591, %v3590
        %v3603 = vpack.c.b16 %v3593, %v3592
        %v3604 = vpack.c.b16 %v3595, %v3594
        %v3605 = vpack.c.b16 %v3597, %v3596
        %3614 = vmatprep.subr.bf16.mxu0 0
        %3615 = vmatpush1.bf16.msra.mxu0 %v3598
        %3616 = vmatprep.subr.bf16.mxu0 0
        %3617 = vmatpush1.bf16.msra.mxu0 %v3599
        %3618 = vmatprep.subr.bf16.mxu0 0
        %3619 = vmatpush1.bf16.msra.mxu0 %v3600
        %3620 = vmatprep.subr.bf16.mxu0 0
        %3621 = vmatpush1.bf16.msra.mxu0 %v3601
        %3622 = vmatprep.subr.bf16.mxu0 0
        %3623 = vmatpush1.bf16.msra.mxu0 %v3602
        %3624 = vmatprep.subr.bf16.mxu0 0
        %3625 = vmatpush1.bf16.msra.mxu0 %v3603
        %3626 = vmatprep.subr.bf16.mxu0 0
        %3627 = vmatpush1.bf16.msra.mxu0 %v3604
        %3628 = vmatprep.subr.bf16.mxu0 0
        %3629 = vmatpush1.bf16.msra.mxu0 %v3605
        %3630 = vmatprep.subr.bf16.mxu0 0
        %3631 = vmatpush1.bf16.msra.mxu0 0
        %3632 = vmatprep.subr.bf16.mxu0 0
        %3633 = vmatpush1.bf16.msra.mxu0 0
        %3634 = vmatprep.subr.bf16.mxu0 0
        %3635 = vmatpush1.bf16.msra.mxu0 0
        %3636 = vmatprep.subr.bf16.mxu0 0
        %3637 = vmatpush1.bf16.msra.mxu0 0
        %3638 = vmatprep.subr.bf16.mxu0 0
        %3639 = vmatpush1.bf16.msra.mxu0 0
        %3640 = vmatprep.subr.bf16.mxu0 0
        %3641 = vmatpush1.bf16.msra.mxu0 0
        %3642 = vmatprep.subr.bf16.mxu0 0
        %3643 = vmatpush1.bf16.msra.mxu0 0
        %3644 = vmatprep.subr.bf16.mxu0 0
        %3645 = vmatpush1.bf16.msra.mxu0 0
        %3646 = vmatprep.mubr.bf16.mxu0 0
        %3647 = vmatmul.mubr.bf16.gmra.mrb[0].mxu0 %v3560
        %v3648 = vpop.f32.mrb[0].mxu0
        %v3649 = vadd.f32 %v3565, %v3648
        %v3650 = vpop.f32.mrb[0].mxu0
        %v3651 = vpop.f32.mrb[0].mxu0
        %v3652 = vpop.f32.mrb[0].mxu0
        %3653 = vdwg.mxu0
        %v3654 = vadd.f32 %v2348, %v3649
        %v3655 = vld [vmem:[#allocation13 + $0x1] sm:$0x1]
        %v3656 = vld [vmem:[#allocation14 + $0x1] sm:$0x1]
        %3657 = vadd.xlane.f32.xlu0 %v3654
        %v3658 = vpop.xlane.xlu0 %3657
        %v3659 = vmul.f32 %v3658, %v749
        %v3660 = vsub.f32 %v3654, %v3659
        %v3661 = vmul.f32 %v3660, %v3660
        %3662 = vadd.xlane.f32.xlu0 %v3661
        %v3663 = vpop.xlane.xlu0 %3662
        %v3664 = vmul.f32 %v3663, %v749
        %v3665 = vadd.f32 %v3664, 1e-08
        %v3666 = vrsqrt.pop %v3665
        %v3667 = vmul.f32 %v3660, %v3666
        %v3668 = vlaneseq
        %v3669 = vshrl.u32 %v3668, 7
        %v3670 = vsub.s32 0, %v3669
        %v3671 = vrot.slane %v3655, %v3670
        %v3672 = vmul.f32 %v3667, %v3671
        %v3673 = vlaneseq
        %v3674 = vshrl.u32 %v3673, 7
        %v3675 = vsub.s32 0, %v3674
        %v3676 = vrot.slane %v3656, %v3675
        %v3677 = vadd.f32 %v3672, %v3676
        %s3678 = scalar_lea.vmem [#allocation16], 64
        %v3679 = vld [vmem:[%s3678] sm:$0xf]
        %v3680 = vld [vmem:[%s3678 + $0x4] sm:$0xf]
        %v3681 = vld [vmem:[%s3678 + $0x8] sm:$0xf]
        %v3682 = vld [vmem:[%s3678 + $0xc] sm:$0xf]
        %v3683 = vld [vmem:[%s3678 + $0x10] sm:$0xf]
        %v3684 = vld [vmem:[%s3678 + $0x14] sm:$0xf]
        %v3685 = vld [vmem:[%s3678 + $0x18] sm:$0xf]
        %v3686 = vld [vmem:[%s3678 + $0x1c] sm:$0xf]
        %v3687 = vld [vmem:[%s3678 + $0x20] sm:$0xf]
        %v3688 = vld [vmem:[%s3678 + $0x24] sm:$0xf]
        %v3689 = vld [vmem:[%s3678 + $0x28] sm:$0xf]
        %v3690 = vld [vmem:[%s3678 + $0x2c] sm:$0xf]
        %v3691 = vld [vmem:[%s3678 + $0x30] sm:$0xf]
        %v3692 = vld [vmem:[%s3678 + $0x34] sm:$0xf]
        %v3693 = vld [vmem:[%s3678 + $0x38] sm:$0xf]
        %v3694 = vld [vmem:[%s3678 + $0x3c] sm:$0xf]
        %v3695 = vpack.c.bf16 %v3677, %v3677
        %v3696 = vld [vmem:[#allocation17 + $0x1] sm:$0x1]
        %v3697 = vlaneseq
        %v3698 = vshrl.u32 %v3697, 7
        %v3699 = vsub.s32 0, %v3698
        %v3700 = vrot.slane %v3696, %v3699
        %v3717 = vunpack.c.l.b16 %v3679
        %v3718 = vunpack.c.l.b16 %v3680
        %v3719 = vunpack.c.l.b16 %v3681
        %v3720 = vunpack.c.l.b16 %v3682
        %v3721 = vunpack.c.l.b16 %v3683
        %v3722 = vunpack.c.l.b16 %v3684
        %v3723 = vunpack.c.l.b16 %v3685
        %v3724 = vunpack.c.l.b16 %v3686
        %v3725 = vunpack.c.l.b16 %v3687
        %v3726 = vunpack.c.l.b16 %v3688
        %v3727 = vunpack.c.l.b16 %v3689
        %v3728 = vunpack.c.l.b16 %v3690
        %v3729 = vunpack.c.l.b16 %v3691
        %v3730 = vunpack.c.l.b16 %v3692
        %v3731 = vunpack.c.l.b16 %v3693
        %v3732 = vunpack.c.l.b16 %v3694
        %v3733 = vpack.c.b16 %v3718, %v3717
        %v3734 = vpack.c.b16 %v3720, %v3719
        %v3735 = vpack.c.b16 %v3722, %v3721
        %v3736 = vpack.c.b16 %v3724, %v3723
        %v3737 = vpack.c.b16 %v3726, %v3725
        %v3738 = vpack.c.b16 %v3728, %v3727
        %v3739 = vpack.c.b16 %v3730, %v3729
        %v3740 = vpack.c.b16 %v3732, %v3731
        %3749 = vmatprep.subr.bf16.mxu0 0
        %3750 = vmatpush1.bf16.msra.mxu0 %v3733
        %3751 = vmatprep.subr.bf16.mxu0 0
        %3752 = vmatpush1.bf16.msra.mxu0 %v3734
        %3753 = vmatprep.subr.bf16.mxu0 0
        %3754 = vmatpush1.bf16.msra.mxu0 %v3735
        %3755 = vmatprep.subr.bf16.mxu0 0
        %3756 = vmatpush1.bf16.msra.mxu0 %v3736
        %3757 = vmatprep.subr.bf16.mxu0 0
        %3758 = vmatpush1.bf16.msra.mxu0 %v3737
        %3759 = vmatprep.subr.bf16.mxu0 0
        %3760 = vmatpush1.bf16.msra.mxu0 %v3738
        %3761 = vmatprep.subr.bf16.mxu0 0
        %3762 = vmatpush1.bf16.msra.mxu0 %v3739
        %3763 = vmatprep.subr.bf16.mxu0 0
        %3764 = vmatpush1.bf16.msra.mxu0 %v3740
        %3765 = vmatprep.subr.bf16.mxu0 0
        %3766 = vmatpush1.bf16.msra.mxu0 0
        %3767 = vmatprep.subr.bf16.mxu0 0
        %3768 = vmatpush1.bf16.msra.mxu0 0
        %3769 = vmatprep.subr.bf16.mxu0 0
        %3770 = vmatpush1.bf16.msra.mxu0 0
        %3771 = vmatprep.subr.bf16.mxu0 0
        %3772 = vmatpush1.bf16.msra.mxu0 0
        %3773 = vmatprep.subr.bf16.mxu0 0
        %3774 = vmatpush1.bf16.msra.mxu0 0
        %3775 = vmatprep.subr.bf16.mxu0 0
        %3776 = vmatpush1.bf16.msra.mxu0 0
        %3777 = vmatprep.subr.bf16.mxu0 0
        %3778 = vmatpush1.bf16.msra.mxu0 0
        %3779 = vmatprep.subr.bf16.mxu0 0
        %3780 = vmatpush1.bf16.msra.mxu0 0
        %3781 = vmatprep.mubr.bf16.mxu0 0
        %3782 = vmatmul.mubr.bf16.gmra.mrb[0].mxu0 %v3695
        %v3783 = vpop.f32.mrb[0].mxu0
        %v3784 = vadd.f32 %v3700, %v3783
        %v3785 = vpop.f32.mrb[0].mxu0
        %v3786 = vpop.f32.mrb[0].mxu0
        %v3787 = vpop.f32.mrb[0].mxu0
        %3788 = vdwg.mxu0
        %v3789 = vmax.f32 %v3784, 0.0
        %s3790 = scalar_lea.vmem [#allocation19], 64
        %v3791 = vld [vmem:[%s3790] sm:$0xf]
        %v3792 = vld [vmem:[%s3790 + $0x4] sm:$0xf]
        %v3793 = vld [vmem:[%s3790 + $0x8] sm:$0xf]
        %v3794 = vld [vmem:[%s3790 + $0xc] sm:$0xf]
        %v3795 = vld [vmem:[%s3790 + $0x10] sm:$0xf]
        %v3796 = vld [vmem:[%s3790 + $0x14] sm:$0xf]
        %v3797 = vld [vmem:[%s3790 + $0x18] sm:$0xf]
        %v3798 = vld [vmem:[%s3790 + $0x1c] sm:$0xf]
        %v3799 = vld [vmem:[%s3790 + $0x20] sm:$0xf]
        %v3800 = vld [vmem:[%s3790 + $0x24] sm:$0xf]
        %v3801 = vld [vmem:[%s3790 + $0x28] sm:$0xf]
        %v3802 = vld [vmem:[%s3790 + $0x2c] sm:$0xf]
        %v3803 = vld [vmem:[%s3790 + $0x30] sm:$0xf]
        %v3804 = vld [vmem:[%s3790 + $0x34] sm:$0xf]
        %v3805 = vld [vmem:[%s3790 + $0x38] sm:$0xf]
        %v3806 = vld [vmem:[%s3790 + $0x3c] sm:$0xf]
        %v3807 = vpack.c.bf16 %v3789, %v3789
        %v3808 = vld [vmem:[#allocation20 + $0x1] sm:$0x1]
        %v3809 = vlaneseq
        %v3810 = vshrl.u32 %v3809, 7
        %v3811 = vsub.s32 0, %v3810
        %v3812 = vrot.slane %v3808, %v3811
        %v3829 = vunpack.c.l.b16 %v3791
        %v3830 = vunpack.c.l.b16 %v3792
        %v3831 = vunpack.c.l.b16 %v3793
        %v3832 = vunpack.c.l.b16 %v3794
        %v3833 = vunpack.c.l.b16 %v3795
        %v3834 = vunpack.c.l.b16 %v3796
        %v3835 = vunpack.c.l.b16 %v3797
        %v3836 = vunpack.c.l.b16 %v3798
        %v3837 = vunpack.c.l.b16 %v3799
        %v3838 = vunpack.c.l.b16 %v3800
        %v3839 = vunpack.c.l.b16 %v3801
        %v3840 = vunpack.c.l.b16 %v3802
        %v3841 = vunpack.c.l.b16 %v3803
        %v3842 = vunpack.c.l.b16 %v3804
        %v3843 = vunpack.c.l.b16 %v3805
        %v3844 = vunpack.c.l.b16 %v3806
        %v3845 = vpack.c.b16 %v3830, %v3829
        %v3846 = vpack.c.b16 %v3832, %v3831
        %v3847 = vpack.c.b16 %v3834, %v3833
        %v3848 = vpack.c.b16 %v3836, %v3835
        %v3849 = vpack.c.b16 %v3838, %v3837
        %v3850 = vpack.c.b16 %v3840, %v3839
        %v3851 = vpack.c.b16 %v3842, %v3841
        %v3852 = vpack.c.b16 %v3844, %v3843
        %3861 = vmatprep.subr.bf16.mxu0 0
        %3862 = vmatpush1.bf16.msra.mxu0 %v3845
        %3863 = vmatprep.subr.bf16.mxu0 0
        %3864 = vmatpush1.bf16.msra.mxu0 %v3846
        %3865 = vmatprep.subr.bf16.mxu0 0
        %3866 = vmatpush1.bf16.msra.mxu0 %v3847
        %3867 = vmatprep.subr.bf16.mxu0 0
        %3868 = vmatpush1.bf16.msra.mxu0 %v3848
        %3869 = vmatprep.subr.bf16.mxu0 0
        %3870 = vmatpush1.bf16.msra.mxu0 %v3849
        %3871 = vmatprep.subr.bf16.mxu0 0
        %3872 = vmatpush1.bf16.msra.mxu0 %v3850
        %3873 = vmatprep.subr.bf16.mxu0 0
        %3874 = vmatpush1.bf16.msra.mxu0 %v3851
        %3875 = vmatprep.subr.bf16.mxu0 0
        %3876 = vmatpush1.bf16.msra.mxu0 %v3852
        %3877 = vmatprep.subr.bf16.mxu0 0
        %3878 = vmatpush1.bf16.msra.mxu0 0
        %3879 = vmatprep.subr.bf16.mxu0 0
        %3880 = vmatpush1.bf16.msra.mxu0 0
        %3881 = vmatprep.subr.bf16.mxu0 0
        %3882 = vmatpush1.bf16.msra.mxu0 0
        %3883 = vmatprep.subr.bf16.mxu0 0
        %3884 = vmatpush1.bf16.msra.mxu0 0
        %3885 = vmatprep.subr.bf16.mxu0 0
        %3886 = vmatpush1.bf16.msra.mxu0 0
        %3887 = vmatprep.subr.bf16.mxu0 0
        %3888 = vmatpush1.bf16.msra.mxu0 0
        %3889 = vmatprep.subr.bf16.mxu0 0
        %3890 = vmatpush1.bf16.msra.mxu0 0
        %3891 = vmatprep.subr.bf16.mxu0 0
        %3892 = vmatpush1.bf16.msra.mxu0 0
        %3893 = vmatprep.mubr.bf16.mxu0 0
        %3894 = vmatmul.mubr.bf16.gmra.mrb[0].mxu0 %v3807
        %v3895 = vpop.f32.mrb[0].mxu0
        %v3896 = vadd.f32 %v3812, %v3895
        %v3897 = vpop.f32.mrb[0].mxu0
        %v3898 = vpop.f32.mrb[0].mxu0
        %v3899 = vpop.f32.mrb[0].mxu0
        %3900 = vdwg.mxu0
        %v3901 = vadd.f32 %v3896, %v3677
        %v3902 = vmul.f32 %v3901, %v738
        %v3903 = vld [vmem:[%s16] sm:$0x1]
        %v3904 = vld [vmem:[%s17] sm:$0x1]
        %3905 = vadd.xlane.f32.xlu0 %v3902
        %v3906 = vpop.xlane.xlu0 %3905
        %v3907 = vmul.f32 %v3906, %v749
        %v3908 = vsub.f32 %v3902, %v3907
        %v3909 = vmul.f32 %v3908, %v3908
        %3910 = vadd.xlane.f32.xlu0 %v3909
        %v3911 = vpop.xlane.xlu0 %3910
        %v3912 = vmul.f32 %v3911, %v749
        %v3913 = vadd.f32 %v3912, 1e-08
        %v3914 = vrsqrt.pop %v3913
        %v3915 = vmul.f32 %v3908, %v3914
        %v3917 = vlaneseq
        %v3918 = vshrl.u32 %v3917, 7
        %v3919 = vsub.s32 0, %v3918
        %v3920 = vrot.slane %v3903, %v3919
        %v3922 = vmul.f32 %v3915, %v3920
        %v3924 = vlaneseq
        %v3925 = vshrl.u32 %v3924, 7
        %v3926 = vsub.s32 0, %v3925
        %v3927 = vrot.slane %v3904, %v3926
        %v3929 = vadd.f32 %v3922, %v3927
        %3930 = vst [vmem:[%s727] sm:$0xff] %v3929
        %s3931 = sand.u32 %s430, 1
        %s3932 = scalar_lea.sflag [#allocation4], %s3931
        %s3933 = sand.u32 %s430, 1
        %s3934 = smul.addr %s3933, 8
        %s3935 = scalar_lea.vmem [#allocation22], %s3934
        // Predicated region
        $region141: #{log2feats_forward.1} parent=91 // pred_check
          %p3936 = pneg %p440
        $region142: #{log2feats_forward.1} parent=91 // pred_check_branch
          %3938 = sbr.rel (%p3936) target = $region144
        $region143: #{log2feats_forward.1} parent=91 // pred_region
          %s3940 = ssub.s32 128, 128
          %3941 = vsyncadd %s3932, %s3940
          %s3942 = smul.addr %s39, 128
          %s3943 = scalar_lea.hbm %s18, %s3942
          %s3945 = sshll.u32 %s3935, 4
          %s3946 = int_to_ptr.vmem [resolvable:$true] %s3945
          %3948 = dma.vmem_to_hbm [thread:$0]  %s3946, 128, %s3943, %s3932
        $region144: #{log2feats_forward.1} parent=91 // pred_fallthru
          _
      $region92: #{log2feats_forward.1} parent=5 // pred_fallthru
        _
      %p3949 = scmp.le.s32.totalorder 2, %s34
      // Predicated region
      $region145: #{log2feats_forward.1} parent=5 // pred_check
        %p3950 = pneg %p3949
      $region146: #{log2feats_forward.1} parent=5 // pred_check_branch
        %3952 = sbr.rel (%p3950) target = $region148
      $region147: #{log2feats_forward.1} parent=5 // pred_region
        %s3953 = ssub.s32 %s34, 2
        // Predicated region
        $region149: #{log2feats_forward.1} parent=147 // pred_check
          %p3954 = pneg %p446
        $region150: #{log2feats_forward.1} parent=147 // pred_check_branch
          %3956 = sbr.rel (%p3954) target = $region152
        $region151: #{log2feats_forward.1} parent=147 // pred_region
          %s3957 = sand.u32 %s431, 1
          %s3958 = scalar_lea.sflag [#allocation4], %s3957
          %s3959 = sand.u32 %s431, 1
          %s3960 = smul.addr %s3959, 8
          %s3961 = scalar_lea.vmem [#allocation22], %s3960
          %3962 = dma.done %s3958, 128
        $region152: #{log2feats_forward.1} parent=147 // pred_fallthru
          _
      $region148: #{log2feats_forward.1} parent=5 // pred_fallthru
        _
    $region6: #{log2feats_forward.1} parent=1 // loop_footer
      %s38 = sadd.s32 1, %s34
    $region7: #{log2feats_forward.1} parent=1 // loop_footer_branch
      %33 = sbr.rel target = $region3
    $region8: #{log2feats_forward.1} parent=1 // loop_exit
      _
    %3963 = vsyncpa [#allocation3], 1
    %s3964 = scalar_lea.sflag [#allocation3], 1
    %3965 = vsyncpa %s3964, 1
    %3966 = vsyncpa [#allocation6], 1
    %3967 = vsyncpa [#allocation9], 1
    %3968 = vsyncpa [#allocation12], 1
    %3969 = vsyncpa [#allocation15], 1
    %3970 = vsyncpa [#allocation18], 1
    %3971 = vsyncpa [#allocation21], 1
    %3972 = vsyncpa [#allocation4], 1
    %s3973 = scalar_lea.sflag [#allocation4], 1
    %3974 = vsyncpa %s3973, 1

</llo_original>
